<compile_context>
chip_gen: v7x
topology: tpu7x:2x2x1
jax: 0.10.0
libtpu: 0.0.40
codegen_flags: <defaults>
</compile_context>

<pallas_src>
import functools

import jax
import jax.numpy as jnp
import numpy as np
from jax.experimental import pallas as pl
from jax.experimental.pallas import tpu as pltpu


def _round_up(x, m):
    return (x + m - 1) // m * m


def _num_tensorcores():
    """TensorCores a single Pallas grid can shard "parallel" axes across.
    Conservative: report 2 only on chips known to expose two cores/device."""
    try:
        kind = jax.devices()[0].device_kind.lower()
    except Exception:
        return 1
    if "lite" in kind or "v5e" in kind or "v6" in kind:
        return 1
    if "v7" in kind or "v5p" in kind or "v4" in kind:
        return 2
    return 1


def _choose_time_chunk(T, bb, H_pad, mxu_bytes, budget_bytes=16 * 1024 * 1024):
    """Largest time chunk whose streamed blocks fit a conservative VMEM budget."""
    per_t = bb * H_pad * (2 * mxu_bytes   # x chunk (double-buffered)
                          + 2 * 4         # out chunk f32 (double-buffered)
                          + 4 * 4)        # pre-gate scratch f32 (4*H)
    tc = max(1, budget_bytes // max(per_t, 1))
    return int(max(1, min(T, tc, 128)))


def _vmem_limit_bytes(time_chunk, bb, H_pad, mxu_bytes):
    H4 = 4 * H_pad
    need = (2 * H_pad * H4 * mxu_bytes * 2                # W_ih + W_hh (x2 bufs)
            + 2 * time_chunk * bb * H_pad * mxu_bytes     # x chunk x2
            + 2 * time_chunk * bb * H_pad * 4             # out chunk x2
            + 2 * 4 * bb * H_pad * 4                      # h0, c0, hT, cT x2
            + 2 * H4 * 4                                  # bias x2
            + time_chunk * bb * H4 * 4)                   # pre-gate scratch
    return int(min(112 * 1024 * 1024,
                   max(32 * 1024 * 1024, 2 * need + (2 << 20))))


# ----------------------------------------------------------------------------
# Fused kernel: per (batch-block, time-chunk) grid step
#   1) pre_gates_chunk = X_chunk @ W_ih + bias  (one MXU matmul -> VMEM scratch)
#   2) serial LSTM recurrence over the chunk (only h @ W_hh per step),
#      h/c carried in the resident hT/cT output blocks across time chunks.
# ----------------------------------------------------------------------------
def _decoder_lstm_kernel(x_ref, wih_ref, whh_ref, b_ref, h0_ref, c0_ref,
                         out_ref, hT_ref, cT_ref, pg_ref,
                         *, seq_len, time_chunk, unroll):
    t_blk = pl.program_id(1)
    bb, H = h0_ref.shape                   # padded batch block, padded hidden

    # New batch block: (re)initialize the resident state from h0 / c0.
    @pl.when(t_blk == 0)
    def _():
        hT_ref[...] = h0_ref[...]
        cT_ref[...] = c0_ref[...]

    # Fused input projection for the whole chunk (lane-dense MXU matmul),
    # staged in VMEM scratch so the per-step live set stays small.
    x2d = x_ref[...].reshape(time_chunk * bb, H)
    pg_ref[...] = (jnp.dot(x2d, wih_ref[...],
                           preferred_element_type=jnp.float32) + b_ref[...])

    t0 = t_blk * time_chunk
    mask_tail = (seq_len % time_chunk) != 0   # static: time padding exists?

    def step(t, carry):
        h, c = carry
        row0 = pl.multiple_of(t * bb, bb)
        gates = pg_ref[pl.ds(row0, bb), :] + jnp.dot(
            h.astype(whh_ref.dtype), whh_ref[...],
            preferred_element_type=jnp.float32)
        # Gate column order is (i, f, o, g); consume i/f/g first, o last to
        # shorten the critical path / live set.
        i_g = jax.nn.sigmoid(gates[:, 0 * H:1 * H])
        f_g = jax.nn.sigmoid(gates[:, 1 * H:2 * H])
        g_g = jnp.tanh(gates[:, 3 * H:4 * H])
        c_new = f_g * c + i_g * g_g
        o_g = jax.nn.sigmoid(gates[:, 2 * H:3 * H])
        h_new = o_g * jnp.tanh(c_new)
        out_ref[t] = h_new.astype(out_ref.dtype)
        if mask_tail:  # padded time steps must not advance the state
            valid = (t0 + t) < seq_len
            h_new = jnp.where(valid, h_new, h)
            c_new = jnp.where(valid, c_new, c)
        return h_new, c_new

    h_f, c_f = jax.lax.fori_loop(0, time_chunk, step,
                                 (hT_ref[...], cT_ref[...]), unroll=unroll)
    hT_ref[...] = h_f
    cT_ref[...] = c_f


def decoder_lstm(x_tbh, w_ih, w_hh, bias, h0, c0, *, seq_len, time_chunk, bb):
    """x_tbh: (T_pad, B_pad, H_pad) in MXU dtype; w_ih/w_hh in MXU dtype;
    bias (1, 4*H_pad) f32; h0/c0 (B_pad, H_pad) f32."""
    T_pad, B_pad, H_pad = x_tbh.shape
    H4 = w_ih.shape[1]
    mxu_bytes = jnp.dtype(x_tbh.dtype).itemsize

    if time_chunk <= 8:
        unroll = True
    elif time_chunk % 4 == 0:
        unroll = 4
    elif time_chunk % 2 == 0:
        unroll = 2
    else:
        unroll = 1

    kernel = functools.partial(_decoder_lstm_kernel, seq_len=seq_len,
                               time_chunk=time_chunk, unroll=unroll)
    return pl.pallas_call(
        kernel,
        out_shape=(
            jax.ShapeDtypeStruct((T_pad, B_pad, H_pad), jnp.float32),
            jax.ShapeDtypeStruct((B_pad, H_pad), jnp.float32),
            jax.ShapeDtypeStruct((B_pad, H_pad), jnp.float32),
        ),
        grid_spec=pltpu.PrefetchScalarGridSpec(
            num_scalar_prefetch=0,
            grid=(B_pad // bb, T_pad // time_chunk),   # time axis innermost
            in_specs=[
                pl.BlockSpec((time_chunk, bb, H_pad), lambda b, t: (t, b, 0)),
                pl.BlockSpec((H_pad, H4), lambda b, t: (0, 0)),   # W_ih
                pl.BlockSpec((H_pad, H4), lambda b, t: (0, 0)),   # W_hh
                pl.BlockSpec((1, H4), lambda b, t: (0, 0)),       # bias
                pl.BlockSpec((bb, H_pad), lambda b, t: (b, 0)),   # h0
                pl.BlockSpec((bb, H_pad), lambda b, t: (b, 0)),   # c0
            ],
            out_specs=[
                pl.BlockSpec((time_chunk, bb, H_pad), lambda b, t: (t, b, 0)),
                pl.BlockSpec((bb, H_pad), lambda b, t: (b, 0)),   # hT (carry)
                pl.BlockSpec((bb, H_pad), lambda b, t: (b, 0)),   # cT (carry)
            ],
            scratch_shapes=[
                pltpu.VMEM((time_chunk * bb, H4), jnp.float32),   # pre-gates
            ],
        ),
        compiler_params=pltpu.CompilerParams(
            dimension_semantics=("parallel", "arbitrary"),
            vmem_limit_bytes=_vmem_limit_bytes(time_chunk, bb, H_pad,
                                               mxu_bytes),
        ),
    )(x_tbh, w_ih, w_hh, bias, h0, c0)


# ----------------------------------------------------------------------------
# Parameter packing: PyTorch layout -> lane-dense, gate-reordered layout.
# ----------------------------------------------------------------------------
def init_raw_params(key, hidden_size, tgt_vocab_size, padding_idx):
    """Raw params in PyTorch layout: w_ih / w_hh are (H, 4H) (weight.T) with
    gate-column order (i, f, g, o); bias = b_ih + b_hh."""
    H = hidden_size
    k1, k2, k3, k4, k5 = jax.random.split(key, 5)
    stdv = 1.0 / np.sqrt(H)
    emb = jax.random.normal(k1, (tgt_vocab_size, H), jnp.float32)
    emb = emb.at[padding_idx].set(0.0)                      # padding_idx row -> 0
    w_ih = jax.random.uniform(k2, (H, 4 * H), jnp.float32, -stdv, stdv)
    w_hh = jax.random.uniform(k3, (H, 4 * H), jnp.float32, -stdv, stdv)
    b_ih = jax.random.uniform(k4, (4 * H,), jnp.float32, -stdv, stdv)
    b_hh = jax.random.uniform(k5, (4 * H,), jnp.float32, -stdv, stdv)
    return {"embedding": emb, "w_ih": w_ih, "w_hh": w_hh, "bias": b_ih + b_hh}


def pack_params(raw, hidden_size):
    """Reorder gate columns (i,f,g,o) -> (i,f,o,g) and zero-pad the hidden dim
    to a multiple of 128.  Zero padding is exact: padded pre-activations are 0,
    so padded h/c stay exactly 0 through the recurrence."""
    H = hidden_size
    H_pad = _round_up(H, 128)

    def reorder_and_pad_cols(w):                 # (..., 4H) -> (..., 4*H_pad)
        i, f, g, o = (w[..., k * H:(k + 1) * H] for k in range(4))
        pad = [(0, 0)] * (w.ndim - 1) + [(0, H_pad - H)]
        return jnp.concatenate([jnp.pad(p, pad) for p in (i, f, o, g)], axis=-1)

    def pad_rows(w):                             # (H, X) -> (H_pad, X)
        return jnp.pad(w, ((0, H_pad - H), (0, 0)))

    return {
        "hidden_size": H,
        "hidden_pad": H_pad,
        "embedding": jnp.pad(raw["embedding"], ((0, 0), (0, H_pad - H))),
        "w_ih": pad_rows(reorder_and_pad_cols(raw["w_ih"])),
        "w_hh": pad_rows(reorder_and_pad_cols(raw["w_hh"])),
        "bias": reorder_and_pad_cols(raw["bias"][None, :]),   # (1, 4*H_pad)
    }


# ----------------------------------------------------------------------------
# Decoder.forward equivalent.
# ----------------------------------------------------------------------------
def decoder_forward(params, tgt, dec_state, encoder_outputs, src_lengths,
                    mxu_dtype=jnp.bfloat16, num_cores=None, time_chunk=None):
    # encoder_outputs / src_lengths accepted (and unused) to match the PyTorch
    # signature; self.attn is never used in Decoder.forward.
    del encoder_outputs, src_lengths
    H = params["hidden_size"]
    H_pad = params["hidden_pad"]

    h_state, c_state = dec_state
    if h_state.shape[0] == 2:                 # reshape_state (bidir encoder)
        h_state = jnp.concatenate([h_state[:-1], h_state[1:]], axis=2)
        c_state = jnp.concatenate([c_state[:-1], c_state[1:]], axis=2)

    if tgt.shape[1] > 1:                      # tgt = tgt[:, :-1]
        tgt = tgt[:, :-1]
    B, T = tgt.shape

    # Embedding lookup (gather glue; table pre-padded, padding_idx row zero).
    emb = jnp.take(params["embedding"], tgt, axis=0)            # (B, T, H_pad)
    # nn.Dropout: identity in eval mode.

    # ---- blocking / padding decisions ------------------------------------
    mxu_bytes = jnp.dtype(mxu_dtype).itemsize
    sublane = {4: 8, 2: 16, 1: 32}[mxu_bytes]
    B_pad = _round_up(B, sublane)
    if num_cores is None:
        num_cores = _num_tensorcores()
    bb = B_pad
    if num_cores > 1 and B_pad % (sublane * num_cores) == 0:
        bb = B_pad // num_cores               # split only across real TCs

    if time_chunk is None:
        time_chunk = _choose_time_chunk(T, bb, H_pad, mxu_bytes)
    time_chunk = int(min(time_chunk, T))
    T_pad = _round_up(T, time_chunk)

    x_tbh = jnp.transpose(emb, (1, 0, 2))                        # (T, B, H_pad)
    x_tbh = jnp.pad(x_tbh, ((0, T_pad - T), (0, B_pad - B), (0, 0)))
    x_tbh = x_tbh.astype(mxu_dtype)

    def pad_state(s):                                            # -> (B_pad, H_pad)
        b, hs = s.shape
        return jnp.pad(s.astype(jnp.float32), ((0, B_pad - b), (0, H_pad - hs)))

    h0 = pad_state(h_state[0])
    c0 = pad_state(c_state[0])

    # One-time weight casts OUTSIDE the kernel (halves W DMA bytes for bf16).
    w_ih = params["w_ih"].astype(mxu_dtype)
    w_hh = params["w_hh"].astype(mxu_dtype)

    out_tbh, hT, cT = decoder_lstm(x_tbh, w_ih, w_hh, params["bias"], h0, c0,
                                   seq_len=T, time_chunk=time_chunk, bb=bb)

    res = jnp.transpose(out_tbh, (1, 0, 2))[:B, :T, :H]          # (B, T, H)
    new_state = (hT[None, :B, :H], cT[None, :B, :H])             # (1, B, H) each
    return res, new_state


# Pure-JAX reference (PyTorch gate order / layout) for the sanity check.
def _lstm_ref(x_tbh, w_ih, w_hh, bias, h0, c0):
    H = h0.shape[1]

    def step(carry, x):
        h, c = carry
        gates = x @ w_ih + h @ w_hh + bias
        i = jax.nn.sigmoid(gates[:, 0 * H:1 * H])
        f = jax.nn.sigmoid(gates[:, 1 * H:2 * H])
        g = jnp.tanh(gates[:, 2 * H:3 * H])
        o = jax.nn.sigmoid(gates[:, 3 * H:4 * H])
        c_new = f * c + i * g
        h_new = o * jnp.tanh(c_new)
        return (h_new, c_new), h_new

    (hT, cT), outs = jax.lax.scan(step, (h0, c0), x_tbh)
    return outs, hT, cT


if __name__ == "__main__":
    B, T, H, V = 2, 8, 32, 50
    PAD = 0

    key = jax.random.PRNGKey(0)
    kp, kt, kh, kc, ke = jax.random.split(key, 5)

    raw = init_raw_params(kp, H, V, PAD)
    params = pack_params(raw, H)

    tgt = jax.random.randint(kt, (B, T), 0, V, jnp.int32)        # (B, seq)
    h0 = jax.random.normal(kh, (1, B, H), jnp.float32)           # (layers, B, H)
    c0 = jax.random.normal(kc, (1, B, H), jnp.float32)
    encoder_outputs = jax.random.normal(ke, (B, T, H), jnp.float32)  # unused
    src_lengths = jnp.full((B,), T, jnp.int32)                   # unused

    # Pure-JAX reference with the raw (unpadded, PyTorch-order) weights.
    emb = jnp.take(raw["embedding"], tgt[:, :-1], axis=0)
    x_ref_tbh = jnp.transpose(emb, (1, 0, 2))
    ref_out, ref_h, ref_c = _lstm_ref(x_ref_tbh, raw["w_ih"], raw["w_hh"],
                                      raw["bias"], h0[0], c0[0])
    ref_res = jnp.transpose(ref_out, (1, 0, 2))

    # 1) f32 MXU path, single time chunk (exact vs. reference).
    res, (hT, cT) = decoder_forward(params, tgt, (h0, c0),
                                    encoder_outputs, src_lengths,
                                    mxu_dtype=jnp.float32)
    jax.block_until_ready(res)
    np.testing.assert_allclose(np.asarray(res), np.asarray(ref_res),
                               rtol=1e-5, atol=1e-5)
    np.testing.assert_allclose(np.asarray(hT[0]), np.asarray(ref_h),
                               rtol=1e-5, atol=1e-5)
    np.testing.assert_allclose(np.asarray(cT[0]), np.asarray(ref_c),
                               rtol=1e-5, atol=1e-5)

    # 2) Forced time chunking (7 steps in chunks of 3 -> padded tail masked).
    res_c, (hT_c, cT_c) = decoder_forward(params, tgt, (h0, c0),
                                          encoder_outputs, src_lengths,
                                          mxu_dtype=jnp.float32,
                                          num_cores=1, time_chunk=3)
    jax.block_until_ready(res_c)
    np.testing.assert_allclose(np.asarray(res_c), np.asarray(ref_res),
                               rtol=1e-5, atol=1e-5)
    np.testing.assert_allclose(np.asarray(hT_c[0]), np.asarray(ref_h),
                               rtol=1e-5, atol=1e-5)
    np.testing.assert_allclose(np.asarray(cT_c[0]), np.asarray(ref_c),
                               rtol=1e-5, atol=1e-5)

    # 3) Multiple batch blocks + multiple time chunks (per-block state re-init).
    B2 = 16
    kt2, kh2, kc2 = jax.random.split(jax.random.PRNGKey(1), 3)
    tgt2 = jax.random.randint(kt2, (B2, T), 0, V, jnp.int32)
    h02 = jax.random.normal(kh2, (1, B2, H), jnp.float32)
    c02 = jax.random.normal(kc2, (1, B2, H), jnp.float32)
    emb2 = jnp.take(raw["embedding"], tgt2[:, :-1], axis=0)
    ref_out2, ref_h2, ref_c2 = _lstm_ref(jnp.transpose(emb2, (1, 0, 2)),
                                         raw["w_ih"], raw["w_hh"],
                                         raw["bias"], h02[0], c02[0])
    ref_res2 = jnp.transpose(ref_out2, (1, 0, 2))
    res2, (hT2, cT2) = decoder_forward(params, tgt2, (h02, c02),
                                       jnp.zeros((B2, T, H), jnp.float32),
                                       jnp.full((B2,), T, jnp.int32),
                                       mxu_dtype=jnp.float32,
                                       num_cores=2, time_chunk=4)
    jax.block_until_ready(res2)
    np.testing.assert_allclose(np.asarray(res2), np.asarray(ref_res2),
                               rtol=1e-5, atol=1e-5)
    np.testing.assert_allclose(np.asarray(hT2[0]), np.asarray(ref_h2),
                               rtol=1e-5, atol=1e-5)

    # 4) bf16 MXU operands (default / production path), f32 gate & state math.
    res_bf, (hT_bf, cT_bf) = decoder_forward(params, tgt, (h0, c0),
                                             encoder_outputs, src_lengths,
                                             mxu_dtype=jnp.bfloat16)
    jax.block_until_ready(res_bf)
    np.testing.assert_allclose(np.asarray(res_bf), np.asarray(ref_res),
                               rtol=2e-2, atol=2e-2)
    np.testing.assert_allclose(np.asarray(hT_bf[0]), np.asarray(ref_h),
                               rtol=2e-2, atol=2e-2)

    assert res.shape == (B, T - 1, H)
    assert hT.shape == (1, B, H) and cT.shape == (1, B, H)
    print("KERNEL_OK")
</pallas_src>

<mosaic_0001>
module attributes {stable_mosaic.version = 11 : i64} {
  func.func @_decoder_lstm_kernel(%arg0: i32, %arg1: i32, %arg2: memref<7x8x128xf32, #tpu.memory_space<vmem>>, %arg3: memref<128x512xf32, #tpu.memory_space<vmem>>, %arg4: memref<128x512xf32, #tpu.memory_space<vmem>>, %arg5: memref<1x512xf32, #tpu.memory_space<vmem>>, %arg6: memref<8x128xf32, #tpu.memory_space<vmem>>, %arg7: memref<8x128xf32, #tpu.memory_space<vmem>>, %arg8: memref<7x8x128xf32, #tpu.memory_space<vmem>>, %arg9: memref<8x128xf32, #tpu.memory_space<vmem>>, %arg10: memref<8x128xf32, #tpu.memory_space<vmem>>, %arg11: memref<56x512xf32, #tpu.memory_space<vmem>>) attributes {dimension_semantics = [#tpu.dimension_semantics<parallel>, #tpu.dimension_semantics<arbitrary>], iteration_bounds = array<i64: 1, 1>, scalar_prefetch = 0 : i64, scratch_operands = 1 : i64, tpu.core_type = #tpu.core_type<tc>, window_params = [{transform_indices = @transform_0, window_bounds = array<i64: 7, 8, 128>}, {pipeline_mode = #tpu.pipeline_mode<synchronous>, transform_indices = @transform_1, window_bounds = array<i64: 128, 512>}, {pipeline_mode = #tpu.pipeline_mode<synchronous>, transform_indices = @transform_2, window_bounds = array<i64: 128, 512>}, {pipeline_mode = #tpu.pipeline_mode<synchronous>, transform_indices = @transform_3, window_bounds = array<i64: 1, 512>}, {transform_indices = @transform_4, window_bounds = array<i64: 8, 128>}, {transform_indices = @transform_5, window_bounds = array<i64: 8, 128>}, {transform_indices = @transform_6, window_bounds = array<i64: 7, 8, 128>}, {transform_indices = @transform_7, window_bounds = array<i64: 8, 128>}, {transform_indices = @transform_8, window_bounds = array<i64: 8, 128>}]} {
    %c0_i32 = arith.constant 0 : i32
    %0 = arith.cmpi eq, %arg1, %c0_i32 : i32
    %1 = arith.extui %0 : i1 to i32
    %c0_i32_0 = arith.constant 0 : i32
    %2 = arith.cmpi ne, %1, %c0_i32_0 : i32
    scf.if %2 {
      %c0_87 = arith.constant 0 : index
      %c0_88 = arith.constant 0 : index
      %267 = vector.load %arg6[%c0_87, %c0_88] : memref<8x128xf32, #tpu.memory_space<vmem>>, vector<8x128xf32>
      %c0_89 = arith.constant 0 : index
      %c0_90 = arith.constant 0 : index
      %268 = vector.load %arg9[%c0_89, %c0_90] : memref<8x128xf32, #tpu.memory_space<vmem>>, vector<8x128xf32>
      tpu.vector_store %arg9[%c0_89, %c0_90], %267 {strides = array<i32>} : memref<8x128xf32, #tpu.memory_space<vmem>>, vector<8x128xf32>,
      %c0_91 = arith.constant 0 : index
      %c0_92 = arith.constant 0 : index
      %269 = vector.load %arg7[%c0_91, %c0_92] : memref<8x128xf32, #tpu.memory_space<vmem>>, vector<8x128xf32>
      %c0_93 = arith.constant 0 : index
      %c0_94 = arith.constant 0 : index
      %270 = vector.load %arg10[%c0_93, %c0_94] : memref<8x128xf32, #tpu.memory_space<vmem>>, vector<8x128xf32>
      tpu.vector_store %arg10[%c0_93, %c0_94], %269 {strides = array<i32>} : memref<8x128xf32, #tpu.memory_space<vmem>>, vector<8x128xf32>,
    } else {
    }
    %c0 = arith.constant 0 : index
    %c0_1 = arith.constant 0 : index
    %c0_2 = arith.constant 0 : index
    %3 = vector.load %arg2[%c0, %c0_1, %c0_2] : memref<7x8x128xf32, #tpu.memory_space<vmem>>, vector<7x8x128xf32>
    %4 = vector.shape_cast %3 : vector<7x8x128xf32> to vector<56x128xf32>
    %c0_3 = arith.constant 0 : index
    %c0_4 = arith.constant 0 : index
    %5 = vector.load %arg3[%c0_3, %c0_4] : memref<128x512xf32, #tpu.memory_space<vmem>>, vector<128x512xf32>
    %cst = arith.constant dense<0.000000e+00> : vector<56x512xf32>
    %6 = tpu.matmul %4, %5, %cst {dimension_numbers = #tpu.dot_dimension_numbers<[1], [0], [0], [1], [0, 0, 1, 1], [], []>} : vector<56x128xf32>, vector<128x512xf32>, vector<56x512xf32> -> vector<56x512xf32>
    %c0_5 = arith.constant 0 : index
    %c0_6 = arith.constant 0 : index
    %7 = vector.load %arg5[%c0_5, %c0_6] : memref<1x512xf32, #tpu.memory_space<vmem>>, vector<1x512xf32>
    %8 = vector.broadcast %7 : vector<1x512xf32> to vector<56x512xf32>
    %9 = arith.addf %6, %8 : vector<56x512xf32>
    %c0_7 = arith.constant 0 : index
    %c0_8 = arith.constant 0 : index
    %10 = vector.load %arg11[%c0_7, %c0_8] : memref<56x512xf32, #tpu.memory_space<vmem>>, vector<56x512xf32>
    tpu.vector_store %arg11[%c0_7, %c0_8], %9 {strides = array<i32>} : memref<56x512xf32, #tpu.memory_space<vmem>>, vector<56x512xf32>,
    %c0_9 = arith.constant 0 : index
    %c0_10 = arith.constant 0 : index
    %11 = vector.load %arg9[%c0_9, %c0_10] : memref<8x128xf32, #tpu.memory_space<vmem>>, vector<8x128xf32>
    %c0_11 = arith.constant 0 : index
    %c0_12 = arith.constant 0 : index
    %12 = vector.load %arg10[%c0_11, %c0_12] : memref<8x128xf32, #tpu.memory_space<vmem>>, vector<8x128xf32>
    %c0_i32_13 = arith.constant 0 : i32
    %c8_i32 = arith.constant 8 : i32
    %13 = arith.muli %c0_i32_13, %c8_i32 : i32
    %14 = tpu.assume_multiple %13, 8 : i32
    %15 = arith.index_cast %14 : i32 to index
    %c0_14 = arith.constant 0 : index
    %16 = vector.load %arg11[%15, %c0_14] : memref<56x512xf32, #tpu.memory_space<vmem>>, vector<8x512xf32>
    %c0_15 = arith.constant 0 : index
    %c0_16 = arith.constant 0 : index
    %17 = vector.load %arg4[%c0_15, %c0_16] : memref<128x512xf32, #tpu.memory_space<vmem>>, vector<128x512xf32>
    %cst_17 = arith.constant dense<0.000000e+00> : vector<8x512xf32>
    %18 = tpu.matmul %11, %17, %cst_17 {dimension_numbers = #tpu.dot_dimension_numbers<[1], [0], [0], [1], [0, 0, 1, 1], [], []>} : vector<8x128xf32>, vector<128x512xf32>, vector<8x512xf32> -> vector<8x512xf32>
    %19 = arith.addf %16, %18 : vector<8x512xf32>
    %20 = vector.extract_strided_slice %19 {offsets = [0, 0], sizes = [8, 128], strides = [1, 1]} : vector<8x512xf32> to vector<8x128xf32>
    %21 = arith.negf %20 : vector<8x128xf32>
    %22 = math.exp %21 : vector<8x128xf32>
    %cst_18 = arith.constant 1.000000e+00 : f32
    %23 = vector.broadcast %cst_18 : f32 to vector<8x128xf32>
    %24 = arith.addf %23, %22 : vector<8x128xf32>
    %25 = arith.divf %23, %24 : vector<8x128xf32>
    %26 = vector.extract_strided_slice %19 {offsets = [0, 128], sizes = [8, 128], strides = [1, 1]} : vector<8x512xf32> to vector<8x128xf32>
    %27 = arith.negf %26 : vector<8x128xf32>
    %28 = math.exp %27 : vector<8x128xf32>
    %cst_19 = arith.constant 1.000000e+00 : f32
    %29 = vector.broadcast %cst_19 : f32 to vector<8x128xf32>
    %30 = arith.addf %29, %28 : vector<8x128xf32>
    %31 = arith.divf %29, %30 : vector<8x128xf32>
    %32 = vector.extract_strided_slice %19 {offsets = [0, 384], sizes = [8, 128], strides = [1, 1]} : vector<8x512xf32> to vector<8x128xf32>
    %33 = math.tanh %32 : vector<8x128xf32>
    %34 = arith.mulf %31, %12 : vector<8x128xf32>
    %35 = arith.mulf %25, %33 : vector<8x128xf32>
    %36 = arith.addf %34, %35 : vector<8x128xf32>
    %37 = vector.extract_strided_slice %19 {offsets = [0, 256], sizes = [8, 128], strides = [1, 1]} : vector<8x512xf32> to vector<8x128xf32>
    %38 = arith.negf %37 : vector<8x128xf32>
    %39 = math.exp %38 : vector<8x128xf32>
    %cst_20 = arith.constant 1.000000e+00 : f32
    %40 = vector.broadcast %cst_20 : f32 to vector<8x128xf32>
    %41 = arith.addf %40, %39 : vector<8x128xf32>
    %42 = arith.divf %40, %41 : vector<8x128xf32>
    %43 = math.tanh %36 : vector<8x128xf32>
    %44 = arith.mulf %42, %43 : vector<8x128xf32>
    %45 = arith.index_cast %c0_i32_13 : i32 to index
    %c0_21 = arith.constant 0 : index
    %c0_22 = arith.constant 0 : index
    %46 = vector.load %arg8[%45, %c0_21, %c0_22] : memref<7x8x128xf32, #tpu.memory_space<vmem>>, vector<1x8x128xf32>
    %47 = vector.shape_cast %46 : vector<1x8x128xf32> to vector<8x128xf32>
    %48 = vector.shape_cast %44 : vector<8x128xf32> to vector<1x8x128xf32>
    tpu.vector_store %arg8[%45, %c0_21, %c0_22], %48 {strides = array<i32>} : memref<7x8x128xf32, #tpu.memory_space<vmem>>, vector<1x8x128xf32>,
    %c1_i32 = arith.constant 1 : i32
    %c8_i32_23 = arith.constant 8 : i32
    %49 = arith.muli %c1_i32, %c8_i32_23 : i32
    %50 = tpu.assume_multiple %49, 8 : i32
    %51 = arith.index_cast %50 : i32 to index
    %c0_24 = arith.constant 0 : index
    %52 = vector.load %arg11[%51, %c0_24] : memref<56x512xf32, #tpu.memory_space<vmem>>, vector<8x512xf32>
    %c0_25 = arith.constant 0 : index
    %c0_26 = arith.constant 0 : index
    %53 = vector.load %arg4[%c0_25, %c0_26] : memref<128x512xf32, #tpu.memory_space<vmem>>, vector<128x512xf32>
    %cst_27 = arith.constant dense<0.000000e+00> : vector<8x512xf32>
    %54 = tpu.matmul %44, %53, %cst_27 {dimension_numbers = #tpu.dot_dimension_numbers<[1], [0], [0], [1], [0, 0, 1, 1], [], []>} : vector<8x128xf32>, vector<128x512xf32>, vector<8x512xf32> -> vector<8x512xf32>
    %55 = arith.addf %52, %54 : vector<8x512xf32>
    %56 = vector.extract_strided_slice %55 {offsets = [0, 0], sizes = [8, 128], strides = [1, 1]} : vector<8x512xf32> to vector<8x128xf32>
    %57 = arith.negf %56 : vector<8x128xf32>
    %58 = math.exp %57 : vector<8x128xf32>
    %cst_28 = arith.constant 1.000000e+00 : f32
    %59 = vector.broadcast %cst_28 : f32 to vector<8x128xf32>
    %60 = arith.addf %59, %58 : vector<8x128xf32>
    %61 = arith.divf %59, %60 : vector<8x128xf32>
    %62 = vector.extract_strided_slice %55 {offsets = [0, 128], sizes = [8, 128], strides = [1, 1]} : vector<8x512xf32> to vector<8x128xf32>
    %63 = arith.negf %62 : vector<8x128xf32>
    %64 = math.exp %63 : vector<8x128xf32>
    %cst_29 = arith.constant 1.000000e+00 : f32
    %65 = vector.broadcast %cst_29 : f32 to vector<8x128xf32>
    %66 = arith.addf %65, %64 : vector<8x128xf32>
    %67 = arith.divf %65, %66 : vector<8x128xf32>
    %68 = vector.extract_strided_slice %55 {offsets = [0, 384], sizes = [8, 128], strides = [1, 1]} : vector<8x512xf32> to vector<8x128xf32>
    %69 = math.tanh %68 : vector<8x128xf32>
    %70 = arith.mulf %67, %36 : vector<8x128xf32>
    %71 = arith.mulf %61, %69 : vector<8x128xf32>
    %72 = arith.addf %70, %71 : vector<8x128xf32>
    %73 = vector.extract_strided_slice %55 {offsets = [0, 256], sizes = [8, 128], strides = [1, 1]} : vector<8x512xf32> to vector<8x128xf32>
    %74 = arith.negf %73 : vector<8x128xf32>
    %75 = math.exp %74 : vector<8x128xf32>
    %cst_30 = arith.constant 1.000000e+00 : f32
    %76 = vector.broadcast %cst_30 : f32 to vector<8x128xf32>
    %77 = arith.addf %76, %75 : vector<8x128xf32>
    %78 = arith.divf %76, %77 : vector<8x128xf32>
    %79 = math.tanh %72 : vector<8x128xf32>
    %80 = arith.mulf %78, %79 : vector<8x128xf32>
    %81 = arith.index_cast %c1_i32 : i32 to index
    %c0_31 = arith.constant 0 : index
    %c0_32 = arith.constant 0 : index
    %82 = vector.load %arg8[%81, %c0_31, %c0_32] : memref<7x8x128xf32, #tpu.memory_space<vmem>>, vector<1x8x128xf32>
    %83 = vector.shape_cast %82 : vector<1x8x128xf32> to vector<8x128xf32>
    %84 = vector.shape_cast %80 : vector<8x128xf32> to vector<1x8x128xf32>
    tpu.vector_store %arg8[%81, %c0_31, %c0_32], %84 {strides = array<i32>} : memref<7x8x128xf32, #tpu.memory_space<vmem>>, vector<1x8x128xf32>,
    %c2_i32 = arith.constant 2 : i32
    %c8_i32_33 = arith.constant 8 : i32
    %85 = arith.muli %c2_i32, %c8_i32_33 : i32
    %86 = tpu.assume_multiple %85, 8 : i32
    %87 = arith.index_cast %86 : i32 to index
    %c0_34 = arith.constant 0 : index
    %88 = vector.load %arg11[%87, %c0_34] : memref<56x512xf32, #tpu.memory_space<vmem>>, vector<8x512xf32>
    %c0_35 = arith.constant 0 : index
    %c0_36 = arith.constant 0 : index
    %89 = vector.load %arg4[%c0_35, %c0_36] : memref<128x512xf32, #tpu.memory_space<vmem>>, vector<128x512xf32>
    %cst_37 = arith.constant dense<0.000000e+00> : vector<8x512xf32>
    %90 = tpu.matmul %80, %89, %cst_37 {dimension_numbers = #tpu.dot_dimension_numbers<[1], [0], [0], [1], [0, 0, 1, 1], [], []>} : vector<8x128xf32>, vector<128x512xf32>, vector<8x512xf32> -> vector<8x512xf32>
    %91 = arith.addf %88, %90 : vector<8x512xf32>
    %92 = vector.extract_strided_slice %91 {offsets = [0, 0], sizes = [8, 128], strides = [1, 1]} : vector<8x512xf32> to vector<8x128xf32>
    %93 = arith.negf %92 : vector<8x128xf32>
    %94 = math.exp %93 : vector<8x128xf32>
    %cst_38 = arith.constant 1.000000e+00 : f32
    %95 = vector.broadcast %cst_38 : f32 to vector<8x128xf32>
    %96 = arith.addf %95, %94 : vector<8x128xf32>
    %97 = arith.divf %95, %96 : vector<8x128xf32>
    %98 = vector.extract_strided_slice %91 {offsets = [0, 128], sizes = [8, 128], strides = [1, 1]} : vector<8x512xf32> to vector<8x128xf32>
    %99 = arith.negf %98 : vector<8x128xf32>
    %100 = math.exp %99 : vector<8x128xf32>
    %cst_39 = arith.constant 1.000000e+00 : f32
    %101 = vector.broadcast %cst_39 : f32 to vector<8x128xf32>
    %102 = arith.addf %101, %100 : vector<8x128xf32>
    %103 = arith.divf %101, %102 : vector<8x128xf32>
    %104 = vector.extract_strided_slice %91 {offsets = [0, 384], sizes = [8, 128], strides = [1, 1]} : vector<8x512xf32> to vector<8x128xf32>
    %105 = math.tanh %104 : vector<8x128xf32>
    %106 = arith.mulf %103, %72 : vector<8x128xf32>
    %107 = arith.mulf %97, %105 : vector<8x128xf32>
    %108 = arith.addf %106, %107 : vector<8x128xf32>
    %109 = vector.extract_strided_slice %91 {offsets = [0, 256], sizes = [8, 128], strides = [1, 1]} : vector<8x512xf32> to vector<8x128xf32>
    %110 = arith.negf %109 : vector<8x128xf32>
    %111 = math.exp %110 : vector<8x128xf32>
    %cst_40 = arith.constant 1.000000e+00 : f32
    %112 = vector.broadcast %cst_40 : f32 to vector<8x128xf32>
    %113 = arith.addf %112, %111 : vector<8x128xf32>
    %114 = arith.divf %112, %113 : vector<8x128xf32>
    %115 = math.tanh %108 : vector<8x128xf32>
    %116 = arith.mulf %114, %115 : vector<8x128xf32>
    %117 = arith.index_cast %c2_i32 : i32 to index
    %c0_41 = arith.constant 0 : index
    %c0_42 = arith.constant 0 : index
    %118 = vector.load %arg8[%117, %c0_41, %c0_42] : memref<7x8x128xf32, #tpu.memory_space<vmem>>, vector<1x8x128xf32>
    %119 = vector.shape_cast %118 : vector<1x8x128xf32> to vector<8x128xf32>
    %120 = vector.shape_cast %116 : vector<8x128xf32> to vector<1x8x128xf32>
    tpu.vector_store %arg8[%117, %c0_41, %c0_42], %120 {strides = array<i32>} : memref<7x8x128xf32, #tpu.memory_space<vmem>>, vector<1x8x128xf32>,
    %c3_i32 = arith.constant 3 : i32
    %c8_i32_43 = arith.constant 8 : i32
    %121 = arith.muli %c3_i32, %c8_i32_43 : i32
    %122 = tpu.assume_multiple %121, 8 : i32
    %123 = arith.index_cast %122 : i32 to index
    %c0_44 = arith.constant 0 : index
    %124 = vector.load %arg11[%123, %c0_44] : memref<56x512xf32, #tpu.memory_space<vmem>>, vector<8x512xf32>
    %c0_45 = arith.constant 0 : index
    %c0_46 = arith.constant 0 : index
    %125 = vector.load %arg4[%c0_45, %c0_46] : memref<128x512xf32, #tpu.memory_space<vmem>>, vector<128x512xf32>
    %cst_47 = arith.constant dense<0.000000e+00> : vector<8x512xf32>
    %126 = tpu.matmul %116, %125, %cst_47 {dimension_numbers = #tpu.dot_dimension_numbers<[1], [0], [0], [1], [0, 0, 1, 1], [], []>} : vector<8x128xf32>, vector<128x512xf32>, vector<8x512xf32> -> vector<8x512xf32>
    %127 = arith.addf %124, %126 : vector<8x512xf32>
    %128 = vector.extract_strided_slice %127 {offsets = [0, 0], sizes = [8, 128], strides = [1, 1]} : vector<8x512xf32> to vector<8x128xf32>
    %129 = arith.negf %128 : vector<8x128xf32>
    %130 = math.exp %129 : vector<8x128xf32>
    %cst_48 = arith.constant 1.000000e+00 : f32
    %131 = vector.broadcast %cst_48 : f32 to vector<8x128xf32>
    %132 = arith.addf %131, %130 : vector<8x128xf32>
    %133 = arith.divf %131, %132 : vector<8x128xf32>
    %134 = vector.extract_strided_slice %127 {offsets = [0, 128], sizes = [8, 128], strides = [1, 1]} : vector<8x512xf32> to vector<8x128xf32>
    %135 = arith.negf %134 : vector<8x128xf32>
    %136 = math.exp %135 : vector<8x128xf32>
    %cst_49 = arith.constant 1.000000e+00 : f32
    %137 = vector.broadcast %cst_49 : f32 to vector<8x128xf32>
    %138 = arith.addf %137, %136 : vector<8x128xf32>
    %139 = arith.divf %137, %138 : vector<8x128xf32>
    %140 = vector.extract_strided_slice %127 {offsets = [0, 384], sizes = [8, 128], strides = [1, 1]} : vector<8x512xf32> to vector<8x128xf32>
    %141 = math.tanh %140 : vector<8x128xf32>
    %142 = arith.mulf %139, %108 : vector<8x128xf32>
    %143 = arith.mulf %133, %141 : vector<8x128xf32>
    %144 = arith.addf %142, %143 : vector<8x128xf32>
    %145 = vector.extract_strided_slice %127 {offsets = [0, 256], sizes = [8, 128], strides = [1, 1]} : vector<8x512xf32> to vector<8x128xf32>
    %146 = arith.negf %145 : vector<8x128xf32>
    %147 = math.exp %146 : vector<8x128xf32>
    %cst_50 = arith.constant 1.000000e+00 : f32
    %148 = vector.broadcast %cst_50 : f32 to vector<8x128xf32>
    %149 = arith.addf %148, %147 : vector<8x128xf32>
    %150 = arith.divf %148, %149 : vector<8x128xf32>
    %151 = math.tanh %144 : vector<8x128xf32>
    %152 = arith.mulf %150, %151 : vector<8x128xf32>
    %153 = arith.index_cast %c3_i32 : i32 to index
    %c0_51 = arith.constant 0 : index
    %c0_52 = arith.constant 0 : index
    %154 = vector.load %arg8[%153, %c0_51, %c0_52] : memref<7x8x128xf32, #tpu.memory_space<vmem>>, vector<1x8x128xf32>
    %155 = vector.shape_cast %154 : vector<1x8x128xf32> to vector<8x128xf32>
    %156 = vector.shape_cast %152 : vector<8x128xf32> to vector<1x8x128xf32>
    tpu.vector_store %arg8[%153, %c0_51, %c0_52], %156 {strides = array<i32>} : memref<7x8x128xf32, #tpu.memory_space<vmem>>, vector<1x8x128xf32>,
    %c4_i32 = arith.constant 4 : i32
    %c8_i32_53 = arith.constant 8 : i32
    %157 = arith.muli %c4_i32, %c8_i32_53 : i32
    %158 = tpu.assume_multiple %157, 8 : i32
    %159 = arith.index_cast %158 : i32 to index
    %c0_54 = arith.constant 0 : index
    %160 = vector.load %arg11[%159, %c0_54] : memref<56x512xf32, #tpu.memory_space<vmem>>, vector<8x512xf32>
    %c0_55 = arith.constant 0 : index
    %c0_56 = arith.constant 0 : index
    %161 = vector.load %arg4[%c0_55, %c0_56] : memref<128x512xf32, #tpu.memory_space<vmem>>, vector<128x512xf32>
    %cst_57 = arith.constant dense<0.000000e+00> : vector<8x512xf32>
    %162 = tpu.matmul %152, %161, %cst_57 {dimension_numbers = #tpu.dot_dimension_numbers<[1], [0], [0], [1], [0, 0, 1, 1], [], []>} : vector<8x128xf32>, vector<128x512xf32>, vector<8x512xf32> -> vector<8x512xf32>
    %163 = arith.addf %160, %162 : vector<8x512xf32>
    %164 = vector.extract_strided_slice %163 {offsets = [0, 0], sizes = [8, 128], strides = [1, 1]} : vector<8x512xf32> to vector<8x128xf32>
    %165 = arith.negf %164 : vector<8x128xf32>
    %166 = math.exp %165 : vector<8x128xf32>
    %cst_58 = arith.constant 1.000000e+00 : f32
    %167 = vector.broadcast %cst_58 : f32 to vector<8x128xf32>
    %168 = arith.addf %167, %166 : vector<8x128xf32>
    %169 = arith.divf %167, %168 : vector<8x128xf32>
    %170 = vector.extract_strided_slice %163 {offsets = [0, 128], sizes = [8, 128], strides = [1, 1]} : vector<8x512xf32> to vector<8x128xf32>
    %171 = arith.negf %170 : vector<8x128xf32>
    %172 = math.exp %171 : vector<8x128xf32>
    %cst_59 = arith.constant 1.000000e+00 : f32
    %173 = vector.broadcast %cst_59 : f32 to vector<8x128xf32>
    %174 = arith.addf %173, %172 : vector<8x128xf32>
    %175 = arith.divf %173, %174 : vector<8x128xf32>
    %176 = vector.extract_strided_slice %163 {offsets = [0, 384], sizes = [8, 128], strides = [1, 1]} : vector<8x512xf32> to vector<8x128xf32>
    %177 = math.tanh %176 : vector<8x128xf32>
    %178 = arith.mulf %175, %144 : vector<8x128xf32>
    %179 = arith.mulf %169, %177 : vector<8x128xf32>
    %180 = arith.addf %178, %179 : vector<8x128xf32>
    %181 = vector.extract_strided_slice %163 {offsets = [0, 256], sizes = [8, 128], strides = [1, 1]} : vector<8x512xf32> to vector<8x128xf32>
    %182 = arith.negf %181 : vector<8x128xf32>
    %183 = math.exp %182 : vector<8x128xf32>
    %cst_60 = arith.constant 1.000000e+00 : f32
    %184 = vector.broadcast %cst_60 : f32 to vector<8x128xf32>
    %185 = arith.addf %184, %183 : vector<8x128xf32>
    %186 = arith.divf %184, %185 : vector<8x128xf32>
    %187 = math.tanh %180 : vector<8x128xf32>
    %188 = arith.mulf %186, %187 : vector<8x128xf32>
    %189 = arith.index_cast %c4_i32 : i32 to index
    %c0_61 = arith.constant 0 : index
    %c0_62 = arith.constant 0 : index
    %190 = vector.load %arg8[%189, %c0_61, %c0_62] : memref<7x8x128xf32, #tpu.memory_space<vmem>>, vector<1x8x128xf32>
    %191 = vector.shape_cast %190 : vector<1x8x128xf32> to vector<8x128xf32>
    %192 = vector.shape_cast %188 : vector<8x128xf32> to vector<1x8x128xf32>
    tpu.vector_store %arg8[%189, %c0_61, %c0_62], %192 {strides = array<i32>} : memref<7x8x128xf32, #tpu.memory_space<vmem>>, vector<1x8x128xf32>,
    %c5_i32 = arith.constant 5 : i32
    %c8_i32_63 = arith.constant 8 : i32
    %193 = arith.muli %c5_i32, %c8_i32_63 : i32
    %194 = tpu.assume_multiple %193, 8 : i32
    %195 = arith.index_cast %194 : i32 to index
    %c0_64 = arith.constant 0 : index
    %196 = vector.load %arg11[%195, %c0_64] : memref<56x512xf32, #tpu.memory_space<vmem>>, vector<8x512xf32>
    %c0_65 = arith.constant 0 : index
    %c0_66 = arith.constant 0 : index
    %197 = vector.load %arg4[%c0_65, %c0_66] : memref<128x512xf32, #tpu.memory_space<vmem>>, vector<128x512xf32>
    %cst_67 = arith.constant dense<0.000000e+00> : vector<8x512xf32>
    %198 = tpu.matmul %188, %197, %cst_67 {dimension_numbers = #tpu.dot_dimension_numbers<[1], [0], [0], [1], [0, 0, 1, 1], [], []>} : vector<8x128xf32>, vector<128x512xf32>, vector<8x512xf32> -> vector<8x512xf32>
    %199 = arith.addf %196, %198 : vector<8x512xf32>
    %200 = vector.extract_strided_slice %199 {offsets = [0, 0], sizes = [8, 128], strides = [1, 1]} : vector<8x512xf32> to vector<8x128xf32>
    %201 = arith.negf %200 : vector<8x128xf32>
    %202 = math.exp %201 : vector<8x128xf32>
    %cst_68 = arith.constant 1.000000e+00 : f32
    %203 = vector.broadcast %cst_68 : f32 to vector<8x128xf32>
    %204 = arith.addf %203, %202 : vector<8x128xf32>
    %205 = arith.divf %203, %204 : vector<8x128xf32>
    %206 = vector.extract_strided_slice %199 {offsets = [0, 128], sizes = [8, 128], strides = [1, 1]} : vector<8x512xf32> to vector<8x128xf32>
    %207 = arith.negf %206 : vector<8x128xf32>
    %208 = math.exp %207 : vector<8x128xf32>
    %cst_69 = arith.constant 1.000000e+00 : f32
    %209 = vector.broadcast %cst_69 : f32 to vector<8x128xf32>
    %210 = arith.addf %209, %208 : vector<8x128xf32>
    %211 = arith.divf %209, %210 : vector<8x128xf32>
    %212 = vector.extract_strided_slice %199 {offsets = [0, 384], sizes = [8, 128], strides = [1, 1]} : vector<8x512xf32> to vector<8x128xf32>
    %213 = math.tanh %212 : vector<8x128xf32>
    %214 = arith.mulf %211, %180 : vector<8x128xf32>
    %215 = arith.mulf %205, %213 : vector<8x128xf32>
    %216 = arith.addf %214, %215 : vector<8x128xf32>
    %217 = vector.extract_strided_slice %199 {offsets = [0, 256], sizes = [8, 128], strides = [1, 1]} : vector<8x512xf32> to vector<8x128xf32>
    %218 = arith.negf %217 : vector<8x128xf32>
    %219 = math.exp %218 : vector<8x128xf32>
    %cst_70 = arith.constant 1.000000e+00 : f32
    %220 = vector.broadcast %cst_70 : f32 to vector<8x128xf32>
    %221 = arith.addf %220, %219 : vector<8x128xf32>
    %222 = arith.divf %220, %221 : vector<8x128xf32>
    %223 = math.tanh %216 : vector<8x128xf32>
    %224 = arith.mulf %222, %223 : vector<8x128xf32>
    %225 = arith.index_cast %c5_i32 : i32 to index
    %c0_71 = arith.constant 0 : index
    %c0_72 = arith.constant 0 : index
    %226 = vector.load %arg8[%225, %c0_71, %c0_72] : memref<7x8x128xf32, #tpu.memory_space<vmem>>, vector<1x8x128xf32>
    %227 = vector.shape_cast %226 : vector<1x8x128xf32> to vector<8x128xf32>
    %228 = vector.shape_cast %224 : vector<8x128xf32> to vector<1x8x128xf32>
    tpu.vector_store %arg8[%225, %c0_71, %c0_72], %228 {strides = array<i32>} : memref<7x8x128xf32, #tpu.memory_space<vmem>>, vector<1x8x128xf32>,
    %c6_i32 = arith.constant 6 : i32
    %c8_i32_73 = arith.constant 8 : i32
    %229 = arith.muli %c6_i32, %c8_i32_73 : i32
    %230 = tpu.assume_multiple %229, 8 : i32
    %231 = arith.index_cast %230 : i32 to index
    %c0_74 = arith.constant 0 : index
    %232 = vector.load %arg11[%231, %c0_74] : memref<56x512xf32, #tpu.memory_space<vmem>>, vector<8x512xf32>
    %c0_75 = arith.constant 0 : index
    %c0_76 = arith.constant 0 : index
    %233 = vector.load %arg4[%c0_75, %c0_76] : memref<128x512xf32, #tpu.memory_space<vmem>>, vector<128x512xf32>
    %cst_77 = arith.constant dense<0.000000e+00> : vector<8x512xf32>
    %234 = tpu.matmul %224, %233, %cst_77 {dimension_numbers = #tpu.dot_dimension_numbers<[1], [0], [0], [1], [0, 0, 1, 1], [], []>} : vector<8x128xf32>, vector<128x512xf32>, vector<8x512xf32> -> vector<8x512xf32>
    %235 = arith.addf %232, %234 : vector<8x512xf32>
    %236 = vector.extract_strided_slice %235 {offsets = [0, 0], sizes = [8, 128], strides = [1, 1]} : vector<8x512xf32> to vector<8x128xf32>
    %237 = arith.negf %236 : vector<8x128xf32>
    %238 = math.exp %237 : vector<8x128xf32>
    %cst_78 = arith.constant 1.000000e+00 : f32
    %239 = vector.broadcast %cst_78 : f32 to vector<8x128xf32>
    %240 = arith.addf %239, %238 : vector<8x128xf32>
    %241 = arith.divf %239, %240 : vector<8x128xf32>
    %242 = vector.extract_strided_slice %235 {offsets = [0, 128], sizes = [8, 128], strides = [1, 1]} : vector<8x512xf32> to vector<8x128xf32>
    %243 = arith.negf %242 : vector<8x128xf32>
    %244 = math.exp %243 : vector<8x128xf32>
    %cst_79 = arith.constant 1.000000e+00 : f32
    %245 = vector.broadcast %cst_79 : f32 to vector<8x128xf32>
    %246 = arith.addf %245, %244 : vector<8x128xf32>
    %247 = arith.divf %245, %246 : vector<8x128xf32>
    %248 = vector.extract_strided_slice %235 {offsets = [0, 384], sizes = [8, 128], strides = [1, 1]} : vector<8x512xf32> to vector<8x128xf32>
    %249 = math.tanh %248 : vector<8x128xf32>
    %250 = arith.mulf %247, %216 : vector<8x128xf32>
    %251 = arith.mulf %241, %249 : vector<8x128xf32>
    %252 = arith.addf %250, %251 : vector<8x128xf32>
    %253 = vector.extract_strided_slice %235 {offsets = [0, 256], sizes = [8, 128], strides = [1, 1]} : vector<8x512xf32> to vector<8x128xf32>
    %254 = arith.negf %253 : vector<8x128xf32>
    %255 = math.exp %254 : vector<8x128xf32>
    %cst_80 = arith.constant 1.000000e+00 : f32
    %256 = vector.broadcast %cst_80 : f32 to vector<8x128xf32>
    %257 = arith.addf %256, %255 : vector<8x128xf32>
    %258 = arith.divf %256, %257 : vector<8x128xf32>
    %259 = math.tanh %252 : vector<8x128xf32>
    %260 = arith.mulf %258, %259 : vector<8x128xf32>
    %261 = arith.index_cast %c6_i32 : i32 to index
    %c0_81 = arith.constant 0 : index
    %c0_82 = arith.constant 0 : index
    %262 = vector.load %arg8[%261, %c0_81, %c0_82] : memref<7x8x128xf32, #tpu.memory_space<vmem>>, vector<1x8x128xf32>
    %263 = vector.shape_cast %262 : vector<1x8x128xf32> to vector<8x128xf32>
    %264 = vector.shape_cast %260 : vector<8x128xf32> to vector<1x8x128xf32>
    tpu.vector_store %arg8[%261, %c0_81, %c0_82], %264 {strides = array<i32>} : memref<7x8x128xf32, #tpu.memory_space<vmem>>, vector<1x8x128xf32>,
    %c7_i32 = arith.constant 7 : i32
    %c0_83 = arith.constant 0 : index
    %c0_84 = arith.constant 0 : index
    %265 = vector.load %arg9[%c0_83, %c0_84] : memref<8x128xf32, #tpu.memory_space<vmem>>, vector<8x128xf32>
    tpu.vector_store %arg9[%c0_83, %c0_84], %260 {strides = array<i32>} : memref<8x128xf32, #tpu.memory_space<vmem>>, vector<8x128xf32>,
    %c0_85 = arith.constant 0 : index
    %c0_86 = arith.constant 0 : index
    %266 = vector.load %arg10[%c0_85, %c0_86] : memref<8x128xf32, #tpu.memory_space<vmem>>, vector<8x128xf32>
    tpu.vector_store %arg10[%c0_85, %c0_86], %252 {strides = array<i32>} : memref<8x128xf32, #tpu.memory_space<vmem>>, vector<8x128xf32>,
    return
  }
  func.func @transform_0(%arg0: i32, %arg1: i32) -> (i32, i32, i32) {
    %c0_i32 = arith.constant 0 : i32
    %c0_i32_0 = arith.constant 0 : i32
    return %arg1, %arg0, %c0_i32 : i32, i32, i32
  }
  func.func @transform_1(%arg0: i32, %arg1: i32) -> (i32, i32) {
    %c0_i32 = arith.constant 0 : i32
    %c0_i32_0 = arith.constant 0 : i32
    %c0_i32_1 = arith.constant 0 : i32
    return %c0_i32, %c0_i32_0 : i32, i32
  }
  func.func @transform_2(%arg0: i32, %arg1: i32) -> (i32, i32) {
    %c0_i32 = arith.constant 0 : i32
    %c0_i32_0 = arith.constant 0 : i32
    %c0_i32_1 = arith.constant 0 : i32
    return %c0_i32, %c0_i32_0 : i32, i32
  }
  func.func @transform_3(%arg0: i32, %arg1: i32) -> (i32, i32) {
    %c0_i32 = arith.constant 0 : i32
    %c0_i32_0 = arith.constant 0 : i32
    %c0_i32_1 = arith.constant 0 : i32
    return %c0_i32, %c0_i32_0 : i32, i32
  }
  func.func @transform_4(%arg0: i32, %arg1: i32) -> (i32, i32) {
    %c0_i32 = arith.constant 0 : i32
    %c0_i32_0 = arith.constant 0 : i32
    return %arg0, %c0_i32 : i32, i32
  }
  func.func @transform_5(%arg0: i32, %arg1: i32) -> (i32, i32) {
    %c0_i32 = arith.constant 0 : i32
    %c0_i32_0 = arith.constant 0 : i32
    return %arg0, %c0_i32 : i32, i32
  }
  func.func @transform_6(%arg0: i32, %arg1: i32) -> (i32, i32, i32) {
    %c0_i32 = arith.constant 0 : i32
    %c0_i32_0 = arith.constant 0 : i32
    return %arg1, %arg0, %c0_i32 : i32, i32, i32
  }
  func.func @transform_7(%arg0: i32, %arg1: i32) -> (i32, i32) {
    %c0_i32 = arith.constant 0 : i32
    %c0_i32_0 = arith.constant 0 : i32
    return %arg0, %c0_i32 : i32, i32
  }
  func.func @transform_8(%arg0: i32, %arg1: i32) -> (i32, i32) {
    %c0_i32 = arith.constant 0 : i32
    %c0_i32_0 = arith.constant 0 : i32
    return %arg0, %c0_i32 : i32, i32
  }
}

</mosaic_0001>

<llo_original>
// kernel: tpu_custom_call.1
$region0: #{tpu_custom_call.1}
  #allocation0 [shape = 'u32[]', space=smem, size = 0x4, offset = 0x4, fixed_abs, tag = 'smem constant byte address 0x4 - core index']
  #allocation1 [shape = 'u32[144,128]{1,0:T(1,128)}', space=vmem, size = 0x12000, scoped, tag = 'internal scratch']
  #allocation2 [shape = 'f32[56,512]{1,0:T(8,128)}', space=vmem, size = 0x1c000, scoped, tag = 'scratch operand']
  %s0 = inlined_call_operand.hbm [shape: f32[7,8,128], index: 0, kind: input, shape index: {}]
  %s1 = inlined_call_operand.hbm [shape: f32[128,512], index: 1, kind: input, shape index: {}]
  %s2 = inlined_call_operand.hbm [shape: f32[128,512], index: 2, kind: input, shape index: {}]
  %s3 = inlined_call_operand.hbm [shape: f32[1,512], index: 3, kind: input, shape index: {}]
  %s4 = inlined_call_operand.vmem [shape: f32[8,128], index: 4, kind: input, shape index: {}]
  %s5 = inlined_call_operand.vmem [shape: f32[8,128], index: 5, kind: input, shape index: {}]
  %s6 = inlined_call_operand.hbm [shape: f32[7,8,128], index: 6, kind: output, shape index: {0}]
  %s7 = inlined_call_operand.hbm [shape: f32[8,128], index: 7, kind: output, shape index: {1}]
  %s8 = inlined_call_operand.hbm [shape: f32[8,128], index: 8, kind: output, shape index: {2}]
  %9 = xla_tuple %s6, %s7, %s8
  %s10 = sld [smem:[#allocation0]]
  $region70: #{tpu_custom_call.1} parent=0
    _
  %s12 = ssub.s32 1, %s10
  %s13 = scalar_select 0, %s12, %s10
  $region1: #{tpu_custom_call.1} parent=0
    #allocation3 [shape = 'u8[28672]{0}', space=vmem, size = 0x7000, scoped, tag = 'input window, operand 0, single buffered']
    #allocation4 [shape = 's32[1]{0}', space=sflag, size = 0x4, scoped, tag = 'scoped memory for tpu_custom_call.1']
    #allocation5 [shape = 's32[1]{0}', space=sflag, size = 0x4, scoped, tag = 'scoped memory for tpu_custom_call.1']
    #allocation6 [shape = 'u8[262144]{0}', space=vmem, size = 0x40000, scoped, tag = 'input window, operand 1, single buffered']
    #allocation7 [shape = 's32[1]{0}', space=sflag, size = 0x4, scoped, tag = 'scoped memory for tpu_custom_call.1']
    #allocation8 [shape = 'u8[262144]{0}', space=vmem, size = 0x40000, scoped, tag = 'input window, operand 2, single buffered']
    #allocation9 [shape = 'u8[2048]{0}', space=vmem, size = 0x800, scoped, tag = 'input window, operand 3, single buffered']
    #allocation10 [shape = 's32[1]{0}', space=sflag, size = 0x4, scoped, tag = 'scoped memory for tpu_custom_call.1']
    #allocation11 [shape = 'u8[28672]{0}', space=vmem, size = 0x7000, scoped, tag = 'output window, operand 0, single buffered']
    #allocation12 [shape = 'u8[4096]{0}', space=vmem, size = 0x1000, scoped, tag = 'output window, operand 1, single buffered']
    #allocation13 [shape = 's32[1]{0}', space=sflag, size = 0x4, scoped, tag = 'scoped memory for tpu_custom_call.1']
    #allocation14 [shape = 'u8[4096]{0}', space=vmem, size = 0x1000, scoped, tag = 'output window, operand 2, single buffered']
    %14 = vsyncpa [#allocation4], 0
    %15 = vsyncpa [#allocation7], 0
    %16 = vsyncpa [#allocation10], 0
    %17 = vsyncpa [#allocation5], 0
    %18 = vsyncpa [#allocation13], 0
    // Predicated region
    $region2: #{tpu_custom_call.1} parent=1 // pred_check
      _
    $region3: #{tpu_custom_call.1} parent=1 // pred_check_branch
      %20 = sbr.rel (0) target = $region5
    $region4: #{tpu_custom_call.1} parent=1 // pred_region
      %s22 = ssub.s32 896, 896
      %23 = vsyncadd [#allocation4], %s22
      %s24 = sshll.u32 [#allocation3], 4
      %s25 = int_to_ptr.vmem [resolvable:$true] %s24
      %30 = dma.hbm_to_vmem [thread:$0]  %s0, 896, %s25, [#allocation4], 128, 128, 8
    $region5: #{tpu_custom_call.1} parent=1 // pred_fallthru
      _
    // Predicated region
    $region6: #{tpu_custom_call.1} parent=1 // pred_check
      _
    $region7: #{tpu_custom_call.1} parent=1 // pred_check_branch
      %32 = sbr.rel (0) target = $region9
    $region8: #{tpu_custom_call.1} parent=1 // pred_region
      %s34 = ssub.s32 8192, 8192
      %35 = vsyncadd [#allocation7], %s34
      %s36 = sshll.u32 [#allocation6], 4
      %s37 = int_to_ptr.vmem [resolvable:$true] %s36
      %42 = dma.hbm_to_vmem [thread:$0]  %s1, 8192, %s37, [#allocation7], 512, 512, 32
    $region9: #{tpu_custom_call.1} parent=1 // pred_fallthru
      _
    // Predicated region
    $region10: #{tpu_custom_call.1} parent=1 // pred_check
      _
    $region11: #{tpu_custom_call.1} parent=1 // pred_check_branch
      %44 = sbr.rel (0) target = $region13
    $region12: #{tpu_custom_call.1} parent=1 // pred_region
      %s46 = ssub.s32 8192, 8192
      %47 = vsyncadd [#allocation7], %s46
      %s48 = sshll.u32 [#allocation8], 4
      %s49 = int_to_ptr.vmem [resolvable:$true] %s48
      %54 = dma.hbm_to_vmem [thread:$0]  %s2, 8192, %s49, [#allocation7], 512, 512, 32
    $region13: #{tpu_custom_call.1} parent=1 // pred_fallthru
      _
    // Predicated region
    $region14: #{tpu_custom_call.1} parent=1 // pred_check
      _
    $region15: #{tpu_custom_call.1} parent=1 // pred_check_branch
      %56 = sbr.rel (0) target = $region17
    $region16: #{tpu_custom_call.1} parent=1 // pred_region
      %s58 = ssub.s32 64, 64
      %59 = vsyncadd [#allocation10], %s58
      %s61 = sshll.u32 [#allocation9], 4
      %s62 = int_to_ptr.vmem [resolvable:$true] %s61
      %64 = dma.hbm_to_vmem [thread:$0]  %s3, 64, %s62, [#allocation10]
    $region17: #{tpu_custom_call.1} parent=1 // pred_fallthru
      _
    // Predicated region
    $region18: #{tpu_custom_call.1} parent=1 // pred_check
      _
    $region19: #{tpu_custom_call.1} parent=1 // pred_check_branch
      %66 = sbr.rel (0) target = $region21
    $region20: #{tpu_custom_call.1} parent=1 // pred_region
      _
    $region21: #{tpu_custom_call.1} parent=1 // pred_fallthru
      _
    // Predicated region
    $region22: #{tpu_custom_call.1} parent=1 // pred_check
      _
    $region23: #{tpu_custom_call.1} parent=1 // pred_check_branch
      %68 = sbr.rel (0) target = $region25
    $region24: #{tpu_custom_call.1} parent=1 // pred_region
      _
    $region25: #{tpu_custom_call.1} parent=1 // pred_fallthru
      _
    // Predicated region
    $region26: #{tpu_custom_call.1} parent=1 // pred_check
      _
    $region27: #{tpu_custom_call.1} parent=1 // pred_check_branch
      %70 = sbr.rel (0) target = $region29
    $region28: #{tpu_custom_call.1} parent=1 // pred_region
      %71 = dma.done [#allocation4], 896
    $region29: #{tpu_custom_call.1} parent=1 // pred_fallthru
      _
    // Predicated region
    $region30: #{tpu_custom_call.1} parent=1 // pred_check
      _
    $region31: #{tpu_custom_call.1} parent=1 // pred_check_branch
      %73 = sbr.rel (0) target = $region33
    $region32: #{tpu_custom_call.1} parent=1 // pred_region
      %74 = dma.done [#allocation7], 8192
    $region33: #{tpu_custom_call.1} parent=1 // pred_fallthru
      _
    // Predicated region
    $region34: #{tpu_custom_call.1} parent=1 // pred_check
      _
    $region35: #{tpu_custom_call.1} parent=1 // pred_check_branch
      %76 = sbr.rel (0) target = $region37
    $region36: #{tpu_custom_call.1} parent=1 // pred_region
      %77 = dma.done [#allocation7], 8192
    $region37: #{tpu_custom_call.1} parent=1 // pred_fallthru
      _
    // Predicated region
    $region38: #{tpu_custom_call.1} parent=1 // pred_check
      _
    $region39: #{tpu_custom_call.1} parent=1 // pred_check_branch
      %79 = sbr.rel (0) target = $region41
    $region40: #{tpu_custom_call.1} parent=1 // pred_region
      %80 = dma.done [#allocation10], 64
    $region41: #{tpu_custom_call.1} parent=1 // pred_fallthru
      _
    %p81 = scmp.eq.s32.totalorder 0, 0
    // Predicated region
    $region42: #{tpu_custom_call.1} parent=1 // pred_check
      %p82 = pneg %p81
    $region43: #{tpu_custom_call.1} parent=1 // pred_check_branch
      %84 = sbr.rel (%p82) target = $region45
    $region44: #{tpu_custom_call.1} parent=1 // pred_region
      %v85 = vld [vmem:[%s4] sm:$0xff]
      %86 = vst [vmem:[#allocation12] sm:$0xff] %v85
      %v87 = vld [vmem:[%s5] sm:$0xff]
      %88 = vst [vmem:[#allocation14] sm:$0xff] %v87
    $region45: #{tpu_custom_call.1} parent=1 // pred_fallthru
      _
    %v89 = vld [vmem:[#allocation3] sm:$0xff]
    %v90 = vld [vmem:[#allocation3 + $0x8] sm:$0xff]
    %v91 = vld [vmem:[#allocation3 + $0x10] sm:$0xff]
    %v92 = vld [vmem:[#allocation3 + $0x18] sm:$0xff]
    %v93 = vld [vmem:[#allocation3 + $0x20] sm:$0xff]
    %v94 = vld [vmem:[#allocation3 + $0x28] sm:$0xff]
    %v95 = vld [vmem:[#allocation3 + $0x30] sm:$0xff]
    %v96 = vld [vmem:[#allocation6] sm:$0xff]
    %v97 = vld [vmem:[#allocation6 + $0x8] sm:$0xff]
    %v98 = vld [vmem:[#allocation6 + $0x10] sm:$0xff]
    %v99 = vld [vmem:[#allocation6 + $0x18] sm:$0xff]
    %v100 = vld [vmem:[#allocation6 + $0x20] sm:$0xff]
    %v101 = vld [vmem:[#allocation6 + $0x28] sm:$0xff]
    %v102 = vld [vmem:[#allocation6 + $0x30] sm:$0xff]
    %v103 = vld [vmem:[#allocation6 + $0x38] sm:$0xff]
    %v104 = vld [vmem:[#allocation6 + $0x40] sm:$0xff]
    %v105 = vld [vmem:[#allocation6 + $0x48] sm:$0xff]
    %v106 = vld [vmem:[#allocation6 + $0x50] sm:$0xff]
    %v107 = vld [vmem:[#allocation6 + $0x58] sm:$0xff]
    %v108 = vld [vmem:[#allocation6 + $0x60] sm:$0xff]
    %v109 = vld [vmem:[#allocation6 + $0x68] sm:$0xff]
    %v110 = vld [vmem:[#allocation6 + $0x70] sm:$0xff]
    %v111 = vld [vmem:[#allocation6 + $0x78] sm:$0xff]
    %v112 = vld [vmem:[#allocation6 + $0x80] sm:$0xff]
    %v113 = vld [vmem:[#allocation6 + $0x88] sm:$0xff]
    %v114 = vld [vmem:[#allocation6 + $0x90] sm:$0xff]
    %v115 = vld [vmem:[#allocation6 + $0x98] sm:$0xff]
    %v116 = vld [vmem:[#allocation6 + $0xa0] sm:$0xff]
    %v117 = vld [vmem:[#allocation6 + $0xa8] sm:$0xff]
    %v118 = vld [vmem:[#allocation6 + $0xb0] sm:$0xff]
    %v119 = vld [vmem:[#allocation6 + $0xb8] sm:$0xff]
    %v120 = vld [vmem:[#allocation6 + $0xc0] sm:$0xff]
    %v121 = vld [vmem:[#allocation6 + $0xc8] sm:$0xff]
    %v122 = vld [vmem:[#allocation6 + $0xd0] sm:$0xff]
    %v123 = vld [vmem:[#allocation6 + $0xd8] sm:$0xff]
    %v124 = vld [vmem:[#allocation6 + $0xe0] sm:$0xff]
    %v125 = vld [vmem:[#allocation6 + $0xe8] sm:$0xff]
    %v126 = vld [vmem:[#allocation6 + $0xf0] sm:$0xff]
    %v127 = vld [vmem:[#allocation6 + $0xf8] sm:$0xff]
    %v128 = vld [vmem:[#allocation6 + $0x100] sm:$0xff]
    %v129 = vld [vmem:[#allocation6 + $0x108] sm:$0xff]
    %v130 = vld [vmem:[#allocation6 + $0x110] sm:$0xff]
    %v131 = vld [vmem:[#allocation6 + $0x118] sm:$0xff]
    %v132 = vld [vmem:[#allocation6 + $0x120] sm:$0xff]
    %v133 = vld [vmem:[#allocation6 + $0x128] sm:$0xff]
    %v134 = vld [vmem:[#allocation6 + $0x130] sm:$0xff]
    %v135 = vld [vmem:[#allocation6 + $0x138] sm:$0xff]
    %v136 = vld [vmem:[#allocation6 + $0x140] sm:$0xff]
    %v137 = vld [vmem:[#allocation6 + $0x148] sm:$0xff]
    %v138 = vld [vmem:[#allocation6 + $0x150] sm:$0xff]
    %v139 = vld [vmem:[#allocation6 + $0x158] sm:$0xff]
    %v140 = vld [vmem:[#allocation6 + $0x160] sm:$0xff]
    %v141 = vld [vmem:[#allocation6 + $0x168] sm:$0xff]
    %v142 = vld [vmem:[#allocation6 + $0x170] sm:$0xff]
    %v143 = vld [vmem:[#allocation6 + $0x178] sm:$0xff]
    %v144 = vld [vmem:[#allocation6 + $0x180] sm:$0xff]
    %v145 = vld [vmem:[#allocation6 + $0x188] sm:$0xff]
    %v146 = vld [vmem:[#allocation6 + $0x190] sm:$0xff]
    %v147 = vld [vmem:[#allocation6 + $0x198] sm:$0xff]
    %v148 = vld [vmem:[#allocation6 + $0x1a0] sm:$0xff]
    %v149 = vld [vmem:[#allocation6 + $0x1a8] sm:$0xff]
    %v150 = vld [vmem:[#allocation6 + $0x1b0] sm:$0xff]
    %v151 = vld [vmem:[#allocation6 + $0x1b8] sm:$0xff]
    %v152 = vld [vmem:[#allocation6 + $0x1c0] sm:$0xff]
    %v153 = vld [vmem:[#allocation6 + $0x1c8] sm:$0xff]
    %v154 = vld [vmem:[#allocation6 + $0x1d0] sm:$0xff]
    %v155 = vld [vmem:[#allocation6 + $0x1d8] sm:$0xff]
    %v156 = vld [vmem:[#allocation6 + $0x1e0] sm:$0xff]
    %v157 = vld [vmem:[#allocation6 + $0x1e8] sm:$0xff]
    %v158 = vld [vmem:[#allocation6 + $0x1f0] sm:$0xff]
    %v159 = vld [vmem:[#allocation6 + $0x1f8] sm:$0xff]
    %v160 = vld [vmem:[#allocation9] sm:$0xf]
    %v162 = vlaneseq
    %v163 = vshrl.u32 %v162, 7
    %v164 = vsub.s32 0, %v163
    %v165 = vrot.slane %v160, %v164
    %v166 = vlaneseq
    %v167 = vshrl.u32 %v166, 7
    %v168 = vsub.s32 1, %v167
    %v169 = vrot.slane %v160, %v168
    %v170 = vlaneseq
    %v171 = vshrl.u32 %v170, 7
    %v172 = vsub.s32 2, %v171
    %v173 = vrot.slane %v160, %v172
    %v174 = vlaneseq
    %v175 = vshrl.u32 %v174, 7
    %v176 = vsub.s32 3, %v175
    %v177 = vrot.slane %v160, %v176
    %182 = vmatprep.subr.mxu0 %v97
    %183 = vmatpush1.msra.mxu0 %v96
    %184 = vmatprep.subr.mxu0 %v101
    %185 = vmatpush1.msra.mxu0 %v100
    %186 = vmatprep.subr.mxu0 %v105
    %187 = vmatpush1.msra.mxu0 %v104
    %188 = vmatprep.subr.mxu0 %v109
    %189 = vmatpush1.msra.mxu0 %v108
    %190 = vmatprep.subr.mxu0 %v113
    %191 = vmatpush1.msra.mxu0 %v112
    %192 = vmatprep.subr.mxu0 %v117
    %193 = vmatpush1.msra.mxu0 %v116
    %194 = vmatprep.subr.mxu0 %v121
    %195 = vmatpush1.msra.mxu0 %v120
    %196 = vmatprep.subr.mxu0 %v125
    %197 = vmatpush1.msra.mxu0 %v124
    %198 = vmatprep.subr.mxu0 %v129
    %199 = vmatpush1.msra.mxu0 %v128
    %200 = vmatprep.subr.mxu0 %v133
    %201 = vmatpush1.msra.mxu0 %v132
    %202 = vmatprep.subr.mxu0 %v137
    %203 = vmatpush1.msra.mxu0 %v136
    %204 = vmatprep.subr.mxu0 %v141
    %205 = vmatpush1.msra.mxu0 %v140
    %206 = vmatprep.subr.mxu0 %v145
    %207 = vmatpush1.msra.mxu0 %v144
    %208 = vmatprep.subr.mxu0 %v149
    %209 = vmatpush1.msra.mxu0 %v148
    %210 = vmatprep.subr.mxu0 %v153
    %211 = vmatpush1.msra.mxu0 %v152
    %212 = vmatprep.subr.mxu0 %v157
    %213 = vmatpush1.msra.mxu0 %v156
    %214 = vmatprep.subr.mxu0 0.0
    %215 = vmatpush1.msra.mxu0 0.0
    %216 = vmatprep.subr.mxu0 0.0
    %217 = vmatpush1.msra.mxu0 0.0
    %218 = vmatprep.subr.mxu0 0.0
    %219 = vmatpush1.msra.mxu0 0.0
    %220 = vmatprep.subr.mxu0 0.0
    %221 = vmatpush1.msra.mxu0 0.0
    %222 = vmatprep.subr.mxu0 0.0
    %223 = vmatpush1.msra.mxu0 0.0
    %224 = vmatprep.subr.mxu0 0.0
    %225 = vmatpush1.msra.mxu0 0.0
    %226 = vmatprep.subr.mxu0 0.0
    %227 = vmatpush1.msra.mxu0 0.0
    %228 = vmatprep.subr.mxu0 0.0
    %229 = vmatpush1.msra.mxu0 0.0
    %230 = vmatprep.subr.mxu0 0.0
    %231 = vmatpush1.msra.mxu0 0.0
    %232 = vmatprep.subr.mxu0 0.0
    %233 = vmatpush1.msra.mxu0 0.0
    %234 = vmatprep.subr.mxu0 0.0
    %235 = vmatpush1.msra.mxu0 0.0
    %236 = vmatprep.subr.mxu0 0.0
    %237 = vmatpush1.msra.mxu0 0.0
    %238 = vmatprep.subr.mxu0 0.0
    %239 = vmatpush1.msra.mxu0 0.0
    %240 = vmatprep.subr.mxu0 0.0
    %241 = vmatpush1.msra.mxu0 0.0
    %242 = vmatprep.subr.mxu0 0.0
    %243 = vmatpush1.msra.mxu0 0.0
    %244 = vmatprep.subr.mxu0 0.0
    %245 = vmatpush1.msra.mxu0 0.0
    %246 = vmatprep.mubr.f32.mxu0 0.0
    %247 = vmatmul.mubr.f32.gmra.mrb[0].mxu0 %v89
    %v248 = vpop.f32.mrb[0].mxu0
    %v249 = vadd.f32 %v165, %v248
    %v250 = vpop.f32.mrb[0].mxu0
    %v251 = vadd.f32 %v169, %v250
    %252 = vmatprep.mubr.f32.mxu0 0.0
    %253 = vmatmul.mubr.f32.gmra.mrb[0].mxu0 %v90
    %v254 = vpop.f32.mrb[0].mxu0
    %v255 = vadd.f32 %v165, %v254
    %v256 = vpop.f32.mrb[0].mxu0
    %v257 = vadd.f32 %v169, %v256
    %258 = vmatprep.mubr.f32.mxu0 0.0
    %259 = vmatmul.mubr.f32.gmra.mrb[0].mxu0 %v91
    %v260 = vpop.f32.mrb[0].mxu0
    %v261 = vadd.f32 %v165, %v260
    %v262 = vpop.f32.mrb[0].mxu0
    %v263 = vadd.f32 %v169, %v262
    %264 = vmatprep.mubr.f32.mxu0 0.0
    %265 = vmatmul.mubr.f32.gmra.mrb[0].mxu0 %v92
    %v266 = vpop.f32.mrb[0].mxu0
    %v267 = vadd.f32 %v165, %v266
    %v268 = vpop.f32.mrb[0].mxu0
    %v269 = vadd.f32 %v169, %v268
    %270 = vmatprep.mubr.f32.mxu0 0.0
    %271 = vmatmul.mubr.f32.gmra.mrb[0].mxu0 %v93
    %v272 = vpop.f32.mrb[0].mxu0
    %v273 = vadd.f32 %v165, %v272
    %v274 = vpop.f32.mrb[0].mxu0
    %v275 = vadd.f32 %v169, %v274
    %276 = vmatprep.mubr.f32.mxu0 0.0
    %277 = vmatmul.mubr.f32.gmra.mrb[0].mxu0 %v94
    %v278 = vpop.f32.mrb[0].mxu0
    %v279 = vadd.f32 %v165, %v278
    %v280 = vpop.f32.mrb[0].mxu0
    %v281 = vadd.f32 %v169, %v280
    %282 = vmatprep.mubr.f32.mxu0 0.0
    %283 = vmatmul.mubr.f32.gmra.mrb[0].mxu0 %v95
    %v284 = vpop.f32.mrb[0].mxu0
    %v285 = vadd.f32 %v165, %v284
    %v286 = vpop.f32.mrb[0].mxu0
    %v287 = vadd.f32 %v169, %v286
    %288 = vdwg.mxu0
    %289 = vmatprep.subr.mxu0 %v99
    %290 = vmatpush1.msra.mxu0 %v98
    %291 = vmatprep.subr.mxu0 %v103
    %292 = vmatpush1.msra.mxu0 %v102
    %293 = vmatprep.subr.mxu0 %v107
    %294 = vmatpush1.msra.mxu0 %v106
    %295 = vmatprep.subr.mxu0 %v111
    %296 = vmatpush1.msra.mxu0 %v110
    %297 = vmatprep.subr.mxu0 %v115
    %298 = vmatpush1.msra.mxu0 %v114
    %299 = vmatprep.subr.mxu0 %v119
    %300 = vmatpush1.msra.mxu0 %v118
    %301 = vmatprep.subr.mxu0 %v123
    %302 = vmatpush1.msra.mxu0 %v122
    %303 = vmatprep.subr.mxu0 %v127
    %304 = vmatpush1.msra.mxu0 %v126
    %305 = vmatprep.subr.mxu0 %v131
    %306 = vmatpush1.msra.mxu0 %v130
    %307 = vmatprep.subr.mxu0 %v135
    %308 = vmatpush1.msra.mxu0 %v134
    %309 = vmatprep.subr.mxu0 %v139
    %310 = vmatpush1.msra.mxu0 %v138
    %311 = vmatprep.subr.mxu0 %v143
    %312 = vmatpush1.msra.mxu0 %v142
    %313 = vmatprep.subr.mxu0 %v147
    %314 = vmatpush1.msra.mxu0 %v146
    %315 = vmatprep.subr.mxu0 %v151
    %316 = vmatpush1.msra.mxu0 %v150
    %317 = vmatprep.subr.mxu0 %v155
    %318 = vmatpush1.msra.mxu0 %v154
    %319 = vmatprep.subr.mxu0 %v159
    %320 = vmatpush1.msra.mxu0 %v158
    %321 = vmatprep.subr.mxu0 0.0
    %322 = vmatpush1.msra.mxu0 0.0
    %323 = vmatprep.subr.mxu0 0.0
    %324 = vmatpush1.msra.mxu0 0.0
    %325 = vmatprep.subr.mxu0 0.0
    %326 = vmatpush1.msra.mxu0 0.0
    %327 = vmatprep.subr.mxu0 0.0
    %328 = vmatpush1.msra.mxu0 0.0
    %329 = vmatprep.subr.mxu0 0.0
    %330 = vmatpush1.msra.mxu0 0.0
    %331 = vmatprep.subr.mxu0 0.0
    %332 = vmatpush1.msra.mxu0 0.0
    %333 = vmatprep.subr.mxu0 0.0
    %334 = vmatpush1.msra.mxu0 0.0
    %335 = vmatprep.subr.mxu0 0.0
    %336 = vmatpush1.msra.mxu0 0.0
    %337 = vmatprep.subr.mxu0 0.0
    %338 = vmatpush1.msra.mxu0 0.0
    %339 = vmatprep.subr.mxu0 0.0
    %340 = vmatpush1.msra.mxu0 0.0
    %341 = vmatprep.subr.mxu0 0.0
    %342 = vmatpush1.msra.mxu0 0.0
    %343 = vmatprep.subr.mxu0 0.0
    %344 = vmatpush1.msra.mxu0 0.0
    %345 = vmatprep.subr.mxu0 0.0
    %346 = vmatpush1.msra.mxu0 0.0
    %347 = vmatprep.subr.mxu0 0.0
    %348 = vmatpush1.msra.mxu0 0.0
    %349 = vmatprep.subr.mxu0 0.0
    %350 = vmatpush1.msra.mxu0 0.0
    %351 = vmatprep.subr.mxu0 0.0
    %352 = vmatpush1.msra.mxu0 0.0
    %353 = vmatprep.mubr.f32.mxu0 0.0
    %354 = vmatmul.mubr.f32.gmra.mrb[0].mxu0 %v89
    %v355 = vpop.f32.mrb[0].mxu0
    %v356 = vadd.f32 %v173, %v355
    %v357 = vpop.f32.mrb[0].mxu0
    %v358 = vadd.f32 %v177, %v357
    %359 = vmatprep.mubr.f32.mxu0 0.0
    %360 = vmatmul.mubr.f32.gmra.mrb[0].mxu0 %v90
    %v361 = vpop.f32.mrb[0].mxu0
    %v362 = vadd.f32 %v173, %v361
    %v363 = vpop.f32.mrb[0].mxu0
    %v364 = vadd.f32 %v177, %v363
    %365 = vmatprep.mubr.f32.mxu0 0.0
    %366 = vmatmul.mubr.f32.gmra.mrb[0].mxu0 %v91
    %v367 = vpop.f32.mrb[0].mxu0
    %v368 = vadd.f32 %v173, %v367
    %v369 = vpop.f32.mrb[0].mxu0
    %v370 = vadd.f32 %v177, %v369
    %371 = vmatprep.mubr.f32.mxu0 0.0
    %372 = vmatmul.mubr.f32.gmra.mrb[0].mxu0 %v92
    %v373 = vpop.f32.mrb[0].mxu0
    %v374 = vadd.f32 %v173, %v373
    %v375 = vpop.f32.mrb[0].mxu0
    %v376 = vadd.f32 %v177, %v375
    %377 = vmatprep.mubr.f32.mxu0 0.0
    %378 = vmatmul.mubr.f32.gmra.mrb[0].mxu0 %v93
    %v379 = vpop.f32.mrb[0].mxu0
    %v380 = vadd.f32 %v173, %v379
    %v381 = vpop.f32.mrb[0].mxu0
    %v382 = vadd.f32 %v177, %v381
    %383 = vmatprep.mubr.f32.mxu0 0.0
    %384 = vmatmul.mubr.f32.gmra.mrb[0].mxu0 %v94
    %v385 = vpop.f32.mrb[0].mxu0
    %v386 = vadd.f32 %v173, %v385
    %v387 = vpop.f32.mrb[0].mxu0
    %v388 = vadd.f32 %v177, %v387
    %389 = vmatprep.mubr.f32.mxu0 0.0
    %390 = vmatmul.mubr.f32.gmra.mrb[0].mxu0 %v95
    %v391 = vpop.f32.mrb[0].mxu0
    %v392 = vadd.f32 %v173, %v391
    %v393 = vpop.f32.mrb[0].mxu0
    %v394 = vadd.f32 %v177, %v393
    %395 = vdwg.mxu0
    %396 = vst [vmem:[#allocation2] sm:$0xff] %v249
    %397 = vst [vmem:[#allocation2 + $0x8] sm:$0xff] %v251
    %398 = vst [vmem:[#allocation2 + $0x10] sm:$0xff] %v356
    %399 = vst [vmem:[#allocation2 + $0x18] sm:$0xff] %v358
    %400 = vst [vmem:[#allocation2 + $0x20] sm:$0xff] %v255
    %401 = vst [vmem:[#allocation2 + $0x28] sm:$0xff] %v257
    %402 = vst [vmem:[#allocation2 + $0x30] sm:$0xff] %v362
    %403 = vst [vmem:[#allocation2 + $0x38] sm:$0xff] %v364
    %404 = vst [vmem:[#allocation2 + $0x40] sm:$0xff] %v261
    %405 = vst [vmem:[#allocation2 + $0x48] sm:$0xff] %v263
    %406 = vst [vmem:[#allocation2 + $0x50] sm:$0xff] %v368
    %407 = vst [vmem:[#allocation2 + $0x58] sm:$0xff] %v370
    %408 = vst [vmem:[#allocation2 + $0x60] sm:$0xff] %v267
    %409 = vst [vmem:[#allocation2 + $0x68] sm:$0xff] %v269
    %410 = vst [vmem:[#allocation2 + $0x70] sm:$0xff] %v374
    %411 = vst [vmem:[#allocation2 + $0x78] sm:$0xff] %v376
    %412 = vst [vmem:[#allocation2 + $0x80] sm:$0xff] %v273
    %413 = vst [vmem:[#allocation2 + $0x88] sm:$0xff] %v275
    %414 = vst [vmem:[#allocation2 + $0x90] sm:$0xff] %v380
    %415 = vst [vmem:[#allocation2 + $0x98] sm:$0xff] %v382
    %416 = vst [vmem:[#allocation2 + $0xa0] sm:$0xff] %v279
    %417 = vst [vmem:[#allocation2 + $0xa8] sm:$0xff] %v281
    %418 = vst [vmem:[#allocation2 + $0xb0] sm:$0xff] %v386
    %419 = vst [vmem:[#allocation2 + $0xb8] sm:$0xff] %v388
    %420 = vst [vmem:[#allocation2 + $0xc0] sm:$0xff] %v285
    %421 = vst [vmem:[#allocation2 + $0xc8] sm:$0xff] %v287
    %422 = vst [vmem:[#allocation2 + $0xd0] sm:$0xff] %v392
    %423 = vst [vmem:[#allocation2 + $0xd8] sm:$0xff] %v394
    %v424 = vld [vmem:[#allocation12] sm:$0xff]
    %v425 = vld [vmem:[#allocation14] sm:$0xff]
    %s426 = smul.u32 0, 4
    %s427 = smul.addr %s426, 8
    %s428 = scalar_lea.vmem [#allocation2], %s427
    %v429 = vld [vmem:[%s428] sm:$0xff]
    %v430 = vld [vmem:[%s428 + $0x8] sm:$0xff]
    %v431 = vld [vmem:[%s428 + $0x10] sm:$0xff]
    %v432 = vld [vmem:[%s428 + $0x18] sm:$0xff]
    %v433 = vld [vmem:[#allocation8] sm:$0xff]
    %v434 = vld [vmem:[#allocation8 + $0x8] sm:$0xff]
    %v435 = vld [vmem:[#allocation8 + $0x10] sm:$0xff]
    %v436 = vld [vmem:[#allocation8 + $0x18] sm:$0xff]
    %v437 = vld [vmem:[#allocation8 + $0x20] sm:$0xff]
    %v438 = vld [vmem:[#allocation8 + $0x28] sm:$0xff]
    %v439 = vld [vmem:[#allocation8 + $0x30] sm:$0xff]
    %v440 = vld [vmem:[#allocation8 + $0x38] sm:$0xff]
    %v441 = vld [vmem:[#allocation8 + $0x40] sm:$0xff]
    %v442 = vld [vmem:[#allocation8 + $0x48] sm:$0xff]
    %v443 = vld [vmem:[#allocation8 + $0x50] sm:$0xff]
    %v444 = vld [vmem:[#allocation8 + $0x58] sm:$0xff]
    %v445 = vld [vmem:[#allocation8 + $0x60] sm:$0xff]
    %v446 = vld [vmem:[#allocation8 + $0x68] sm:$0xff]
    %v447 = vld [vmem:[#allocation8 + $0x70] sm:$0xff]
    %v448 = vld [vmem:[#allocation8 + $0x78] sm:$0xff]
    %v449 = vld [vmem:[#allocation8 + $0x80] sm:$0xff]
    %v450 = vld [vmem:[#allocation8 + $0x88] sm:$0xff]
    %v451 = vld [vmem:[#allocation8 + $0x90] sm:$0xff]
    %v452 = vld [vmem:[#allocation8 + $0x98] sm:$0xff]
    %v453 = vld [vmem:[#allocation8 + $0xa0] sm:$0xff]
    %v454 = vld [vmem:[#allocation8 + $0xa8] sm:$0xff]
    %v455 = vld [vmem:[#allocation8 + $0xb0] sm:$0xff]
    %v456 = vld [vmem:[#allocation8 + $0xb8] sm:$0xff]
    %v457 = vld [vmem:[#allocation8 + $0xc0] sm:$0xff]
    %v458 = vld [vmem:[#allocation8 + $0xc8] sm:$0xff]
    %v459 = vld [vmem:[#allocation8 + $0xd0] sm:$0xff]
    %v460 = vld [vmem:[#allocation8 + $0xd8] sm:$0xff]
    %v461 = vld [vmem:[#allocation8 + $0xe0] sm:$0xff]
    %v462 = vld [vmem:[#allocation8 + $0xe8] sm:$0xff]
    %v463 = vld [vmem:[#allocation8 + $0xf0] sm:$0xff]
    %v464 = vld [vmem:[#allocation8 + $0xf8] sm:$0xff]
    %v465 = vld [vmem:[#allocation8 + $0x100] sm:$0xff]
    %v466 = vld [vmem:[#allocation8 + $0x108] sm:$0xff]
    %v467 = vld [vmem:[#allocation8 + $0x110] sm:$0xff]
    %v468 = vld [vmem:[#allocation8 + $0x118] sm:$0xff]
    %v469 = vld [vmem:[#allocation8 + $0x120] sm:$0xff]
    %v470 = vld [vmem:[#allocation8 + $0x128] sm:$0xff]
    %v471 = vld [vmem:[#allocation8 + $0x130] sm:$0xff]
    %v472 = vld [vmem:[#allocation8 + $0x138] sm:$0xff]
    %v473 = vld [vmem:[#allocation8 + $0x140] sm:$0xff]
    %v474 = vld [vmem:[#allocation8 + $0x148] sm:$0xff]
    %v475 = vld [vmem:[#allocation8 + $0x150] sm:$0xff]
    %v476 = vld [vmem:[#allocation8 + $0x158] sm:$0xff]
    %v477 = vld [vmem:[#allocation8 + $0x160] sm:$0xff]
    %v478 = vld [vmem:[#allocation8 + $0x168] sm:$0xff]
    %v479 = vld [vmem:[#allocation8 + $0x170] sm:$0xff]
    %v480 = vld [vmem:[#allocation8 + $0x178] sm:$0xff]
    %v481 = vld [vmem:[#allocation8 + $0x180] sm:$0xff]
    %v482 = vld [vmem:[#allocation8 + $0x188] sm:$0xff]
    %v483 = vld [vmem:[#allocation8 + $0x190] sm:$0xff]
    %v484 = vld [vmem:[#allocation8 + $0x198] sm:$0xff]
    %v485 = vld [vmem:[#allocation8 + $0x1a0] sm:$0xff]
    %v486 = vld [vmem:[#allocation8 + $0x1a8] sm:$0xff]
    %v487 = vld [vmem:[#allocation8 + $0x1b0] sm:$0xff]
    %v488 = vld [vmem:[#allocation8 + $0x1b8] sm:$0xff]
    %v489 = vld [vmem:[#allocation8 + $0x1c0] sm:$0xff]
    %v490 = vld [vmem:[#allocation8 + $0x1c8] sm:$0xff]
    %v491 = vld [vmem:[#allocation8 + $0x1d0] sm:$0xff]
    %v492 = vld [vmem:[#allocation8 + $0x1d8] sm:$0xff]
    %v493 = vld [vmem:[#allocation8 + $0x1e0] sm:$0xff]
    %v494 = vld [vmem:[#allocation8 + $0x1e8] sm:$0xff]
    %v495 = vld [vmem:[#allocation8 + $0x1f0] sm:$0xff]
    %v496 = vld [vmem:[#allocation8 + $0x1f8] sm:$0xff]
    %497 = vmatprep.subr.mxu0 %v434
    %498 = vmatpush1.msra.mxu0 %v433
    %499 = vmatprep.subr.mxu0 %v438
    %500 = vmatpush1.msra.mxu0 %v437
    %501 = vmatprep.subr.mxu0 %v442
    %502 = vmatpush1.msra.mxu0 %v441
    %503 = vmatprep.subr.mxu0 %v446
    %504 = vmatpush1.msra.mxu0 %v445
    %505 = vmatprep.subr.mxu0 %v450
    %506 = vmatpush1.msra.mxu0 %v449
    %507 = vmatprep.subr.mxu0 %v454
    %508 = vmatpush1.msra.mxu0 %v453
    %509 = vmatprep.subr.mxu0 %v458
    %510 = vmatpush1.msra.mxu0 %v457
    %511 = vmatprep.subr.mxu0 %v462
    %512 = vmatpush1.msra.mxu0 %v461
    %513 = vmatprep.subr.mxu0 %v466
    %514 = vmatpush1.msra.mxu0 %v465
    %515 = vmatprep.subr.mxu0 %v470
    %516 = vmatpush1.msra.mxu0 %v469
    %517 = vmatprep.subr.mxu0 %v474
    %518 = vmatpush1.msra.mxu0 %v473
    %519 = vmatprep.subr.mxu0 %v478
    %520 = vmatpush1.msra.mxu0 %v477
    %521 = vmatprep.subr.mxu0 %v482
    %522 = vmatpush1.msra.mxu0 %v481
    %523 = vmatprep.subr.mxu0 %v486
    %524 = vmatpush1.msra.mxu0 %v485
    %525 = vmatprep.subr.mxu0 %v490
    %526 = vmatpush1.msra.mxu0 %v489
    %527 = vmatprep.subr.mxu0 %v494
    %528 = vmatpush1.msra.mxu0 %v493
    %529 = vmatprep.subr.mxu0 0.0
    %530 = vmatpush1.msra.mxu0 0.0
    %531 = vmatprep.subr.mxu0 0.0
    %532 = vmatpush1.msra.mxu0 0.0
    %533 = vmatprep.subr.mxu0 0.0
    %534 = vmatpush1.msra.mxu0 0.0
    %535 = vmatprep.subr.mxu0 0.0
    %536 = vmatpush1.msra.mxu0 0.0
    %537 = vmatprep.subr.mxu0 0.0
    %538 = vmatpush1.msra.mxu0 0.0
    %539 = vmatprep.subr.mxu0 0.0
    %540 = vmatpush1.msra.mxu0 0.0
    %541 = vmatprep.subr.mxu0 0.0
    %542 = vmatpush1.msra.mxu0 0.0
    %543 = vmatprep.subr.mxu0 0.0
    %544 = vmatpush1.msra.mxu0 0.0
    %545 = vmatprep.subr.mxu0 0.0
    %546 = vmatpush1.msra.mxu0 0.0
    %547 = vmatprep.subr.mxu0 0.0
    %548 = vmatpush1.msra.mxu0 0.0
    %549 = vmatprep.subr.mxu0 0.0
    %550 = vmatpush1.msra.mxu0 0.0
    %551 = vmatprep.subr.mxu0 0.0
    %552 = vmatpush1.msra.mxu0 0.0
    %553 = vmatprep.subr.mxu0 0.0
    %554 = vmatpush1.msra.mxu0 0.0
    %555 = vmatprep.subr.mxu0 0.0
    %556 = vmatpush1.msra.mxu0 0.0
    %557 = vmatprep.subr.mxu0 0.0
    %558 = vmatpush1.msra.mxu0 0.0
    %559 = vmatprep.subr.mxu0 0.0
    %560 = vmatpush1.msra.mxu0 0.0
    %561 = vmatprep.mubr.f32.mxu0 0.0
    %562 = vmatmul.mubr.f32.gmra.mrb[0].mxu0 %v424
    %v563 = vpop.f32.mrb[0].mxu0
    %v564 = vadd.f32 0.0, %v563
    %v565 = vpop.f32.mrb[0].mxu0
    %v566 = vadd.f32 0.0, %v565
    %567 = vdwg.mxu0
    %568 = vmatprep.subr.mxu0 %v436
    %569 = vmatpush1.msra.mxu0 %v435
    %570 = vmatprep.subr.mxu0 %v440
    %571 = vmatpush1.msra.mxu0 %v439
    %572 = vmatprep.subr.mxu0 %v444
    %573 = vmatpush1.msra.mxu0 %v443
    %574 = vmatprep.subr.mxu0 %v448
    %575 = vmatpush1.msra.mxu0 %v447
    %576 = vmatprep.subr.mxu0 %v452
    %577 = vmatpush1.msra.mxu0 %v451
    %578 = vmatprep.subr.mxu0 %v456
    %579 = vmatpush1.msra.mxu0 %v455
    %580 = vmatprep.subr.mxu0 %v460
    %581 = vmatpush1.msra.mxu0 %v459
    %582 = vmatprep.subr.mxu0 %v464
    %583 = vmatpush1.msra.mxu0 %v463
    %584 = vmatprep.subr.mxu0 %v468
    %585 = vmatpush1.msra.mxu0 %v467
    %586 = vmatprep.subr.mxu0 %v472
    %587 = vmatpush1.msra.mxu0 %v471
    %588 = vmatprep.subr.mxu0 %v476
    %589 = vmatpush1.msra.mxu0 %v475
    %590 = vmatprep.subr.mxu0 %v480
    %591 = vmatpush1.msra.mxu0 %v479
    %592 = vmatprep.subr.mxu0 %v484
    %593 = vmatpush1.msra.mxu0 %v483
    %594 = vmatprep.subr.mxu0 %v488
    %595 = vmatpush1.msra.mxu0 %v487
    %596 = vmatprep.subr.mxu0 %v492
    %597 = vmatpush1.msra.mxu0 %v491
    %598 = vmatprep.subr.mxu0 %v496
    %599 = vmatpush1.msra.mxu0 %v495
    %600 = vmatprep.subr.mxu0 0.0
    %601 = vmatpush1.msra.mxu0 0.0
    %602 = vmatprep.subr.mxu0 0.0
    %603 = vmatpush1.msra.mxu0 0.0
    %604 = vmatprep.subr.mxu0 0.0
    %605 = vmatpush1.msra.mxu0 0.0
    %606 = vmatprep.subr.mxu0 0.0
    %607 = vmatpush1.msra.mxu0 0.0
    %608 = vmatprep.subr.mxu0 0.0
    %609 = vmatpush1.msra.mxu0 0.0
    %610 = vmatprep.subr.mxu0 0.0
    %611 = vmatpush1.msra.mxu0 0.0
    %612 = vmatprep.subr.mxu0 0.0
    %613 = vmatpush1.msra.mxu0 0.0
    %614 = vmatprep.subr.mxu0 0.0
    %615 = vmatpush1.msra.mxu0 0.0
    %616 = vmatprep.subr.mxu0 0.0
    %617 = vmatpush1.msra.mxu0 0.0
    %618 = vmatprep.subr.mxu0 0.0
    %619 = vmatpush1.msra.mxu0 0.0
    %620 = vmatprep.subr.mxu0 0.0
    %621 = vmatpush1.msra.mxu0 0.0
    %622 = vmatprep.subr.mxu0 0.0
    %623 = vmatpush1.msra.mxu0 0.0
    %624 = vmatprep.subr.mxu0 0.0
    %625 = vmatpush1.msra.mxu0 0.0
    %626 = vmatprep.subr.mxu0 0.0
    %627 = vmatpush1.msra.mxu0 0.0
    %628 = vmatprep.subr.mxu0 0.0
    %629 = vmatpush1.msra.mxu0 0.0
    %630 = vmatprep.subr.mxu0 0.0
    %631 = vmatpush1.msra.mxu0 0.0
    %632 = vmatprep.mubr.f32.mxu0 0.0
    %633 = vmatmul.mubr.f32.gmra.mrb[0].mxu0 %v424
    %v634 = vpop.f32.mrb[0].mxu0
    %v635 = vadd.f32 0.0, %v634
    %v636 = vpop.f32.mrb[0].mxu0
    %v637 = vadd.f32 0.0, %v636
    %638 = vdwg.mxu0
    %v639 = vadd.f32 %v429, %v564
    %v640 = vadd.f32 %v430, %v566
    %v641 = vadd.f32 %v431, %v635
    %v642 = vadd.f32 %v432, %v637
    %v643 = vxor.u32 %v639, 2147483648
    %v644 = vmul.f32 %v643, 1.442695
    %v645 = vpow.pop %v644
    %v646 = vadd.f32 %v645, 1.0
    %v647 = vrcp.pop %v646
    %v648 = vmul.f32 1.0, %v647
    %v649 = vxor.u32 %v640, 2147483648
    %v650 = vmul.f32 %v649, 1.442695
    %v651 = vpow.pop %v650
    %v652 = vadd.f32 %v651, 1.0
    %v653 = vrcp.pop %v652
    %v654 = vmul.f32 1.0, %v653
    %v655 = vtanh.pop %v642
    %v656 = vmul.f32 %v654, %v425
    %v657 = vmul.f32 %v648, %v655
    %v658 = vadd.f32 %v656, %v657
    %v659 = vxor.u32 %v641, 2147483648
    %v660 = vmul.f32 %v659, 1.442695
    %v661 = vpow.pop %v660
    %v662 = vadd.f32 %v661, 1.0
    %v663 = vrcp.pop %v662
    %v664 = vmul.f32 1.0, %v663
    %v665 = vtanh.pop %v658
    %v666 = vmul.f32 %v664, %v665
    %667 = vst [vmem:[#allocation11] sm:$0xff] %v666
    %s668 = smul.u32 1, 4
    %s669 = smul.addr %s668, 8
    %s670 = scalar_lea.vmem [#allocation2], %s669
    %v671 = vld [vmem:[%s670] sm:$0xff]
    %v672 = vld [vmem:[%s670 + $0x8] sm:$0xff]
    %v673 = vld [vmem:[%s670 + $0x10] sm:$0xff]
    %v674 = vld [vmem:[%s670 + $0x18] sm:$0xff]
    %v675 = vld [vmem:[#allocation8] sm:$0xff]
    %v676 = vld [vmem:[#allocation8 + $0x8] sm:$0xff]
    %v677 = vld [vmem:[#allocation8 + $0x10] sm:$0xff]
    %v678 = vld [vmem:[#allocation8 + $0x18] sm:$0xff]
    %v679 = vld [vmem:[#allocation8 + $0x20] sm:$0xff]
    %v680 = vld [vmem:[#allocation8 + $0x28] sm:$0xff]
    %v681 = vld [vmem:[#allocation8 + $0x30] sm:$0xff]
    %v682 = vld [vmem:[#allocation8 + $0x38] sm:$0xff]
    %v683 = vld [vmem:[#allocation8 + $0x40] sm:$0xff]
    %v684 = vld [vmem:[#allocation8 + $0x48] sm:$0xff]
    %v685 = vld [vmem:[#allocation8 + $0x50] sm:$0xff]
    %v686 = vld [vmem:[#allocation8 + $0x58] sm:$0xff]
    %v687 = vld [vmem:[#allocation8 + $0x60] sm:$0xff]
    %v688 = vld [vmem:[#allocation8 + $0x68] sm:$0xff]
    %v689 = vld [vmem:[#allocation8 + $0x70] sm:$0xff]
    %v690 = vld [vmem:[#allocation8 + $0x78] sm:$0xff]
    %v691 = vld [vmem:[#allocation8 + $0x80] sm:$0xff]
    %v692 = vld [vmem:[#allocation8 + $0x88] sm:$0xff]
    %v693 = vld [vmem:[#allocation8 + $0x90] sm:$0xff]
    %v694 = vld [vmem:[#allocation8 + $0x98] sm:$0xff]
    %v695 = vld [vmem:[#allocation8 + $0xa0] sm:$0xff]
    %v696 = vld [vmem:[#allocation8 + $0xa8] sm:$0xff]
    %v697 = vld [vmem:[#allocation8 + $0xb0] sm:$0xff]
    %v698 = vld [vmem:[#allocation8 + $0xb8] sm:$0xff]
    %v699 = vld [vmem:[#allocation8 + $0xc0] sm:$0xff]
    %v700 = vld [vmem:[#allocation8 + $0xc8] sm:$0xff]
    %v701 = vld [vmem:[#allocation8 + $0xd0] sm:$0xff]
    %v702 = vld [vmem:[#allocation8 + $0xd8] sm:$0xff]
    %v703 = vld [vmem:[#allocation8 + $0xe0] sm:$0xff]
    %v704 = vld [vmem:[#allocation8 + $0xe8] sm:$0xff]
    %v705 = vld [vmem:[#allocation8 + $0xf0] sm:$0xff]
    %v706 = vld [vmem:[#allocation8 + $0xf8] sm:$0xff]
    %v707 = vld [vmem:[#allocation8 + $0x100] sm:$0xff]
    %v708 = vld [vmem:[#allocation8 + $0x108] sm:$0xff]
    %v709 = vld [vmem:[#allocation8 + $0x110] sm:$0xff]
    %v710 = vld [vmem:[#allocation8 + $0x118] sm:$0xff]
    %v711 = vld [vmem:[#allocation8 + $0x120] sm:$0xff]
    %v712 = vld [vmem:[#allocation8 + $0x128] sm:$0xff]
    %v713 = vld [vmem:[#allocation8 + $0x130] sm:$0xff]
    %v714 = vld [vmem:[#allocation8 + $0x138] sm:$0xff]
    %v715 = vld [vmem:[#allocation8 + $0x140] sm:$0xff]
    %v716 = vld [vmem:[#allocation8 + $0x148] sm:$0xff]
    %v717 = vld [vmem:[#allocation8 + $0x150] sm:$0xff]
    %v718 = vld [vmem:[#allocation8 + $0x158] sm:$0xff]
    %v719 = vld [vmem:[#allocation8 + $0x160] sm:$0xff]
    %v720 = vld [vmem:[#allocation8 + $0x168] sm:$0xff]
    %v721 = vld [vmem:[#allocation8 + $0x170] sm:$0xff]
    %v722 = vld [vmem:[#allocation8 + $0x178] sm:$0xff]
    %v723 = vld [vmem:[#allocation8 + $0x180] sm:$0xff]
    %v724 = vld [vmem:[#allocation8 + $0x188] sm:$0xff]
    %v725 = vld [vmem:[#allocation8 + $0x190] sm:$0xff]
    %v726 = vld [vmem:[#allocation8 + $0x198] sm:$0xff]
    %v727 = vld [vmem:[#allocation8 + $0x1a0] sm:$0xff]
    %v728 = vld [vmem:[#allocation8 + $0x1a8] sm:$0xff]
    %v729 = vld [vmem:[#allocation8 + $0x1b0] sm:$0xff]
    %v730 = vld [vmem:[#allocation8 + $0x1b8] sm:$0xff]
    %v731 = vld [vmem:[#allocation8 + $0x1c0] sm:$0xff]
    %v732 = vld [vmem:[#allocation8 + $0x1c8] sm:$0xff]
    %v733 = vld [vmem:[#allocation8 + $0x1d0] sm:$0xff]
    %v734 = vld [vmem:[#allocation8 + $0x1d8] sm:$0xff]
    %v735 = vld [vmem:[#allocation8 + $0x1e0] sm:$0xff]
    %v736 = vld [vmem:[#allocation8 + $0x1e8] sm:$0xff]
    %v737 = vld [vmem:[#allocation8 + $0x1f0] sm:$0xff]
    %v738 = vld [vmem:[#allocation8 + $0x1f8] sm:$0xff]
    %739 = vmatprep.subr.mxu0 %v676
    %740 = vmatpush1.msra.mxu0 %v675
    %741 = vmatprep.subr.mxu0 %v680
    %742 = vmatpush1.msra.mxu0 %v679
    %743 = vmatprep.subr.mxu0 %v684
    %744 = vmatpush1.msra.mxu0 %v683
    %745 = vmatprep.subr.mxu0 %v688
    %746 = vmatpush1.msra.mxu0 %v687
    %747 = vmatprep.subr.mxu0 %v692
    %748 = vmatpush1.msra.mxu0 %v691
    %749 = vmatprep.subr.mxu0 %v696
    %750 = vmatpush1.msra.mxu0 %v695
    %751 = vmatprep.subr.mxu0 %v700
    %752 = vmatpush1.msra.mxu0 %v699
    %753 = vmatprep.subr.mxu0 %v704
    %754 = vmatpush1.msra.mxu0 %v703
    %755 = vmatprep.subr.mxu0 %v708
    %756 = vmatpush1.msra.mxu0 %v707
    %757 = vmatprep.subr.mxu0 %v712
    %758 = vmatpush1.msra.mxu0 %v711
    %759 = vmatprep.subr.mxu0 %v716
    %760 = vmatpush1.msra.mxu0 %v715
    %761 = vmatprep.subr.mxu0 %v720
    %762 = vmatpush1.msra.mxu0 %v719
    %763 = vmatprep.subr.mxu0 %v724
    %764 = vmatpush1.msra.mxu0 %v723
    %765 = vmatprep.subr.mxu0 %v728
    %766 = vmatpush1.msra.mxu0 %v727
    %767 = vmatprep.subr.mxu0 %v732
    %768 = vmatpush1.msra.mxu0 %v731
    %769 = vmatprep.subr.mxu0 %v736
    %770 = vmatpush1.msra.mxu0 %v735
    %771 = vmatprep.subr.mxu0 0.0
    %772 = vmatpush1.msra.mxu0 0.0
    %773 = vmatprep.subr.mxu0 0.0
    %774 = vmatpush1.msra.mxu0 0.0
    %775 = vmatprep.subr.mxu0 0.0
    %776 = vmatpush1.msra.mxu0 0.0
    %777 = vmatprep.subr.mxu0 0.0
    %778 = vmatpush1.msra.mxu0 0.0
    %779 = vmatprep.subr.mxu0 0.0
    %780 = vmatpush1.msra.mxu0 0.0
    %781 = vmatprep.subr.mxu0 0.0
    %782 = vmatpush1.msra.mxu0 0.0
    %783 = vmatprep.subr.mxu0 0.0
    %784 = vmatpush1.msra.mxu0 0.0
    %785 = vmatprep.subr.mxu0 0.0
    %786 = vmatpush1.msra.mxu0 0.0
    %787 = vmatprep.subr.mxu0 0.0
    %788 = vmatpush1.msra.mxu0 0.0
    %789 = vmatprep.subr.mxu0 0.0
    %790 = vmatpush1.msra.mxu0 0.0
    %791 = vmatprep.subr.mxu0 0.0
    %792 = vmatpush1.msra.mxu0 0.0
    %793 = vmatprep.subr.mxu0 0.0
    %794 = vmatpush1.msra.mxu0 0.0
    %795 = vmatprep.subr.mxu0 0.0
    %796 = vmatpush1.msra.mxu0 0.0
    %797 = vmatprep.subr.mxu0 0.0
    %798 = vmatpush1.msra.mxu0 0.0
    %799 = vmatprep.subr.mxu0 0.0
    %800 = vmatpush1.msra.mxu0 0.0
    %801 = vmatprep.subr.mxu0 0.0
    %802 = vmatpush1.msra.mxu0 0.0
    %803 = vmatprep.mubr.f32.mxu0 0.0
    %804 = vmatmul.mubr.f32.gmra.mrb[0].mxu0 %v666
    %v805 = vpop.f32.mrb[0].mxu0
    %v806 = vadd.f32 0.0, %v805
    %v807 = vpop.f32.mrb[0].mxu0
    %v808 = vadd.f32 0.0, %v807
    %809 = vdwg.mxu0
    %810 = vmatprep.subr.mxu0 %v678
    %811 = vmatpush1.msra.mxu0 %v677
    %812 = vmatprep.subr.mxu0 %v682
    %813 = vmatpush1.msra.mxu0 %v681
    %814 = vmatprep.subr.mxu0 %v686
    %815 = vmatpush1.msra.mxu0 %v685
    %816 = vmatprep.subr.mxu0 %v690
    %817 = vmatpush1.msra.mxu0 %v689
    %818 = vmatprep.subr.mxu0 %v694
    %819 = vmatpush1.msra.mxu0 %v693
    %820 = vmatprep.subr.mxu0 %v698
    %821 = vmatpush1.msra.mxu0 %v697
    %822 = vmatprep.subr.mxu0 %v702
    %823 = vmatpush1.msra.mxu0 %v701
    %824 = vmatprep.subr.mxu0 %v706
    %825 = vmatpush1.msra.mxu0 %v705
    %826 = vmatprep.subr.mxu0 %v710
    %827 = vmatpush1.msra.mxu0 %v709
    %828 = vmatprep.subr.mxu0 %v714
    %829 = vmatpush1.msra.mxu0 %v713
    %830 = vmatprep.subr.mxu0 %v718
    %831 = vmatpush1.msra.mxu0 %v717
    %832 = vmatprep.subr.mxu0 %v722
    %833 = vmatpush1.msra.mxu0 %v721
    %834 = vmatprep.subr.mxu0 %v726
    %835 = vmatpush1.msra.mxu0 %v725
    %836 = vmatprep.subr.mxu0 %v730
    %837 = vmatpush1.msra.mxu0 %v729
    %838 = vmatprep.subr.mxu0 %v734
    %839 = vmatpush1.msra.mxu0 %v733
    %840 = vmatprep.subr.mxu0 %v738
    %841 = vmatpush1.msra.mxu0 %v737
    %842 = vmatprep.subr.mxu0 0.0
    %843 = vmatpush1.msra.mxu0 0.0
    %844 = vmatprep.subr.mxu0 0.0
    %845 = vmatpush1.msra.mxu0 0.0
    %846 = vmatprep.subr.mxu0 0.0
    %847 = vmatpush1.msra.mxu0 0.0
    %848 = vmatprep.subr.mxu0 0.0
    %849 = vmatpush1.msra.mxu0 0.0
    %850 = vmatprep.subr.mxu0 0.0
    %851 = vmatpush1.msra.mxu0 0.0
    %852 = vmatprep.subr.mxu0 0.0
    %853 = vmatpush1.msra.mxu0 0.0
    %854 = vmatprep.subr.mxu0 0.0
    %855 = vmatpush1.msra.mxu0 0.0
    %856 = vmatprep.subr.mxu0 0.0
    %857 = vmatpush1.msra.mxu0 0.0
    %858 = vmatprep.subr.mxu0 0.0
    %859 = vmatpush1.msra.mxu0 0.0
    %860 = vmatprep.subr.mxu0 0.0
    %861 = vmatpush1.msra.mxu0 0.0
    %862 = vmatprep.subr.mxu0 0.0
    %863 = vmatpush1.msra.mxu0 0.0
    %864 = vmatprep.subr.mxu0 0.0
    %865 = vmatpush1.msra.mxu0 0.0
    %866 = vmatprep.subr.mxu0 0.0
    %867 = vmatpush1.msra.mxu0 0.0
    %868 = vmatprep.subr.mxu0 0.0
    %869 = vmatpush1.msra.mxu0 0.0
    %870 = vmatprep.subr.mxu0 0.0
    %871 = vmatpush1.msra.mxu0 0.0
    %872 = vmatprep.subr.mxu0 0.0
    %873 = vmatpush1.msra.mxu0 0.0
    %874 = vmatprep.mubr.f32.mxu0 0.0
    %875 = vmatmul.mubr.f32.gmra.mrb[0].mxu0 %v666
    %v876 = vpop.f32.mrb[0].mxu0
    %v877 = vadd.f32 0.0, %v876
    %v878 = vpop.f32.mrb[0].mxu0
    %v879 = vadd.f32 0.0, %v878
    %880 = vdwg.mxu0
    %v881 = vadd.f32 %v671, %v806
    %v882 = vadd.f32 %v672, %v808
    %v883 = vadd.f32 %v673, %v877
    %v884 = vadd.f32 %v674, %v879
    %v885 = vxor.u32 %v881, 2147483648
    %v886 = vmul.f32 %v885, 1.442695
    %v887 = vpow.pop %v886
    %v888 = vadd.f32 %v887, 1.0
    %v889 = vrcp.pop %v888
    %v890 = vmul.f32 1.0, %v889
    %v891 = vxor.u32 %v882, 2147483648
    %v892 = vmul.f32 %v891, 1.442695
    %v893 = vpow.pop %v892
    %v894 = vadd.f32 %v893, 1.0
    %v895 = vrcp.pop %v894
    %v896 = vmul.f32 1.0, %v895
    %v897 = vtanh.pop %v884
    %v898 = vmul.f32 %v896, %v658
    %v899 = vmul.f32 %v890, %v897
    %v900 = vadd.f32 %v898, %v899
    %v901 = vxor.u32 %v883, 2147483648
    %v902 = vmul.f32 %v901, 1.442695
    %v903 = vpow.pop %v902
    %v904 = vadd.f32 %v903, 1.0
    %v905 = vrcp.pop %v904
    %v906 = vmul.f32 1.0, %v905
    %v907 = vtanh.pop %v900
    %v908 = vmul.f32 %v906, %v907
    %s909 = scalar_lea.vmem [#allocation11], 8
    %910 = vst [vmem:[%s909] sm:$0xff] %v908
    %s911 = smul.u32 2, 4
    %s912 = smul.addr %s911, 8
    %s913 = scalar_lea.vmem [#allocation2], %s912
    %v914 = vld [vmem:[%s913] sm:$0xff]
    %v915 = vld [vmem:[%s913 + $0x8] sm:$0xff]
    %v916 = vld [vmem:[%s913 + $0x10] sm:$0xff]
    %v917 = vld [vmem:[%s913 + $0x18] sm:$0xff]
    %v918 = vld [vmem:[#allocation8] sm:$0xff]
    %v919 = vld [vmem:[#allocation8 + $0x8] sm:$0xff]
    %v920 = vld [vmem:[#allocation8 + $0x10] sm:$0xff]
    %v921 = vld [vmem:[#allocation8 + $0x18] sm:$0xff]
    %v922 = vld [vmem:[#allocation8 + $0x20] sm:$0xff]
    %v923 = vld [vmem:[#allocation8 + $0x28] sm:$0xff]
    %v924 = vld [vmem:[#allocation8 + $0x30] sm:$0xff]
    %v925 = vld [vmem:[#allocation8 + $0x38] sm:$0xff]
    %v926 = vld [vmem:[#allocation8 + $0x40] sm:$0xff]
    %v927 = vld [vmem:[#allocation8 + $0x48] sm:$0xff]
    %v928 = vld [vmem:[#allocation8 + $0x50] sm:$0xff]
    %v929 = vld [vmem:[#allocation8 + $0x58] sm:$0xff]
    %v930 = vld [vmem:[#allocation8 + $0x60] sm:$0xff]
    %v931 = vld [vmem:[#allocation8 + $0x68] sm:$0xff]
    %v932 = vld [vmem:[#allocation8 + $0x70] sm:$0xff]
    %v933 = vld [vmem:[#allocation8 + $0x78] sm:$0xff]
    %v934 = vld [vmem:[#allocation8 + $0x80] sm:$0xff]
    %v935 = vld [vmem:[#allocation8 + $0x88] sm:$0xff]
    %v936 = vld [vmem:[#allocation8 + $0x90] sm:$0xff]
    %v937 = vld [vmem:[#allocation8 + $0x98] sm:$0xff]
    %v938 = vld [vmem:[#allocation8 + $0xa0] sm:$0xff]
    %v939 = vld [vmem:[#allocation8 + $0xa8] sm:$0xff]
    %v940 = vld [vmem:[#allocation8 + $0xb0] sm:$0xff]
    %v941 = vld [vmem:[#allocation8 + $0xb8] sm:$0xff]
    %v942 = vld [vmem:[#allocation8 + $0xc0] sm:$0xff]
    %v943 = vld [vmem:[#allocation8 + $0xc8] sm:$0xff]
    %v944 = vld [vmem:[#allocation8 + $0xd0] sm:$0xff]
    %v945 = vld [vmem:[#allocation8 + $0xd8] sm:$0xff]
    %v946 = vld [vmem:[#allocation8 + $0xe0] sm:$0xff]
    %v947 = vld [vmem:[#allocation8 + $0xe8] sm:$0xff]
    %v948 = vld [vmem:[#allocation8 + $0xf0] sm:$0xff]
    %v949 = vld [vmem:[#allocation8 + $0xf8] sm:$0xff]
    %v950 = vld [vmem:[#allocation8 + $0x100] sm:$0xff]
    %v951 = vld [vmem:[#allocation8 + $0x108] sm:$0xff]
    %v952 = vld [vmem:[#allocation8 + $0x110] sm:$0xff]
    %v953 = vld [vmem:[#allocation8 + $0x118] sm:$0xff]
    %v954 = vld [vmem:[#allocation8 + $0x120] sm:$0xff]
    %v955 = vld [vmem:[#allocation8 + $0x128] sm:$0xff]
    %v956 = vld [vmem:[#allocation8 + $0x130] sm:$0xff]
    %v957 = vld [vmem:[#allocation8 + $0x138] sm:$0xff]
    %v958 = vld [vmem:[#allocation8 + $0x140] sm:$0xff]
    %v959 = vld [vmem:[#allocation8 + $0x148] sm:$0xff]
    %v960 = vld [vmem:[#allocation8 + $0x150] sm:$0xff]
    %v961 = vld [vmem:[#allocation8 + $0x158] sm:$0xff]
    %v962 = vld [vmem:[#allocation8 + $0x160] sm:$0xff]
    %v963 = vld [vmem:[#allocation8 + $0x168] sm:$0xff]
    %v964 = vld [vmem:[#allocation8 + $0x170] sm:$0xff]
    %v965 = vld [vmem:[#allocation8 + $0x178] sm:$0xff]
    %v966 = vld [vmem:[#allocation8 + $0x180] sm:$0xff]
    %v967 = vld [vmem:[#allocation8 + $0x188] sm:$0xff]
    %v968 = vld [vmem:[#allocation8 + $0x190] sm:$0xff]
    %v969 = vld [vmem:[#allocation8 + $0x198] sm:$0xff]
    %v970 = vld [vmem:[#allocation8 + $0x1a0] sm:$0xff]
    %v971 = vld [vmem:[#allocation8 + $0x1a8] sm:$0xff]
    %v972 = vld [vmem:[#allocation8 + $0x1b0] sm:$0xff]
    %v973 = vld [vmem:[#allocation8 + $0x1b8] sm:$0xff]
    %v974 = vld [vmem:[#allocation8 + $0x1c0] sm:$0xff]
    %v975 = vld [vmem:[#allocation8 + $0x1c8] sm:$0xff]
    %v976 = vld [vmem:[#allocation8 + $0x1d0] sm:$0xff]
    %v977 = vld [vmem:[#allocation8 + $0x1d8] sm:$0xff]
    %v978 = vld [vmem:[#allocation8 + $0x1e0] sm:$0xff]
    %v979 = vld [vmem:[#allocation8 + $0x1e8] sm:$0xff]
    %v980 = vld [vmem:[#allocation8 + $0x1f0] sm:$0xff]
    %v981 = vld [vmem:[#allocation8 + $0x1f8] sm:$0xff]
    %982 = vmatprep.subr.mxu0 %v919
    %983 = vmatpush1.msra.mxu0 %v918
    %984 = vmatprep.subr.mxu0 %v923
    %985 = vmatpush1.msra.mxu0 %v922
    %986 = vmatprep.subr.mxu0 %v927
    %987 = vmatpush1.msra.mxu0 %v926
    %988 = vmatprep.subr.mxu0 %v931
    %989 = vmatpush1.msra.mxu0 %v930
    %990 = vmatprep.subr.mxu0 %v935
    %991 = vmatpush1.msra.mxu0 %v934
    %992 = vmatprep.subr.mxu0 %v939
    %993 = vmatpush1.msra.mxu0 %v938
    %994 = vmatprep.subr.mxu0 %v943
    %995 = vmatpush1.msra.mxu0 %v942
    %996 = vmatprep.subr.mxu0 %v947
    %997 = vmatpush1.msra.mxu0 %v946
    %998 = vmatprep.subr.mxu0 %v951
    %999 = vmatpush1.msra.mxu0 %v950
    %1000 = vmatprep.subr.mxu0 %v955
    %1001 = vmatpush1.msra.mxu0 %v954
    %1002 = vmatprep.subr.mxu0 %v959
    %1003 = vmatpush1.msra.mxu0 %v958
    %1004 = vmatprep.subr.mxu0 %v963
    %1005 = vmatpush1.msra.mxu0 %v962
    %1006 = vmatprep.subr.mxu0 %v967
    %1007 = vmatpush1.msra.mxu0 %v966
    %1008 = vmatprep.subr.mxu0 %v971
    %1009 = vmatpush1.msra.mxu0 %v970
    %1010 = vmatprep.subr.mxu0 %v975
    %1011 = vmatpush1.msra.mxu0 %v974
    %1012 = vmatprep.subr.mxu0 %v979
    %1013 = vmatpush1.msra.mxu0 %v978
    %1014 = vmatprep.subr.mxu0 0.0
    %1015 = vmatpush1.msra.mxu0 0.0
    %1016 = vmatprep.subr.mxu0 0.0
    %1017 = vmatpush1.msra.mxu0 0.0
    %1018 = vmatprep.subr.mxu0 0.0
    %1019 = vmatpush1.msra.mxu0 0.0
    %1020 = vmatprep.subr.mxu0 0.0
    %1021 = vmatpush1.msra.mxu0 0.0
    %1022 = vmatprep.subr.mxu0 0.0
    %1023 = vmatpush1.msra.mxu0 0.0
    %1024 = vmatprep.subr.mxu0 0.0
    %1025 = vmatpush1.msra.mxu0 0.0
    %1026 = vmatprep.subr.mxu0 0.0
    %1027 = vmatpush1.msra.mxu0 0.0
    %1028 = vmatprep.subr.mxu0 0.0
    %1029 = vmatpush1.msra.mxu0 0.0
    %1030 = vmatprep.subr.mxu0 0.0
    %1031 = vmatpush1.msra.mxu0 0.0
    %1032 = vmatprep.subr.mxu0 0.0
    %1033 = vmatpush1.msra.mxu0 0.0
    %1034 = vmatprep.subr.mxu0 0.0
    %1035 = vmatpush1.msra.mxu0 0.0
    %1036 = vmatprep.subr.mxu0 0.0
    %1037 = vmatpush1.msra.mxu0 0.0
    %1038 = vmatprep.subr.mxu0 0.0
    %1039 = vmatpush1.msra.mxu0 0.0
    %1040 = vmatprep.subr.mxu0 0.0
    %1041 = vmatpush1.msra.mxu0 0.0
    %1042 = vmatprep.subr.mxu0 0.0
    %1043 = vmatpush1.msra.mxu0 0.0
    %1044 = vmatprep.subr.mxu0 0.0
    %1045 = vmatpush1.msra.mxu0 0.0
    %1046 = vmatprep.mubr.f32.mxu0 0.0
    %1047 = vmatmul.mubr.f32.gmra.mrb[0].mxu0 %v908
    %v1048 = vpop.f32.mrb[0].mxu0
    %v1049 = vadd.f32 0.0, %v1048
    %v1050 = vpop.f32.mrb[0].mxu0
    %v1051 = vadd.f32 0.0, %v1050
    %1052 = vdwg.mxu0
    %1053 = vmatprep.subr.mxu0 %v921
    %1054 = vmatpush1.msra.mxu0 %v920
    %1055 = vmatprep.subr.mxu0 %v925
    %1056 = vmatpush1.msra.mxu0 %v924
    %1057 = vmatprep.subr.mxu0 %v929
    %1058 = vmatpush1.msra.mxu0 %v928
    %1059 = vmatprep.subr.mxu0 %v933
    %1060 = vmatpush1.msra.mxu0 %v932
    %1061 = vmatprep.subr.mxu0 %v937
    %1062 = vmatpush1.msra.mxu0 %v936
    %1063 = vmatprep.subr.mxu0 %v941
    %1064 = vmatpush1.msra.mxu0 %v940
    %1065 = vmatprep.subr.mxu0 %v945
    %1066 = vmatpush1.msra.mxu0 %v944
    %1067 = vmatprep.subr.mxu0 %v949
    %1068 = vmatpush1.msra.mxu0 %v948
    %1069 = vmatprep.subr.mxu0 %v953
    %1070 = vmatpush1.msra.mxu0 %v952
    %1071 = vmatprep.subr.mxu0 %v957
    %1072 = vmatpush1.msra.mxu0 %v956
    %1073 = vmatprep.subr.mxu0 %v961
    %1074 = vmatpush1.msra.mxu0 %v960
    %1075 = vmatprep.subr.mxu0 %v965
    %1076 = vmatpush1.msra.mxu0 %v964
    %1077 = vmatprep.subr.mxu0 %v969
    %1078 = vmatpush1.msra.mxu0 %v968
    %1079 = vmatprep.subr.mxu0 %v973
    %1080 = vmatpush1.msra.mxu0 %v972
    %1081 = vmatprep.subr.mxu0 %v977
    %1082 = vmatpush1.msra.mxu0 %v976
    %1083 = vmatprep.subr.mxu0 %v981
    %1084 = vmatpush1.msra.mxu0 %v980
    %1085 = vmatprep.subr.mxu0 0.0
    %1086 = vmatpush1.msra.mxu0 0.0
    %1087 = vmatprep.subr.mxu0 0.0
    %1088 = vmatpush1.msra.mxu0 0.0
    %1089 = vmatprep.subr.mxu0 0.0
    %1090 = vmatpush1.msra.mxu0 0.0
    %1091 = vmatprep.subr.mxu0 0.0
    %1092 = vmatpush1.msra.mxu0 0.0
    %1093 = vmatprep.subr.mxu0 0.0
    %1094 = vmatpush1.msra.mxu0 0.0
    %1095 = vmatprep.subr.mxu0 0.0
    %1096 = vmatpush1.msra.mxu0 0.0
    %1097 = vmatprep.subr.mxu0 0.0
    %1098 = vmatpush1.msra.mxu0 0.0
    %1099 = vmatprep.subr.mxu0 0.0
    %1100 = vmatpush1.msra.mxu0 0.0
    %1101 = vmatprep.subr.mxu0 0.0
    %1102 = vmatpush1.msra.mxu0 0.0
    %1103 = vmatprep.subr.mxu0 0.0
    %1104 = vmatpush1.msra.mxu0 0.0
    %1105 = vmatprep.subr.mxu0 0.0
    %1106 = vmatpush1.msra.mxu0 0.0
    %1107 = vmatprep.subr.mxu0 0.0
    %1108 = vmatpush1.msra.mxu0 0.0
    %1109 = vmatprep.subr.mxu0 0.0
    %1110 = vmatpush1.msra.mxu0 0.0
    %1111 = vmatprep.subr.mxu0 0.0
    %1112 = vmatpush1.msra.mxu0 0.0
    %1113 = vmatprep.subr.mxu0 0.0
    %1114 = vmatpush1.msra.mxu0 0.0
    %1115 = vmatprep.subr.mxu0 0.0
    %1116 = vmatpush1.msra.mxu0 0.0
    %1117 = vmatprep.mubr.f32.mxu0 0.0
    %1118 = vmatmul.mubr.f32.gmra.mrb[0].mxu0 %v908
    %v1119 = vpop.f32.mrb[0].mxu0
    %v1120 = vadd.f32 0.0, %v1119
    %v1121 = vpop.f32.mrb[0].mxu0
    %v1122 = vadd.f32 0.0, %v1121
    %1123 = vdwg.mxu0
    %v1124 = vadd.f32 %v914, %v1049
    %v1125 = vadd.f32 %v915, %v1051
    %v1126 = vadd.f32 %v916, %v1120
    %v1127 = vadd.f32 %v917, %v1122
    %v1128 = vxor.u32 %v1124, 2147483648
    %v1129 = vmul.f32 %v1128, 1.442695
    %v1130 = vpow.pop %v1129
    %v1131 = vadd.f32 %v1130, 1.0
    %v1132 = vrcp.pop %v1131
    %v1133 = vmul.f32 1.0, %v1132
    %v1134 = vxor.u32 %v1125, 2147483648
    %v1135 = vmul.f32 %v1134, 1.442695
    %v1136 = vpow.pop %v1135
    %v1137 = vadd.f32 %v1136, 1.0
    %v1138 = vrcp.pop %v1137
    %v1139 = vmul.f32 1.0, %v1138
    %v1140 = vtanh.pop %v1127
    %v1141 = vmul.f32 %v1139, %v900
    %v1142 = vmul.f32 %v1133, %v1140
    %v1143 = vadd.f32 %v1141, %v1142
    %v1144 = vxor.u32 %v1126, 2147483648
    %v1145 = vmul.f32 %v1144, 1.442695
    %v1146 = vpow.pop %v1145
    %v1147 = vadd.f32 %v1146, 1.0
    %v1148 = vrcp.pop %v1147
    %v1149 = vmul.f32 1.0, %v1148
    %v1150 = vtanh.pop %v1143
    %v1151 = vmul.f32 %v1149, %v1150
    %s1152 = scalar_lea.vmem [#allocation11], 16
    %1153 = vst [vmem:[%s1152] sm:$0xff] %v1151
    %s1154 = smul.u32 3, 4
    %s1155 = smul.addr %s1154, 8
    %s1156 = scalar_lea.vmem [#allocation2], %s1155
    %v1157 = vld [vmem:[%s1156] sm:$0xff]
    %v1158 = vld [vmem:[%s1156 + $0x8] sm:$0xff]
    %v1159 = vld [vmem:[%s1156 + $0x10] sm:$0xff]
    %v1160 = vld [vmem:[%s1156 + $0x18] sm:$0xff]
    %v1161 = vld [vmem:[#allocation8] sm:$0xff]
    %v1162 = vld [vmem:[#allocation8 + $0x8] sm:$0xff]
    %v1163 = vld [vmem:[#allocation8 + $0x10] sm:$0xff]
    %v1164 = vld [vmem:[#allocation8 + $0x18] sm:$0xff]
    %v1165 = vld [vmem:[#allocation8 + $0x20] sm:$0xff]
    %v1166 = vld [vmem:[#allocation8 + $0x28] sm:$0xff]
    %v1167 = vld [vmem:[#allocation8 + $0x30] sm:$0xff]
    %v1168 = vld [vmem:[#allocation8 + $0x38] sm:$0xff]
    %v1169 = vld [vmem:[#allocation8 + $0x40] sm:$0xff]
    %v1170 = vld [vmem:[#allocation8 + $0x48] sm:$0xff]
    %v1171 = vld [vmem:[#allocation8 + $0x50] sm:$0xff]
    %v1172 = vld [vmem:[#allocation8 + $0x58] sm:$0xff]
    %v1173 = vld [vmem:[#allocation8 + $0x60] sm:$0xff]
    %v1174 = vld [vmem:[#allocation8 + $0x68] sm:$0xff]
    %v1175 = vld [vmem:[#allocation8 + $0x70] sm:$0xff]
    %v1176 = vld [vmem:[#allocation8 + $0x78] sm:$0xff]
    %v1177 = vld [vmem:[#allocation8 + $0x80] sm:$0xff]
    %v1178 = vld [vmem:[#allocation8 + $0x88] sm:$0xff]
    %v1179 = vld [vmem:[#allocation8 + $0x90] sm:$0xff]
    %v1180 = vld [vmem:[#allocation8 + $0x98] sm:$0xff]
    %v1181 = vld [vmem:[#allocation8 + $0xa0] sm:$0xff]
    %v1182 = vld [vmem:[#allocation8 + $0xa8] sm:$0xff]
    %v1183 = vld [vmem:[#allocation8 + $0xb0] sm:$0xff]
    %v1184 = vld [vmem:[#allocation8 + $0xb8] sm:$0xff]
    %v1185 = vld [vmem:[#allocation8 + $0xc0] sm:$0xff]
    %v1186 = vld [vmem:[#allocation8 + $0xc8] sm:$0xff]
    %v1187 = vld [vmem:[#allocation8 + $0xd0] sm:$0xff]
    %v1188 = vld [vmem:[#allocation8 + $0xd8] sm:$0xff]
    %v1189 = vld [vmem:[#allocation8 + $0xe0] sm:$0xff]
    %v1190 = vld [vmem:[#allocation8 + $0xe8] sm:$0xff]
    %v1191 = vld [vmem:[#allocation8 + $0xf0] sm:$0xff]
    %v1192 = vld [vmem:[#allocation8 + $0xf8] sm:$0xff]
    %v1193 = vld [vmem:[#allocation8 + $0x100] sm:$0xff]
    %v1194 = vld [vmem:[#allocation8 + $0x108] sm:$0xff]
    %v1195 = vld [vmem:[#allocation8 + $0x110] sm:$0xff]
    %v1196 = vld [vmem:[#allocation8 + $0x118] sm:$0xff]
    %v1197 = vld [vmem:[#allocation8 + $0x120] sm:$0xff]
    %v1198 = vld [vmem:[#allocation8 + $0x128] sm:$0xff]
    %v1199 = vld [vmem:[#allocation8 + $0x130] sm:$0xff]
    %v1200 = vld [vmem:[#allocation8 + $0x138] sm:$0xff]
    %v1201 = vld [vmem:[#allocation8 + $0x140] sm:$0xff]
    %v1202 = vld [vmem:[#allocation8 + $0x148] sm:$0xff]
    %v1203 = vld [vmem:[#allocation8 + $0x150] sm:$0xff]
    %v1204 = vld [vmem:[#allocation8 + $0x158] sm:$0xff]
    %v1205 = vld [vmem:[#allocation8 + $0x160] sm:$0xff]
    %v1206 = vld [vmem:[#allocation8 + $0x168] sm:$0xff]
    %v1207 = vld [vmem:[#allocation8 + $0x170] sm:$0xff]
    %v1208 = vld [vmem:[#allocation8 + $0x178] sm:$0xff]
    %v1209 = vld [vmem:[#allocation8 + $0x180] sm:$0xff]
    %v1210 = vld [vmem:[#allocation8 + $0x188] sm:$0xff]
    %v1211 = vld [vmem:[#allocation8 + $0x190] sm:$0xff]
    %v1212 = vld [vmem:[#allocation8 + $0x198] sm:$0xff]
    %v1213 = vld [vmem:[#allocation8 + $0x1a0] sm:$0xff]
    %v1214 = vld [vmem:[#allocation8 + $0x1a8] sm:$0xff]
    %v1215 = vld [vmem:[#allocation8 + $0x1b0] sm:$0xff]
    %v1216 = vld [vmem:[#allocation8 + $0x1b8] sm:$0xff]
    %v1217 = vld [vmem:[#allocation8 + $0x1c0] sm:$0xff]
    %v1218 = vld [vmem:[#allocation8 + $0x1c8] sm:$0xff]
    %v1219 = vld [vmem:[#allocation8 + $0x1d0] sm:$0xff]
    %v1220 = vld [vmem:[#allocation8 + $0x1d8] sm:$0xff]
    %v1221 = vld [vmem:[#allocation8 + $0x1e0] sm:$0xff]
    %v1222 = vld [vmem:[#allocation8 + $0x1e8] sm:$0xff]
    %v1223 = vld [vmem:[#allocation8 + $0x1f0] sm:$0xff]
    %v1224 = vld [vmem:[#allocation8 + $0x1f8] sm:$0xff]
    %1225 = vmatprep.subr.mxu0 %v1162
    %1226 = vmatpush1.msra.mxu0 %v1161
    %1227 = vmatprep.subr.mxu0 %v1166
    %1228 = vmatpush1.msra.mxu0 %v1165
    %1229 = vmatprep.subr.mxu0 %v1170
    %1230 = vmatpush1.msra.mxu0 %v1169
    %1231 = vmatprep.subr.mxu0 %v1174
    %1232 = vmatpush1.msra.mxu0 %v1173
    %1233 = vmatprep.subr.mxu0 %v1178
    %1234 = vmatpush1.msra.mxu0 %v1177
    %1235 = vmatprep.subr.mxu0 %v1182
    %1236 = vmatpush1.msra.mxu0 %v1181
    %1237 = vmatprep.subr.mxu0 %v1186
    %1238 = vmatpush1.msra.mxu0 %v1185
    %1239 = vmatprep.subr.mxu0 %v1190
    %1240 = vmatpush1.msra.mxu0 %v1189
    %1241 = vmatprep.subr.mxu0 %v1194
    %1242 = vmatpush1.msra.mxu0 %v1193
    %1243 = vmatprep.subr.mxu0 %v1198
    %1244 = vmatpush1.msra.mxu0 %v1197
    %1245 = vmatprep.subr.mxu0 %v1202
    %1246 = vmatpush1.msra.mxu0 %v1201
    %1247 = vmatprep.subr.mxu0 %v1206
    %1248 = vmatpush1.msra.mxu0 %v1205
    %1249 = vmatprep.subr.mxu0 %v1210
    %1250 = vmatpush1.msra.mxu0 %v1209
    %1251 = vmatprep.subr.mxu0 %v1214
    %1252 = vmatpush1.msra.mxu0 %v1213
    %1253 = vmatprep.subr.mxu0 %v1218
    %1254 = vmatpush1.msra.mxu0 %v1217
    %1255 = vmatprep.subr.mxu0 %v1222
    %1256 = vmatpush1.msra.mxu0 %v1221
    %1257 = vmatprep.subr.mxu0 0.0
    %1258 = vmatpush1.msra.mxu0 0.0
    %1259 = vmatprep.subr.mxu0 0.0
    %1260 = vmatpush1.msra.mxu0 0.0
    %1261 = vmatprep.subr.mxu0 0.0
    %1262 = vmatpush1.msra.mxu0 0.0
    %1263 = vmatprep.subr.mxu0 0.0
    %1264 = vmatpush1.msra.mxu0 0.0
    %1265 = vmatprep.subr.mxu0 0.0
    %1266 = vmatpush1.msra.mxu0 0.0
    %1267 = vmatprep.subr.mxu0 0.0
    %1268 = vmatpush1.msra.mxu0 0.0
    %1269 = vmatprep.subr.mxu0 0.0
    %1270 = vmatpush1.msra.mxu0 0.0
    %1271 = vmatprep.subr.mxu0 0.0
    %1272 = vmatpush1.msra.mxu0 0.0
    %1273 = vmatprep.subr.mxu0 0.0
    %1274 = vmatpush1.msra.mxu0 0.0
    %1275 = vmatprep.subr.mxu0 0.0
    %1276 = vmatpush1.msra.mxu0 0.0
    %1277 = vmatprep.subr.mxu0 0.0
    %1278 = vmatpush1.msra.mxu0 0.0
    %1279 = vmatprep.subr.mxu0 0.0
    %1280 = vmatpush1.msra.mxu0 0.0
    %1281 = vmatprep.subr.mxu0 0.0
    %1282 = vmatpush1.msra.mxu0 0.0
    %1283 = vmatprep.subr.mxu0 0.0
    %1284 = vmatpush1.msra.mxu0 0.0
    %1285 = vmatprep.subr.mxu0 0.0
    %1286 = vmatpush1.msra.mxu0 0.0
    %1287 = vmatprep.subr.mxu0 0.0
    %1288 = vmatpush1.msra.mxu0 0.0
    %1289 = vmatprep.mubr.f32.mxu0 0.0
    %1290 = vmatmul.mubr.f32.gmra.mrb[0].mxu0 %v1151
    %v1291 = vpop.f32.mrb[0].mxu0
    %v1292 = vadd.f32 0.0, %v1291
    %v1293 = vpop.f32.mrb[0].mxu0
    %v1294 = vadd.f32 0.0, %v1293
    %1295 = vdwg.mxu0
    %1296 = vmatprep.subr.mxu0 %v1164
    %1297 = vmatpush1.msra.mxu0 %v1163
    %1298 = vmatprep.subr.mxu0 %v1168
    %1299 = vmatpush1.msra.mxu0 %v1167
    %1300 = vmatprep.subr.mxu0 %v1172
    %1301 = vmatpush1.msra.mxu0 %v1171
    %1302 = vmatprep.subr.mxu0 %v1176
    %1303 = vmatpush1.msra.mxu0 %v1175
    %1304 = vmatprep.subr.mxu0 %v1180
    %1305 = vmatpush1.msra.mxu0 %v1179
    %1306 = vmatprep.subr.mxu0 %v1184
    %1307 = vmatpush1.msra.mxu0 %v1183
    %1308 = vmatprep.subr.mxu0 %v1188
    %1309 = vmatpush1.msra.mxu0 %v1187
    %1310 = vmatprep.subr.mxu0 %v1192
    %1311 = vmatpush1.msra.mxu0 %v1191
    %1312 = vmatprep.subr.mxu0 %v1196
    %1313 = vmatpush1.msra.mxu0 %v1195
    %1314 = vmatprep.subr.mxu0 %v1200
    %1315 = vmatpush1.msra.mxu0 %v1199
    %1316 = vmatprep.subr.mxu0 %v1204
    %1317 = vmatpush1.msra.mxu0 %v1203
    %1318 = vmatprep.subr.mxu0 %v1208
    %1319 = vmatpush1.msra.mxu0 %v1207
    %1320 = vmatprep.subr.mxu0 %v1212
    %1321 = vmatpush1.msra.mxu0 %v1211
    %1322 = vmatprep.subr.mxu0 %v1216
    %1323 = vmatpush1.msra.mxu0 %v1215
    %1324 = vmatprep.subr.mxu0 %v1220
    %1325 = vmatpush1.msra.mxu0 %v1219
    %1326 = vmatprep.subr.mxu0 %v1224
    %1327 = vmatpush1.msra.mxu0 %v1223
    %1328 = vmatprep.subr.mxu0 0.0
    %1329 = vmatpush1.msra.mxu0 0.0
    %1330 = vmatprep.subr.mxu0 0.0
    %1331 = vmatpush1.msra.mxu0 0.0
    %1332 = vmatprep.subr.mxu0 0.0
    %1333 = vmatpush1.msra.mxu0 0.0
    %1334 = vmatprep.subr.mxu0 0.0
    %1335 = vmatpush1.msra.mxu0 0.0
    %1336 = vmatprep.subr.mxu0 0.0
    %1337 = vmatpush1.msra.mxu0 0.0
    %1338 = vmatprep.subr.mxu0 0.0
    %1339 = vmatpush1.msra.mxu0 0.0
    %1340 = vmatprep.subr.mxu0 0.0
    %1341 = vmatpush1.msra.mxu0 0.0
    %1342 = vmatprep.subr.mxu0 0.0
    %1343 = vmatpush1.msra.mxu0 0.0
    %1344 = vmatprep.subr.mxu0 0.0
    %1345 = vmatpush1.msra.mxu0 0.0
    %1346 = vmatprep.subr.mxu0 0.0
    %1347 = vmatpush1.msra.mxu0 0.0
    %1348 = vmatprep.subr.mxu0 0.0
    %1349 = vmatpush1.msra.mxu0 0.0
    %1350 = vmatprep.subr.mxu0 0.0
    %1351 = vmatpush1.msra.mxu0 0.0
    %1352 = vmatprep.subr.mxu0 0.0
    %1353 = vmatpush1.msra.mxu0 0.0
    %1354 = vmatprep.subr.mxu0 0.0
    %1355 = vmatpush1.msra.mxu0 0.0
    %1356 = vmatprep.subr.mxu0 0.0
    %1357 = vmatpush1.msra.mxu0 0.0
    %1358 = vmatprep.subr.mxu0 0.0
    %1359 = vmatpush1.msra.mxu0 0.0
    %1360 = vmatprep.mubr.f32.mxu0 0.0
    %1361 = vmatmul.mubr.f32.gmra.mrb[0].mxu0 %v1151
    %v1362 = vpop.f32.mrb[0].mxu0
    %v1363 = vadd.f32 0.0, %v1362
    %v1364 = vpop.f32.mrb[0].mxu0
    %v1365 = vadd.f32 0.0, %v1364
    %1366 = vdwg.mxu0
    %v1367 = vadd.f32 %v1157, %v1292
    %v1368 = vadd.f32 %v1158, %v1294
    %v1369 = vadd.f32 %v1159, %v1363
    %v1370 = vadd.f32 %v1160, %v1365
    %v1371 = vxor.u32 %v1367, 2147483648
    %v1372 = vmul.f32 %v1371, 1.442695
    %v1373 = vpow.pop %v1372
    %v1374 = vadd.f32 %v1373, 1.0
    %v1375 = vrcp.pop %v1374
    %v1376 = vmul.f32 1.0, %v1375
    %v1377 = vxor.u32 %v1368, 2147483648
    %v1378 = vmul.f32 %v1377, 1.442695
    %v1379 = vpow.pop %v1378
    %v1380 = vadd.f32 %v1379, 1.0
    %v1381 = vrcp.pop %v1380
    %v1382 = vmul.f32 1.0, %v1381
    %v1383 = vtanh.pop %v1370
    %v1384 = vmul.f32 %v1382, %v1143
    %v1385 = vmul.f32 %v1376, %v1383
    %v1386 = vadd.f32 %v1384, %v1385
    %v1387 = vxor.u32 %v1369, 2147483648
    %v1388 = vmul.f32 %v1387, 1.442695
    %v1389 = vpow.pop %v1388
    %v1390 = vadd.f32 %v1389, 1.0
    %v1391 = vrcp.pop %v1390
    %v1392 = vmul.f32 1.0, %v1391
    %v1393 = vtanh.pop %v1386
    %v1394 = vmul.f32 %v1392, %v1393
    %s1395 = scalar_lea.vmem [#allocation11], 24
    %1396 = vst [vmem:[%s1395] sm:$0xff] %v1394
    %s1397 = smul.u32 4, 4
    %s1398 = smul.addr %s1397, 8
    %s1399 = scalar_lea.vmem [#allocation2], %s1398
    %v1400 = vld [vmem:[%s1399] sm:$0xff]
    %v1401 = vld [vmem:[%s1399 + $0x8] sm:$0xff]
    %v1402 = vld [vmem:[%s1399 + $0x10] sm:$0xff]
    %v1403 = vld [vmem:[%s1399 + $0x18] sm:$0xff]
    %v1404 = vld [vmem:[#allocation8] sm:$0xff]
    %v1405 = vld [vmem:[#allocation8 + $0x8] sm:$0xff]
    %v1406 = vld [vmem:[#allocation8 + $0x10] sm:$0xff]
    %v1407 = vld [vmem:[#allocation8 + $0x18] sm:$0xff]
    %v1408 = vld [vmem:[#allocation8 + $0x20] sm:$0xff]
    %v1409 = vld [vmem:[#allocation8 + $0x28] sm:$0xff]
    %v1410 = vld [vmem:[#allocation8 + $0x30] sm:$0xff]
    %v1411 = vld [vmem:[#allocation8 + $0x38] sm:$0xff]
    %v1412 = vld [vmem:[#allocation8 + $0x40] sm:$0xff]
    %v1413 = vld [vmem:[#allocation8 + $0x48] sm:$0xff]
    %v1414 = vld [vmem:[#allocation8 + $0x50] sm:$0xff]
    %v1415 = vld [vmem:[#allocation8 + $0x58] sm:$0xff]
    %v1416 = vld [vmem:[#allocation8 + $0x60] sm:$0xff]
    %v1417 = vld [vmem:[#allocation8 + $0x68] sm:$0xff]
    %v1418 = vld [vmem:[#allocation8 + $0x70] sm:$0xff]
    %v1419 = vld [vmem:[#allocation8 + $0x78] sm:$0xff]
    %v1420 = vld [vmem:[#allocation8 + $0x80] sm:$0xff]
    %v1421 = vld [vmem:[#allocation8 + $0x88] sm:$0xff]
    %v1422 = vld [vmem:[#allocation8 + $0x90] sm:$0xff]
    %v1423 = vld [vmem:[#allocation8 + $0x98] sm:$0xff]
    %v1424 = vld [vmem:[#allocation8 + $0xa0] sm:$0xff]
    %v1425 = vld [vmem:[#allocation8 + $0xa8] sm:$0xff]
    %v1426 = vld [vmem:[#allocation8 + $0xb0] sm:$0xff]
    %v1427 = vld [vmem:[#allocation8 + $0xb8] sm:$0xff]
    %v1428 = vld [vmem:[#allocation8 + $0xc0] sm:$0xff]
    %v1429 = vld [vmem:[#allocation8 + $0xc8] sm:$0xff]
    %v1430 = vld [vmem:[#allocation8 + $0xd0] sm:$0xff]
    %v1431 = vld [vmem:[#allocation8 + $0xd8] sm:$0xff]
    %v1432 = vld [vmem:[#allocation8 + $0xe0] sm:$0xff]
    %v1433 = vld [vmem:[#allocation8 + $0xe8] sm:$0xff]
    %v1434 = vld [vmem:[#allocation8 + $0xf0] sm:$0xff]
    %v1435 = vld [vmem:[#allocation8 + $0xf8] sm:$0xff]
    %v1436 = vld [vmem:[#allocation8 + $0x100] sm:$0xff]
    %v1437 = vld [vmem:[#allocation8 + $0x108] sm:$0xff]
    %v1438 = vld [vmem:[#allocation8 + $0x110] sm:$0xff]
    %v1439 = vld [vmem:[#allocation8 + $0x118] sm:$0xff]
    %v1440 = vld [vmem:[#allocation8 + $0x120] sm:$0xff]
    %v1441 = vld [vmem:[#allocation8 + $0x128] sm:$0xff]
    %v1442 = vld [vmem:[#allocation8 + $0x130] sm:$0xff]
    %v1443 = vld [vmem:[#allocation8 + $0x138] sm:$0xff]
    %v1444 = vld [vmem:[#allocation8 + $0x140] sm:$0xff]
    %v1445 = vld [vmem:[#allocation8 + $0x148] sm:$0xff]
    %v1446 = vld [vmem:[#allocation8 + $0x150] sm:$0xff]
    %v1447 = vld [vmem:[#allocation8 + $0x158] sm:$0xff]
    %v1448 = vld [vmem:[#allocation8 + $0x160] sm:$0xff]
    %v1449 = vld [vmem:[#allocation8 + $0x168] sm:$0xff]
    %v1450 = vld [vmem:[#allocation8 + $0x170] sm:$0xff]
    %v1451 = vld [vmem:[#allocation8 + $0x178] sm:$0xff]
    %v1452 = vld [vmem:[#allocation8 + $0x180] sm:$0xff]
    %v1453 = vld [vmem:[#allocation8 + $0x188] sm:$0xff]
    %v1454 = vld [vmem:[#allocation8 + $0x190] sm:$0xff]
    %v1455 = vld [vmem:[#allocation8 + $0x198] sm:$0xff]
    %v1456 = vld [vmem:[#allocation8 + $0x1a0] sm:$0xff]
    %v1457 = vld [vmem:[#allocation8 + $0x1a8] sm:$0xff]
    %v1458 = vld [vmem:[#allocation8 + $0x1b0] sm:$0xff]
    %v1459 = vld [vmem:[#allocation8 + $0x1b8] sm:$0xff]
    %v1460 = vld [vmem:[#allocation8 + $0x1c0] sm:$0xff]
    %v1461 = vld [vmem:[#allocation8 + $0x1c8] sm:$0xff]
    %v1462 = vld [vmem:[#allocation8 + $0x1d0] sm:$0xff]
    %v1463 = vld [vmem:[#allocation8 + $0x1d8] sm:$0xff]
    %v1464 = vld [vmem:[#allocation8 + $0x1e0] sm:$0xff]
    %v1465 = vld [vmem:[#allocation8 + $0x1e8] sm:$0xff]
    %v1466 = vld [vmem:[#allocation8 + $0x1f0] sm:$0xff]
    %v1467 = vld [vmem:[#allocation8 + $0x1f8] sm:$0xff]
    %1468 = vmatprep.subr.mxu0 %v1405
    %1469 = vmatpush1.msra.mxu0 %v1404
    %1470 = vmatprep.subr.mxu0 %v1409
    %1471 = vmatpush1.msra.mxu0 %v1408
    %1472 = vmatprep.subr.mxu0 %v1413
    %1473 = vmatpush1.msra.mxu0 %v1412
    %1474 = vmatprep.subr.mxu0 %v1417
    %1475 = vmatpush1.msra.mxu0 %v1416
    %1476 = vmatprep.subr.mxu0 %v1421
    %1477 = vmatpush1.msra.mxu0 %v1420
    %1478 = vmatprep.subr.mxu0 %v1425
    %1479 = vmatpush1.msra.mxu0 %v1424
    %1480 = vmatprep.subr.mxu0 %v1429
    %1481 = vmatpush1.msra.mxu0 %v1428
    %1482 = vmatprep.subr.mxu0 %v1433
    %1483 = vmatpush1.msra.mxu0 %v1432
    %1484 = vmatprep.subr.mxu0 %v1437
    %1485 = vmatpush1.msra.mxu0 %v1436
    %1486 = vmatprep.subr.mxu0 %v1441
    %1487 = vmatpush1.msra.mxu0 %v1440
    %1488 = vmatprep.subr.mxu0 %v1445
    %1489 = vmatpush1.msra.mxu0 %v1444
    %1490 = vmatprep.subr.mxu0 %v1449
    %1491 = vmatpush1.msra.mxu0 %v1448
    %1492 = vmatprep.subr.mxu0 %v1453
    %1493 = vmatpush1.msra.mxu0 %v1452
    %1494 = vmatprep.subr.mxu0 %v1457
    %1495 = vmatpush1.msra.mxu0 %v1456
    %1496 = vmatprep.subr.mxu0 %v1461
    %1497 = vmatpush1.msra.mxu0 %v1460
    %1498 = vmatprep.subr.mxu0 %v1465
    %1499 = vmatpush1.msra.mxu0 %v1464
    %1500 = vmatprep.subr.mxu0 0.0
    %1501 = vmatpush1.msra.mxu0 0.0
    %1502 = vmatprep.subr.mxu0 0.0
    %1503 = vmatpush1.msra.mxu0 0.0
    %1504 = vmatprep.subr.mxu0 0.0
    %1505 = vmatpush1.msra.mxu0 0.0
    %1506 = vmatprep.subr.mxu0 0.0
    %1507 = vmatpush1.msra.mxu0 0.0
    %1508 = vmatprep.subr.mxu0 0.0
    %1509 = vmatpush1.msra.mxu0 0.0
    %1510 = vmatprep.subr.mxu0 0.0
    %1511 = vmatpush1.msra.mxu0 0.0
    %1512 = vmatprep.subr.mxu0 0.0
    %1513 = vmatpush1.msra.mxu0 0.0
    %1514 = vmatprep.subr.mxu0 0.0
    %1515 = vmatpush1.msra.mxu0 0.0
    %1516 = vmatprep.subr.mxu0 0.0
    %1517 = vmatpush1.msra.mxu0 0.0
    %1518 = vmatprep.subr.mxu0 0.0
    %1519 = vmatpush1.msra.mxu0 0.0
    %1520 = vmatprep.subr.mxu0 0.0
    %1521 = vmatpush1.msra.mxu0 0.0
    %1522 = vmatprep.subr.mxu0 0.0
    %1523 = vmatpush1.msra.mxu0 0.0
    %1524 = vmatprep.subr.mxu0 0.0
    %1525 = vmatpush1.msra.mxu0 0.0
    %1526 = vmatprep.subr.mxu0 0.0
    %1527 = vmatpush1.msra.mxu0 0.0
    %1528 = vmatprep.subr.mxu0 0.0
    %1529 = vmatpush1.msra.mxu0 0.0
    %1530 = vmatprep.subr.mxu0 0.0
    %1531 = vmatpush1.msra.mxu0 0.0
    %1532 = vmatprep.mubr.f32.mxu0 0.0
    %1533 = vmatmul.mubr.f32.gmra.mrb[0].mxu0 %v1394
    %v1534 = vpop.f32.mrb[0].mxu0
    %v1535 = vadd.f32 0.0, %v1534
    %v1536 = vpop.f32.mrb[0].mxu0
    %v1537 = vadd.f32 0.0, %v1536
    %1538 = vdwg.mxu0
    %1539 = vmatprep.subr.mxu0 %v1407
    %1540 = vmatpush1.msra.mxu0 %v1406
    %1541 = vmatprep.subr.mxu0 %v1411
    %1542 = vmatpush1.msra.mxu0 %v1410
    %1543 = vmatprep.subr.mxu0 %v1415
    %1544 = vmatpush1.msra.mxu0 %v1414
    %1545 = vmatprep.subr.mxu0 %v1419
    %1546 = vmatpush1.msra.mxu0 %v1418
    %1547 = vmatprep.subr.mxu0 %v1423
    %1548 = vmatpush1.msra.mxu0 %v1422
    %1549 = vmatprep.subr.mxu0 %v1427
    %1550 = vmatpush1.msra.mxu0 %v1426
    %1551 = vmatprep.subr.mxu0 %v1431
    %1552 = vmatpush1.msra.mxu0 %v1430
    %1553 = vmatprep.subr.mxu0 %v1435
    %1554 = vmatpush1.msra.mxu0 %v1434
    %1555 = vmatprep.subr.mxu0 %v1439
    %1556 = vmatpush1.msra.mxu0 %v1438
    %1557 = vmatprep.subr.mxu0 %v1443
    %1558 = vmatpush1.msra.mxu0 %v1442
    %1559 = vmatprep.subr.mxu0 %v1447
    %1560 = vmatpush1.msra.mxu0 %v1446
    %1561 = vmatprep.subr.mxu0 %v1451
    %1562 = vmatpush1.msra.mxu0 %v1450
    %1563 = vmatprep.subr.mxu0 %v1455
    %1564 = vmatpush1.msra.mxu0 %v1454
    %1565 = vmatprep.subr.mxu0 %v1459
    %1566 = vmatpush1.msra.mxu0 %v1458
    %1567 = vmatprep.subr.mxu0 %v1463
    %1568 = vmatpush1.msra.mxu0 %v1462
    %1569 = vmatprep.subr.mxu0 %v1467
    %1570 = vmatpush1.msra.mxu0 %v1466
    %1571 = vmatprep.subr.mxu0 0.0
    %1572 = vmatpush1.msra.mxu0 0.0
    %1573 = vmatprep.subr.mxu0 0.0
    %1574 = vmatpush1.msra.mxu0 0.0
    %1575 = vmatprep.subr.mxu0 0.0
    %1576 = vmatpush1.msra.mxu0 0.0
    %1577 = vmatprep.subr.mxu0 0.0
    %1578 = vmatpush1.msra.mxu0 0.0
    %1579 = vmatprep.subr.mxu0 0.0
    %1580 = vmatpush1.msra.mxu0 0.0
    %1581 = vmatprep.subr.mxu0 0.0
    %1582 = vmatpush1.msra.mxu0 0.0
    %1583 = vmatprep.subr.mxu0 0.0
    %1584 = vmatpush1.msra.mxu0 0.0
    %1585 = vmatprep.subr.mxu0 0.0
    %1586 = vmatpush1.msra.mxu0 0.0
    %1587 = vmatprep.subr.mxu0 0.0
    %1588 = vmatpush1.msra.mxu0 0.0
    %1589 = vmatprep.subr.mxu0 0.0
    %1590 = vmatpush1.msra.mxu0 0.0
    %1591 = vmatprep.subr.mxu0 0.0
    %1592 = vmatpush1.msra.mxu0 0.0
    %1593 = vmatprep.subr.mxu0 0.0
    %1594 = vmatpush1.msra.mxu0 0.0
    %1595 = vmatprep.subr.mxu0 0.0
    %1596 = vmatpush1.msra.mxu0 0.0
    %1597 = vmatprep.subr.mxu0 0.0
    %1598 = vmatpush1.msra.mxu0 0.0
    %1599 = vmatprep.subr.mxu0 0.0
    %1600 = vmatpush1.msra.mxu0 0.0
    %1601 = vmatprep.subr.mxu0 0.0
    %1602 = vmatpush1.msra.mxu0 0.0
    %1603 = vmatprep.mubr.f32.mxu0 0.0
    %1604 = vmatmul.mubr.f32.gmra.mrb[0].mxu0 %v1394
    %v1605 = vpop.f32.mrb[0].mxu0
    %v1606 = vadd.f32 0.0, %v1605
    %v1607 = vpop.f32.mrb[0].mxu0
    %v1608 = vadd.f32 0.0, %v1607
    %1609 = vdwg.mxu0
    %v1610 = vadd.f32 %v1400, %v1535
    %v1611 = vadd.f32 %v1401, %v1537
    %v1612 = vadd.f32 %v1402, %v1606
    %v1613 = vadd.f32 %v1403, %v1608
    %v1614 = vxor.u32 %v1610, 2147483648
    %v1615 = vmul.f32 %v1614, 1.442695
    %v1616 = vpow.pop %v1615
    %v1617 = vadd.f32 %v1616, 1.0
    %v1618 = vrcp.pop %v1617
    %v1619 = vmul.f32 1.0, %v1618
    %v1620 = vxor.u32 %v1611, 2147483648
    %v1621 = vmul.f32 %v1620, 1.442695
    %v1622 = vpow.pop %v1621
    %v1623 = vadd.f32 %v1622, 1.0
    %v1624 = vrcp.pop %v1623
    %v1625 = vmul.f32 1.0, %v1624
    %v1626 = vtanh.pop %v1613
    %v1627 = vmul.f32 %v1625, %v1386
    %v1628 = vmul.f32 %v1619, %v1626
    %v1629 = vadd.f32 %v1627, %v1628
    %v1630 = vxor.u32 %v1612, 2147483648
    %v1631 = vmul.f32 %v1630, 1.442695
    %v1632 = vpow.pop %v1631
    %v1633 = vadd.f32 %v1632, 1.0
    %v1634 = vrcp.pop %v1633
    %v1635 = vmul.f32 1.0, %v1634
    %v1636 = vtanh.pop %v1629
    %v1637 = vmul.f32 %v1635, %v1636
    %s1638 = scalar_lea.vmem [#allocation11], 32
    %1639 = vst [vmem:[%s1638] sm:$0xff] %v1637
    %s1640 = smul.u32 5, 4
    %s1641 = smul.addr %s1640, 8
    %s1642 = scalar_lea.vmem [#allocation2], %s1641
    %v1643 = vld [vmem:[%s1642] sm:$0xff]
    %v1644 = vld [vmem:[%s1642 + $0x8] sm:$0xff]
    %v1645 = vld [vmem:[%s1642 + $0x10] sm:$0xff]
    %v1646 = vld [vmem:[%s1642 + $0x18] sm:$0xff]
    %v1647 = vld [vmem:[#allocation8] sm:$0xff]
    %v1648 = vld [vmem:[#allocation8 + $0x8] sm:$0xff]
    %v1649 = vld [vmem:[#allocation8 + $0x10] sm:$0xff]
    %v1650 = vld [vmem:[#allocation8 + $0x18] sm:$0xff]
    %v1651 = vld [vmem:[#allocation8 + $0x20] sm:$0xff]
    %v1652 = vld [vmem:[#allocation8 + $0x28] sm:$0xff]
    %v1653 = vld [vmem:[#allocation8 + $0x30] sm:$0xff]
    %v1654 = vld [vmem:[#allocation8 + $0x38] sm:$0xff]
    %v1655 = vld [vmem:[#allocation8 + $0x40] sm:$0xff]
    %v1656 = vld [vmem:[#allocation8 + $0x48] sm:$0xff]
    %v1657 = vld [vmem:[#allocation8 + $0x50] sm:$0xff]
    %v1658 = vld [vmem:[#allocation8 + $0x58] sm:$0xff]
    %v1659 = vld [vmem:[#allocation8 + $0x60] sm:$0xff]
    %v1660 = vld [vmem:[#allocation8 + $0x68] sm:$0xff]
    %v1661 = vld [vmem:[#allocation8 + $0x70] sm:$0xff]
    %v1662 = vld [vmem:[#allocation8 + $0x78] sm:$0xff]
    %v1663 = vld [vmem:[#allocation8 + $0x80] sm:$0xff]
    %v1664 = vld [vmem:[#allocation8 + $0x88] sm:$0xff]
    %v1665 = vld [vmem:[#allocation8 + $0x90] sm:$0xff]
    %v1666 = vld [vmem:[#allocation8 + $0x98] sm:$0xff]
    %v1667 = vld [vmem:[#allocation8 + $0xa0] sm:$0xff]
    %v1668 = vld [vmem:[#allocation8 + $0xa8] sm:$0xff]
    %v1669 = vld [vmem:[#allocation8 + $0xb0] sm:$0xff]
    %v1670 = vld [vmem:[#allocation8 + $0xb8] sm:$0xff]
    %v1671 = vld [vmem:[#allocation8 + $0xc0] sm:$0xff]
    %v1672 = vld [vmem:[#allocation8 + $0xc8] sm:$0xff]
    %v1673 = vld [vmem:[#allocation8 + $0xd0] sm:$0xff]
    %v1674 = vld [vmem:[#allocation8 + $0xd8] sm:$0xff]
    %v1675 = vld [vmem:[#allocation8 + $0xe0] sm:$0xff]
    %v1676 = vld [vmem:[#allocation8 + $0xe8] sm:$0xff]
    %v1677 = vld [vmem:[#allocation8 + $0xf0] sm:$0xff]
    %v1678 = vld [vmem:[#allocation8 + $0xf8] sm:$0xff]
    %v1679 = vld [vmem:[#allocation8 + $0x100] sm:$0xff]
    %v1680 = vld [vmem:[#allocation8 + $0x108] sm:$0xff]
    %v1681 = vld [vmem:[#allocation8 + $0x110] sm:$0xff]
    %v1682 = vld [vmem:[#allocation8 + $0x118] sm:$0xff]
    %v1683 = vld [vmem:[#allocation8 + $0x120] sm:$0xff]
    %v1684 = vld [vmem:[#allocation8 + $0x128] sm:$0xff]
    %v1685 = vld [vmem:[#allocation8 + $0x130] sm:$0xff]
    %v1686 = vld [vmem:[#allocation8 + $0x138] sm:$0xff]
    %v1687 = vld [vmem:[#allocation8 + $0x140] sm:$0xff]
    %v1688 = vld [vmem:[#allocation8 + $0x148] sm:$0xff]
    %v1689 = vld [vmem:[#allocation8 + $0x150] sm:$0xff]
    %v1690 = vld [vmem:[#allocation8 + $0x158] sm:$0xff]
    %v1691 = vld [vmem:[#allocation8 + $0x160] sm:$0xff]
    %v1692 = vld [vmem:[#allocation8 + $0x168] sm:$0xff]
    %v1693 = vld [vmem:[#allocation8 + $0x170] sm:$0xff]
    %v1694 = vld [vmem:[#allocation8 + $0x178] sm:$0xff]
    %v1695 = vld [vmem:[#allocation8 + $0x180] sm:$0xff]
    %v1696 = vld [vmem:[#allocation8 + $0x188] sm:$0xff]
    %v1697 = vld [vmem:[#allocation8 + $0x190] sm:$0xff]
    %v1698 = vld [vmem:[#allocation8 + $0x198] sm:$0xff]
    %v1699 = vld [vmem:[#allocation8 + $0x1a0] sm:$0xff]
    %v1700 = vld [vmem:[#allocation8 + $0x1a8] sm:$0xff]
    %v1701 = vld [vmem:[#allocation8 + $0x1b0] sm:$0xff]
    %v1702 = vld [vmem:[#allocation8 + $0x1b8] sm:$0xff]
    %v1703 = vld [vmem:[#allocation8 + $0x1c0] sm:$0xff]
    %v1704 = vld [vmem:[#allocation8 + $0x1c8] sm:$0xff]
    %v1705 = vld [vmem:[#allocation8 + $0x1d0] sm:$0xff]
    %v1706 = vld [vmem:[#allocation8 + $0x1d8] sm:$0xff]
    %v1707 = vld [vmem:[#allocation8 + $0x1e0] sm:$0xff]
    %v1708 = vld [vmem:[#allocation8 + $0x1e8] sm:$0xff]
    %v1709 = vld [vmem:[#allocation8 + $0x1f0] sm:$0xff]
    %v1710 = vld [vmem:[#allocation8 + $0x1f8] sm:$0xff]
    %1711 = vmatprep.subr.mxu0 %v1648
    %1712 = vmatpush1.msra.mxu0 %v1647
    %1713 = vmatprep.subr.mxu0 %v1652
    %1714 = vmatpush1.msra.mxu0 %v1651
    %1715 = vmatprep.subr.mxu0 %v1656
    %1716 = vmatpush1.msra.mxu0 %v1655
    %1717 = vmatprep.subr.mxu0 %v1660
    %1718 = vmatpush1.msra.mxu0 %v1659
    %1719 = vmatprep.subr.mxu0 %v1664
    %1720 = vmatpush1.msra.mxu0 %v1663
    %1721 = vmatprep.subr.mxu0 %v1668
    %1722 = vmatpush1.msra.mxu0 %v1667
    %1723 = vmatprep.subr.mxu0 %v1672
    %1724 = vmatpush1.msra.mxu0 %v1671
    %1725 = vmatprep.subr.mxu0 %v1676
    %1726 = vmatpush1.msra.mxu0 %v1675
    %1727 = vmatprep.subr.mxu0 %v1680
    %1728 = vmatpush1.msra.mxu0 %v1679
    %1729 = vmatprep.subr.mxu0 %v1684
    %1730 = vmatpush1.msra.mxu0 %v1683
    %1731 = vmatprep.subr.mxu0 %v1688
    %1732 = vmatpush1.msra.mxu0 %v1687
    %1733 = vmatprep.subr.mxu0 %v1692
    %1734 = vmatpush1.msra.mxu0 %v1691
    %1735 = vmatprep.subr.mxu0 %v1696
    %1736 = vmatpush1.msra.mxu0 %v1695
    %1737 = vmatprep.subr.mxu0 %v1700
    %1738 = vmatpush1.msra.mxu0 %v1699
    %1739 = vmatprep.subr.mxu0 %v1704
    %1740 = vmatpush1.msra.mxu0 %v1703
    %1741 = vmatprep.subr.mxu0 %v1708
    %1742 = vmatpush1.msra.mxu0 %v1707
    %1743 = vmatprep.subr.mxu0 0.0
    %1744 = vmatpush1.msra.mxu0 0.0
    %1745 = vmatprep.subr.mxu0 0.0
    %1746 = vmatpush1.msra.mxu0 0.0
    %1747 = vmatprep.subr.mxu0 0.0
    %1748 = vmatpush1.msra.mxu0 0.0
    %1749 = vmatprep.subr.mxu0 0.0
    %1750 = vmatpush1.msra.mxu0 0.0
    %1751 = vmatprep.subr.mxu0 0.0
    %1752 = vmatpush1.msra.mxu0 0.0
    %1753 = vmatprep.subr.mxu0 0.0
    %1754 = vmatpush1.msra.mxu0 0.0
    %1755 = vmatprep.subr.mxu0 0.0
    %1756 = vmatpush1.msra.mxu0 0.0
    %1757 = vmatprep.subr.mxu0 0.0
    %1758 = vmatpush1.msra.mxu0 0.0
    %1759 = vmatprep.subr.mxu0 0.0
    %1760 = vmatpush1.msra.mxu0 0.0
    %1761 = vmatprep.subr.mxu0 0.0
    %1762 = vmatpush1.msra.mxu0 0.0
    %1763 = vmatprep.subr.mxu0 0.0
    %1764 = vmatpush1.msra.mxu0 0.0
    %1765 = vmatprep.subr.mxu0 0.0
    %1766 = vmatpush1.msra.mxu0 0.0
    %1767 = vmatprep.subr.mxu0 0.0
    %1768 = vmatpush1.msra.mxu0 0.0
    %1769 = vmatprep.subr.mxu0 0.0
    %1770 = vmatpush1.msra.mxu0 0.0
    %1771 = vmatprep.subr.mxu0 0.0
    %1772 = vmatpush1.msra.mxu0 0.0
    %1773 = vmatprep.subr.mxu0 0.0
    %1774 = vmatpush1.msra.mxu0 0.0
    %1775 = vmatprep.mubr.f32.mxu0 0.0
    %1776 = vmatmul.mubr.f32.gmra.mrb[0].mxu0 %v1637
    %v1777 = vpop.f32.mrb[0].mxu0
    %v1778 = vadd.f32 0.0, %v1777
    %v1779 = vpop.f32.mrb[0].mxu0
    %v1780 = vadd.f32 0.0, %v1779
    %1781 = vdwg.mxu0
    %1782 = vmatprep.subr.mxu0 %v1650
    %1783 = vmatpush1.msra.mxu0 %v1649
    %1784 = vmatprep.subr.mxu0 %v1654
    %1785 = vmatpush1.msra.mxu0 %v1653
    %1786 = vmatprep.subr.mxu0 %v1658
    %1787 = vmatpush1.msra.mxu0 %v1657
    %1788 = vmatprep.subr.mxu0 %v1662
    %1789 = vmatpush1.msra.mxu0 %v1661
    %1790 = vmatprep.subr.mxu0 %v1666
    %1791 = vmatpush1.msra.mxu0 %v1665
    %1792 = vmatprep.subr.mxu0 %v1670
    %1793 = vmatpush1.msra.mxu0 %v1669
    %1794 = vmatprep.subr.mxu0 %v1674
    %1795 = vmatpush1.msra.mxu0 %v1673
    %1796 = vmatprep.subr.mxu0 %v1678
    %1797 = vmatpush1.msra.mxu0 %v1677
    %1798 = vmatprep.subr.mxu0 %v1682
    %1799 = vmatpush1.msra.mxu0 %v1681
    %1800 = vmatprep.subr.mxu0 %v1686
    %1801 = vmatpush1.msra.mxu0 %v1685
    %1802 = vmatprep.subr.mxu0 %v1690
    %1803 = vmatpush1.msra.mxu0 %v1689
    %1804 = vmatprep.subr.mxu0 %v1694
    %1805 = vmatpush1.msra.mxu0 %v1693
    %1806 = vmatprep.subr.mxu0 %v1698
    %1807 = vmatpush1.msra.mxu0 %v1697
    %1808 = vmatprep.subr.mxu0 %v1702
    %1809 = vmatpush1.msra.mxu0 %v1701
    %1810 = vmatprep.subr.mxu0 %v1706
    %1811 = vmatpush1.msra.mxu0 %v1705
    %1812 = vmatprep.subr.mxu0 %v1710
    %1813 = vmatpush1.msra.mxu0 %v1709
    %1814 = vmatprep.subr.mxu0 0.0
    %1815 = vmatpush1.msra.mxu0 0.0
    %1816 = vmatprep.subr.mxu0 0.0
    %1817 = vmatpush1.msra.mxu0 0.0
    %1818 = vmatprep.subr.mxu0 0.0
    %1819 = vmatpush1.msra.mxu0 0.0
    %1820 = vmatprep.subr.mxu0 0.0
    %1821 = vmatpush1.msra.mxu0 0.0
    %1822 = vmatprep.subr.mxu0 0.0
    %1823 = vmatpush1.msra.mxu0 0.0
    %1824 = vmatprep.subr.mxu0 0.0
    %1825 = vmatpush1.msra.mxu0 0.0
    %1826 = vmatprep.subr.mxu0 0.0
    %1827 = vmatpush1.msra.mxu0 0.0
    %1828 = vmatprep.subr.mxu0 0.0
    %1829 = vmatpush1.msra.mxu0 0.0
    %1830 = vmatprep.subr.mxu0 0.0
    %1831 = vmatpush1.msra.mxu0 0.0
    %1832 = vmatprep.subr.mxu0 0.0
    %1833 = vmatpush1.msra.mxu0 0.0
    %1834 = vmatprep.subr.mxu0 0.0
    %1835 = vmatpush1.msra.mxu0 0.0
    %1836 = vmatprep.subr.mxu0 0.0
    %1837 = vmatpush1.msra.mxu0 0.0
    %1838 = vmatprep.subr.mxu0 0.0
    %1839 = vmatpush1.msra.mxu0 0.0
    %1840 = vmatprep.subr.mxu0 0.0
    %1841 = vmatpush1.msra.mxu0 0.0
    %1842 = vmatprep.subr.mxu0 0.0
    %1843 = vmatpush1.msra.mxu0 0.0
    %1844 = vmatprep.subr.mxu0 0.0
    %1845 = vmatpush1.msra.mxu0 0.0
    %1846 = vmatprep.mubr.f32.mxu0 0.0
    %1847 = vmatmul.mubr.f32.gmra.mrb[0].mxu0 %v1637
    %v1848 = vpop.f32.mrb[0].mxu0
    %v1849 = vadd.f32 0.0, %v1848
    %v1850 = vpop.f32.mrb[0].mxu0
    %v1851 = vadd.f32 0.0, %v1850
    %1852 = vdwg.mxu0
    %v1853 = vadd.f32 %v1643, %v1778
    %v1854 = vadd.f32 %v1644, %v1780
    %v1855 = vadd.f32 %v1645, %v1849
    %v1856 = vadd.f32 %v1646, %v1851
    %v1857 = vxor.u32 %v1853, 2147483648
    %v1858 = vmul.f32 %v1857, 1.442695
    %v1859 = vpow.pop %v1858
    %v1860 = vadd.f32 %v1859, 1.0
    %v1861 = vrcp.pop %v1860
    %v1862 = vmul.f32 1.0, %v1861
    %v1863 = vxor.u32 %v1854, 2147483648
    %v1864 = vmul.f32 %v1863, 1.442695
    %v1865 = vpow.pop %v1864
    %v1866 = vadd.f32 %v1865, 1.0
    %v1867 = vrcp.pop %v1866
    %v1868 = vmul.f32 1.0, %v1867
    %v1869 = vtanh.pop %v1856
    %v1870 = vmul.f32 %v1868, %v1629
    %v1871 = vmul.f32 %v1862, %v1869
    %v1872 = vadd.f32 %v1870, %v1871
    %v1873 = vxor.u32 %v1855, 2147483648
    %v1874 = vmul.f32 %v1873, 1.442695
    %v1875 = vpow.pop %v1874
    %v1876 = vadd.f32 %v1875, 1.0
    %v1877 = vrcp.pop %v1876
    %v1878 = vmul.f32 1.0, %v1877
    %v1879 = vtanh.pop %v1872
    %v1880 = vmul.f32 %v1878, %v1879
    %s1881 = scalar_lea.vmem [#allocation11], 40
    %1882 = vst [vmem:[%s1881] sm:$0xff] %v1880
    %s1883 = smul.u32 6, 4
    %s1884 = smul.addr %s1883, 8
    %s1885 = scalar_lea.vmem [#allocation2], %s1884
    %v1886 = vld [vmem:[%s1885] sm:$0xff]
    %v1887 = vld [vmem:[%s1885 + $0x8] sm:$0xff]
    %v1888 = vld [vmem:[%s1885 + $0x10] sm:$0xff]
    %v1889 = vld [vmem:[%s1885 + $0x18] sm:$0xff]
    %v1890 = vld [vmem:[#allocation8] sm:$0xff]
    %v1891 = vld [vmem:[#allocation8 + $0x8] sm:$0xff]
    %v1892 = vld [vmem:[#allocation8 + $0x10] sm:$0xff]
    %v1893 = vld [vmem:[#allocation8 + $0x18] sm:$0xff]
    %v1894 = vld [vmem:[#allocation8 + $0x20] sm:$0xff]
    %v1895 = vld [vmem:[#allocation8 + $0x28] sm:$0xff]
    %v1896 = vld [vmem:[#allocation8 + $0x30] sm:$0xff]
    %v1897 = vld [vmem:[#allocation8 + $0x38] sm:$0xff]
    %v1898 = vld [vmem:[#allocation8 + $0x40] sm:$0xff]
    %v1899 = vld [vmem:[#allocation8 + $0x48] sm:$0xff]
    %v1900 = vld [vmem:[#allocation8 + $0x50] sm:$0xff]
    %v1901 = vld [vmem:[#allocation8 + $0x58] sm:$0xff]
    %v1902 = vld [vmem:[#allocation8 + $0x60] sm:$0xff]
    %v1903 = vld [vmem:[#allocation8 + $0x68] sm:$0xff]
    %v1904 = vld [vmem:[#allocation8 + $0x70] sm:$0xff]
    %v1905 = vld [vmem:[#allocation8 + $0x78] sm:$0xff]
    %v1906 = vld [vmem:[#allocation8 + $0x80] sm:$0xff]
    %v1907 = vld [vmem:[#allocation8 + $0x88] sm:$0xff]
    %v1908 = vld [vmem:[#allocation8 + $0x90] sm:$0xff]
    %v1909 = vld [vmem:[#allocation8 + $0x98] sm:$0xff]
    %v1910 = vld [vmem:[#allocation8 + $0xa0] sm:$0xff]
    %v1911 = vld [vmem:[#allocation8 + $0xa8] sm:$0xff]
    %v1912 = vld [vmem:[#allocation8 + $0xb0] sm:$0xff]
    %v1913 = vld [vmem:[#allocation8 + $0xb8] sm:$0xff]
    %v1914 = vld [vmem:[#allocation8 + $0xc0] sm:$0xff]
    %v1915 = vld [vmem:[#allocation8 + $0xc8] sm:$0xff]
    %v1916 = vld [vmem:[#allocation8 + $0xd0] sm:$0xff]
    %v1917 = vld [vmem:[#allocation8 + $0xd8] sm:$0xff]
    %v1918 = vld [vmem:[#allocation8 + $0xe0] sm:$0xff]
    %v1919 = vld [vmem:[#allocation8 + $0xe8] sm:$0xff]
    %v1920 = vld [vmem:[#allocation8 + $0xf0] sm:$0xff]
    %v1921 = vld [vmem:[#allocation8 + $0xf8] sm:$0xff]
    %v1922 = vld [vmem:[#allocation8 + $0x100] sm:$0xff]
    %v1923 = vld [vmem:[#allocation8 + $0x108] sm:$0xff]
    %v1924 = vld [vmem:[#allocation8 + $0x110] sm:$0xff]
    %v1925 = vld [vmem:[#allocation8 + $0x118] sm:$0xff]
    %v1926 = vld [vmem:[#allocation8 + $0x120] sm:$0xff]
    %v1927 = vld [vmem:[#allocation8 + $0x128] sm:$0xff]
    %v1928 = vld [vmem:[#allocation8 + $0x130] sm:$0xff]
    %v1929 = vld [vmem:[#allocation8 + $0x138] sm:$0xff]
    %v1930 = vld [vmem:[#allocation8 + $0x140] sm:$0xff]
    %v1931 = vld [vmem:[#allocation8 + $0x148] sm:$0xff]
    %v1932 = vld [vmem:[#allocation8 + $0x150] sm:$0xff]
    %v1933 = vld [vmem:[#allocation8 + $0x158] sm:$0xff]
    %v1934 = vld [vmem:[#allocation8 + $0x160] sm:$0xff]
    %v1935 = vld [vmem:[#allocation8 + $0x168] sm:$0xff]
    %v1936 = vld [vmem:[#allocation8 + $0x170] sm:$0xff]
    %v1937 = vld [vmem:[#allocation8 + $0x178] sm:$0xff]
    %v1938 = vld [vmem:[#allocation8 + $0x180] sm:$0xff]
    %v1939 = vld [vmem:[#allocation8 + $0x188] sm:$0xff]
    %v1940 = vld [vmem:[#allocation8 + $0x190] sm:$0xff]
    %v1941 = vld [vmem:[#allocation8 + $0x198] sm:$0xff]
    %v1942 = vld [vmem:[#allocation8 + $0x1a0] sm:$0xff]
    %v1943 = vld [vmem:[#allocation8 + $0x1a8] sm:$0xff]
    %v1944 = vld [vmem:[#allocation8 + $0x1b0] sm:$0xff]
    %v1945 = vld [vmem:[#allocation8 + $0x1b8] sm:$0xff]
    %v1946 = vld [vmem:[#allocation8 + $0x1c0] sm:$0xff]
    %v1947 = vld [vmem:[#allocation8 + $0x1c8] sm:$0xff]
    %v1948 = vld [vmem:[#allocation8 + $0x1d0] sm:$0xff]
    %v1949 = vld [vmem:[#allocation8 + $0x1d8] sm:$0xff]
    %v1950 = vld [vmem:[#allocation8 + $0x1e0] sm:$0xff]
    %v1951 = vld [vmem:[#allocation8 + $0x1e8] sm:$0xff]
    %v1952 = vld [vmem:[#allocation8 + $0x1f0] sm:$0xff]
    %v1953 = vld [vmem:[#allocation8 + $0x1f8] sm:$0xff]
    %1954 = vmatprep.subr.mxu0 %v1891
    %1955 = vmatpush1.msra.mxu0 %v1890
    %1956 = vmatprep.subr.mxu0 %v1895
    %1957 = vmatpush1.msra.mxu0 %v1894
    %1958 = vmatprep.subr.mxu0 %v1899
    %1959 = vmatpush1.msra.mxu0 %v1898
    %1960 = vmatprep.subr.mxu0 %v1903
    %1961 = vmatpush1.msra.mxu0 %v1902
    %1962 = vmatprep.subr.mxu0 %v1907
    %1963 = vmatpush1.msra.mxu0 %v1906
    %1964 = vmatprep.subr.mxu0 %v1911
    %1965 = vmatpush1.msra.mxu0 %v1910
    %1966 = vmatprep.subr.mxu0 %v1915
    %1967 = vmatpush1.msra.mxu0 %v1914
    %1968 = vmatprep.subr.mxu0 %v1919
    %1969 = vmatpush1.msra.mxu0 %v1918
    %1970 = vmatprep.subr.mxu0 %v1923
    %1971 = vmatpush1.msra.mxu0 %v1922
    %1972 = vmatprep.subr.mxu0 %v1927
    %1973 = vmatpush1.msra.mxu0 %v1926
    %1974 = vmatprep.subr.mxu0 %v1931
    %1975 = vmatpush1.msra.mxu0 %v1930
    %1976 = vmatprep.subr.mxu0 %v1935
    %1977 = vmatpush1.msra.mxu0 %v1934
    %1978 = vmatprep.subr.mxu0 %v1939
    %1979 = vmatpush1.msra.mxu0 %v1938
    %1980 = vmatprep.subr.mxu0 %v1943
    %1981 = vmatpush1.msra.mxu0 %v1942
    %1982 = vmatprep.subr.mxu0 %v1947
    %1983 = vmatpush1.msra.mxu0 %v1946
    %1984 = vmatprep.subr.mxu0 %v1951
    %1985 = vmatpush1.msra.mxu0 %v1950
    %1986 = vmatprep.subr.mxu0 0.0
    %1987 = vmatpush1.msra.mxu0 0.0
    %1988 = vmatprep.subr.mxu0 0.0
    %1989 = vmatpush1.msra.mxu0 0.0
    %1990 = vmatprep.subr.mxu0 0.0
    %1991 = vmatpush1.msra.mxu0 0.0
    %1992 = vmatprep.subr.mxu0 0.0
    %1993 = vmatpush1.msra.mxu0 0.0
    %1994 = vmatprep.subr.mxu0 0.0
    %1995 = vmatpush1.msra.mxu0 0.0
    %1996 = vmatprep.subr.mxu0 0.0
    %1997 = vmatpush1.msra.mxu0 0.0
    %1998 = vmatprep.subr.mxu0 0.0
    %1999 = vmatpush1.msra.mxu0 0.0
    %2000 = vmatprep.subr.mxu0 0.0
    %2001 = vmatpush1.msra.mxu0 0.0
    %2002 = vmatprep.subr.mxu0 0.0
    %2003 = vmatpush1.msra.mxu0 0.0
    %2004 = vmatprep.subr.mxu0 0.0
    %2005 = vmatpush1.msra.mxu0 0.0
    %2006 = vmatprep.subr.mxu0 0.0
    %2007 = vmatpush1.msra.mxu0 0.0
    %2008 = vmatprep.subr.mxu0 0.0
    %2009 = vmatpush1.msra.mxu0 0.0
    %2010 = vmatprep.subr.mxu0 0.0
    %2011 = vmatpush1.msra.mxu0 0.0
    %2012 = vmatprep.subr.mxu0 0.0
    %2013 = vmatpush1.msra.mxu0 0.0
    %2014 = vmatprep.subr.mxu0 0.0
    %2015 = vmatpush1.msra.mxu0 0.0
    %2016 = vmatprep.subr.mxu0 0.0
    %2017 = vmatpush1.msra.mxu0 0.0
    %2018 = vmatprep.mubr.f32.mxu0 0.0
    %2019 = vmatmul.mubr.f32.gmra.mrb[0].mxu0 %v1880
    %v2020 = vpop.f32.mrb[0].mxu0
    %v2021 = vadd.f32 0.0, %v2020
    %v2022 = vpop.f32.mrb[0].mxu0
    %v2023 = vadd.f32 0.0, %v2022
    %2024 = vdwg.mxu0
    %2025 = vmatprep.subr.mxu0 %v1893
    %2026 = vmatpush1.msra.mxu0 %v1892
    %2027 = vmatprep.subr.mxu0 %v1897
    %2028 = vmatpush1.msra.mxu0 %v1896
    %2029 = vmatprep.subr.mxu0 %v1901
    %2030 = vmatpush1.msra.mxu0 %v1900
    %2031 = vmatprep.subr.mxu0 %v1905
    %2032 = vmatpush1.msra.mxu0 %v1904
    %2033 = vmatprep.subr.mxu0 %v1909
    %2034 = vmatpush1.msra.mxu0 %v1908
    %2035 = vmatprep.subr.mxu0 %v1913
    %2036 = vmatpush1.msra.mxu0 %v1912
    %2037 = vmatprep.subr.mxu0 %v1917
    %2038 = vmatpush1.msra.mxu0 %v1916
    %2039 = vmatprep.subr.mxu0 %v1921
    %2040 = vmatpush1.msra.mxu0 %v1920
    %2041 = vmatprep.subr.mxu0 %v1925
    %2042 = vmatpush1.msra.mxu0 %v1924
    %2043 = vmatprep.subr.mxu0 %v1929
    %2044 = vmatpush1.msra.mxu0 %v1928
    %2045 = vmatprep.subr.mxu0 %v1933
    %2046 = vmatpush1.msra.mxu0 %v1932
    %2047 = vmatprep.subr.mxu0 %v1937
    %2048 = vmatpush1.msra.mxu0 %v1936
    %2049 = vmatprep.subr.mxu0 %v1941
    %2050 = vmatpush1.msra.mxu0 %v1940
    %2051 = vmatprep.subr.mxu0 %v1945
    %2052 = vmatpush1.msra.mxu0 %v1944
    %2053 = vmatprep.subr.mxu0 %v1949
    %2054 = vmatpush1.msra.mxu0 %v1948
    %2055 = vmatprep.subr.mxu0 %v1953
    %2056 = vmatpush1.msra.mxu0 %v1952
    %2057 = vmatprep.subr.mxu0 0.0
    %2058 = vmatpush1.msra.mxu0 0.0
    %2059 = vmatprep.subr.mxu0 0.0
    %2060 = vmatpush1.msra.mxu0 0.0
    %2061 = vmatprep.subr.mxu0 0.0
    %2062 = vmatpush1.msra.mxu0 0.0
    %2063 = vmatprep.subr.mxu0 0.0
    %2064 = vmatpush1.msra.mxu0 0.0
    %2065 = vmatprep.subr.mxu0 0.0
    %2066 = vmatpush1.msra.mxu0 0.0
    %2067 = vmatprep.subr.mxu0 0.0
    %2068 = vmatpush1.msra.mxu0 0.0
    %2069 = vmatprep.subr.mxu0 0.0
    %2070 = vmatpush1.msra.mxu0 0.0
    %2071 = vmatprep.subr.mxu0 0.0
    %2072 = vmatpush1.msra.mxu0 0.0
    %2073 = vmatprep.subr.mxu0 0.0
    %2074 = vmatpush1.msra.mxu0 0.0
    %2075 = vmatprep.subr.mxu0 0.0
    %2076 = vmatpush1.msra.mxu0 0.0
    %2077 = vmatprep.subr.mxu0 0.0
    %2078 = vmatpush1.msra.mxu0 0.0
    %2079 = vmatprep.subr.mxu0 0.0
    %2080 = vmatpush1.msra.mxu0 0.0
    %2081 = vmatprep.subr.mxu0 0.0
    %2082 = vmatpush1.msra.mxu0 0.0
    %2083 = vmatprep.subr.mxu0 0.0
    %2084 = vmatpush1.msra.mxu0 0.0
    %2085 = vmatprep.subr.mxu0 0.0
    %2086 = vmatpush1.msra.mxu0 0.0
    %2087 = vmatprep.subr.mxu0 0.0
    %2088 = vmatpush1.msra.mxu0 0.0
    %2089 = vmatprep.mubr.f32.mxu0 0.0
    %2090 = vmatmul.mubr.f32.gmra.mrb[0].mxu0 %v1880
    %v2091 = vpop.f32.mrb[0].mxu0
    %v2092 = vadd.f32 0.0, %v2091
    %v2093 = vpop.f32.mrb[0].mxu0
    %v2094 = vadd.f32 0.0, %v2093
    %2095 = vdwg.mxu0
    %v2096 = vadd.f32 %v1886, %v2021
    %v2097 = vadd.f32 %v1887, %v2023
    %v2098 = vadd.f32 %v1888, %v2092
    %v2099 = vadd.f32 %v1889, %v2094
    %v2100 = vxor.u32 %v2096, 2147483648
    %v2101 = vmul.f32 %v2100, 1.442695
    %v2102 = vpow.pop %v2101
    %v2103 = vadd.f32 %v2102, 1.0
    %v2104 = vrcp.pop %v2103
    %v2105 = vmul.f32 1.0, %v2104
    %v2106 = vxor.u32 %v2097, 2147483648
    %v2107 = vmul.f32 %v2106, 1.442695
    %v2108 = vpow.pop %v2107
    %v2109 = vadd.f32 %v2108, 1.0
    %v2110 = vrcp.pop %v2109
    %v2111 = vmul.f32 1.0, %v2110
    %v2112 = vtanh.pop %v2099
    %v2113 = vmul.f32 %v2111, %v1872
    %v2114 = vmul.f32 %v2105, %v2112
    %v2115 = vadd.f32 %v2113, %v2114
    %v2116 = vxor.u32 %v2098, 2147483648
    %v2117 = vmul.f32 %v2116, 1.442695
    %v2118 = vpow.pop %v2117
    %v2119 = vadd.f32 %v2118, 1.0
    %v2120 = vrcp.pop %v2119
    %v2121 = vmul.f32 1.0, %v2120
    %v2122 = vtanh.pop %v2115
    %v2123 = vmul.f32 %v2121, %v2122
    %s2124 = scalar_lea.vmem [#allocation11], 48
    %2125 = vst [vmem:[%s2124] sm:$0xff] %v2123
    %2126 = vst [vmem:[#allocation12] sm:$0xff] %v2123
    %2127 = vst [vmem:[#allocation14] sm:$0xff] %v2115
    // Predicated region
    $region46: #{tpu_custom_call.1} parent=1 // pred_check
      _
    $region47: #{tpu_custom_call.1} parent=1 // pred_check_branch
      %2129 = sbr.rel (0) target = $region49
    $region48: #{tpu_custom_call.1} parent=1 // pred_region
      %s2131 = ssub.s32 896, 896
      %2132 = vsyncadd [#allocation5], %s2131
      %s2133 = sshll.u32 [#allocation11], 4
      %s2134 = int_to_ptr.vmem [resolvable:$true] %s2133
      %2139 = dma.vmem_to_hbm [thread:$0]  %s2134, 896, %s6, [#allocation5], 128, 128, 8
    $region49: #{tpu_custom_call.1} parent=1 // pred_fallthru
      _
    // Predicated region
    $region50: #{tpu_custom_call.1} parent=1 // pred_check
      _
    $region51: #{tpu_custom_call.1} parent=1 // pred_check_branch
      %2141 = sbr.rel (0) target = $region53
    $region52: #{tpu_custom_call.1} parent=1 // pred_region
      %s2143 = ssub.s32 128, 128
      %2144 = vsyncadd [#allocation13], %s2143
      %s2146 = sshll.u32 [#allocation12], 4
      %s2147 = int_to_ptr.vmem [resolvable:$true] %s2146
      %2149 = dma.vmem_to_hbm [thread:$0]  %s2147, 128, %s7, [#allocation13]
    $region53: #{tpu_custom_call.1} parent=1 // pred_fallthru
      _
    // Predicated region
    $region54: #{tpu_custom_call.1} parent=1 // pred_check
      _
    $region55: #{tpu_custom_call.1} parent=1 // pred_check_branch
      %2151 = sbr.rel (0) target = $region57
    $region56: #{tpu_custom_call.1} parent=1 // pred_region
      %s2153 = ssub.s32 128, 128
      %2154 = vsyncadd [#allocation13], %s2153
      %s2156 = sshll.u32 [#allocation14], 4
      %s2157 = int_to_ptr.vmem [resolvable:$true] %s2156
      %2159 = dma.vmem_to_hbm [thread:$0]  %s2157, 128, %s8, [#allocation13]
    $region57: #{tpu_custom_call.1} parent=1 // pred_fallthru
      _
    // Predicated region
    $region58: #{tpu_custom_call.1} parent=1 // pred_check
      _
    $region59: #{tpu_custom_call.1} parent=1 // pred_check_branch
      %2161 = sbr.rel (0) target = $region61
    $region60: #{tpu_custom_call.1} parent=1 // pred_region
      %2162 = dma.done [#allocation5], 896
    $region61: #{tpu_custom_call.1} parent=1 // pred_fallthru
      _
    // Predicated region
    $region62: #{tpu_custom_call.1} parent=1 // pred_check
      _
    $region63: #{tpu_custom_call.1} parent=1 // pred_check_branch
      %2164 = sbr.rel (0) target = $region65
    $region64: #{tpu_custom_call.1} parent=1 // pred_region
      %2165 = dma.done [#allocation13], 128
    $region65: #{tpu_custom_call.1} parent=1 // pred_fallthru
      _
    // Predicated region
    $region66: #{tpu_custom_call.1} parent=1 // pred_check
      _
    $region67: #{tpu_custom_call.1} parent=1 // pred_check_branch
      %2167 = sbr.rel (0) target = $region69
    $region68: #{tpu_custom_call.1} parent=1 // pred_region
      %2168 = dma.done [#allocation13], 128
    $region69: #{tpu_custom_call.1} parent=1 // pred_fallthru
      _
    %2169 = vsyncpa [#allocation4], 1
    %2170 = vsyncpa [#allocation7], 1
    %2171 = vsyncpa [#allocation10], 1
    %2172 = vsyncpa [#allocation5], 1
    %2173 = vsyncpa [#allocation13], 1

</llo_original>
